<compile_context>
chip_gen: v5e
topology: v5e:2x2
jax: 0.10.0
libtpu: 0.0.40
codegen_flags: <defaults>
</compile_context>

<pallas_src>
import functools
from typing import NamedTuple, Tuple

import jax
import jax.numpy as jnp
from jax.experimental import pallas as pl
from jax.experimental.pallas import tpu as pltpu

_LANE = 128      # last-dim granule (vreg lanes)
_SUBLANE = 8     # second-to-last-dim granule (vreg sublanes, f32)
_MIB = 1024 * 1024


def _round_up(x, m):
    return (x + m - 1) // m * m


def _vmem_capacity_bytes():
    try:
        return int(pltpu.get_tpu_info().vmem_capacity_bytes)
    except Exception:
        return 64 * _MIB  # conservative: v7x per-TensorCore VMEM


def _default_relu_low_precision():
    # v6e/v7x have a bf16 VPU: ReLU on the downcast value (identical result, half the vregs).
    try:
        kind = jax.devices()[0].device_kind.lower()
        return ("v6" in kind) or ("v7" in kind)
    except Exception:
        return False


# ----------------------------------------------------------------------------- kernel


def _fused_mlp_kernel(*refs, num_layers, compute_dtype, relu_low_precision, stream_cfg):
    """Fused MLP over one batch tile.

    refs = (x_ref, w0_ref, b0_ref, ..., o_ref, *scratch)
      x_ref : (TB, D0_pad)                 compute_dtype (bf16)
      wl_ref: (Dl_pad, Dl+1_pad) VMEM tile OR full HBM ref (streamed layers)
      bl_ref: (1, Dl+1_pad)                f32, VMEM-resident
      o_ref : (TB, DL_pad)                 output dtype
      scratch (per streamed layer): wbuf (2, Dl_pad, TN) + DMA sem (2,)
    """
    x_ref = refs[0]
    wb = refs[1:1 + 2 * num_layers]
    o_ref = refs[1 + 2 * num_layers]
    scratch = refs[2 + 2 * num_layers:]

    h = x_ref[...]
    s_idx = 0
    for layer in range(num_layers):
        w_ref = wb[2 * layer]
        b_ref = wb[2 * layer + 1]
        cfg = stream_cfg[layer]

        if cfg is None:
            # Weight fully VMEM-resident: one MXU matmul (bf16 in, f32 acc).
            acc = jnp.dot(h, w_ref[...], preferred_element_type=jnp.float32)
            acc = acc + b_ref[...]
        else:
            # Weight streaming: weight stays in HBM, (D_in, TN) column panels are
            # double-buffered through VMEM and overlapped with the per-panel dot.
            tn, n_panels = cfg
            wbuf = scratch[s_idx]
            sem = scratch[s_idx + 1]
            s_idx += 2

            pltpu.make_async_copy(w_ref.at[:, pl.ds(0, tn)], wbuf.at[0], sem.at[0]).start()
            panels = []
            for p in range(n_panels):                       # static trip count
                slot = p % 2
                off = p * tn
                pltpu.make_async_copy(
                    w_ref.at[:, pl.ds(off, tn)], wbuf.at[slot], sem.at[slot]).wait()
                if p + 1 < n_panels:                        # prefetch next panel
                    noff = (p + 1) * tn
                    pltpu.make_async_copy(
                        w_ref.at[:, pl.ds(noff, tn)], wbuf.at[1 - slot], sem.at[1 - slot]
                    ).start()
                pacc = jnp.dot(h, wbuf[slot], preferred_element_type=jnp.float32)
                panels.append(pacc + b_ref[:, pl.ds(off, tn)])
            acc = panels[0] if n_panels == 1 else jnp.concatenate(panels, axis=-1)

        if layer < num_layers - 1:
            if relu_low_precision:
                h = jnp.maximum(acc.astype(compute_dtype), 0)   # bf16 VPU path (v6e/v7x)
            else:
                h = jnp.maximum(acc, 0.0).astype(compute_dtype)  # f32 path (v5e)
        else:
            o_ref[...] = acc.astype(o_ref.dtype)                 # single final cast, lane-dense store


# ----------------------------------------------------------------------------- params


def init_mlp_params(key, input_dim, hidden_dim, output_dim, num_layers, dtype=jnp.float32):
    """Deterministic synthetic init matching the PyTorch module's layer shapes.

    Weights are stored pre-transposed as (in, out); biases as (out,).
    """
    h = [hidden_dim] * (num_layers - 1)
    dims_in = [input_dim] + h
    dims_out = h + [output_dim]
    params = []
    for n, k in zip(dims_in, dims_out):
        key, kw, kb = jax.random.split(key, 3)
        bound = 1.0 / (n ** 0.5)
        w = jax.random.uniform(kw, (n, k), dtype=dtype, minval=-bound, maxval=bound)
        b = jax.random.uniform(kb, (k,), dtype=dtype, minval=-bound, maxval=bound)
        params.append((w, b))
    return params


class PreparedMLP(NamedTuple):
    weights: Tuple[jax.Array, ...]   # (din_pad, dout_pad), compute_dtype
    biases: Tuple[jax.Array, ...]    # (1, dout_pad), float32
    dims: Tuple[int, ...]            # logical [d_in, d_h, ..., d_out]
    dims_pad: Tuple[int, ...]
    compute_dtype: object


def prepare_mlp_params(params, compute_dtype=jnp.bfloat16):
    """Pad feature dims to multiples of 128 and cast ONCE (hoisted out of the forward)."""
    dims = [params[0][0].shape[0]] + [w.shape[1] for (w, _) in params]
    dims_pad = [_round_up(d, _LANE) for d in dims]
    weights, biases = [], []
    for l, (w, b) in enumerate(params):
        wi, wo = w.shape
        weights.append(jnp.pad(w.astype(compute_dtype),
                               ((0, dims_pad[l] - wi), (0, dims_pad[l + 1] - wo))))
        biases.append(jnp.pad(b.astype(jnp.float32).reshape(1, -1),
                              ((0, 0), (0, dims_pad[l + 1] - wo))))
    return PreparedMLP(tuple(weights), tuple(biases), tuple(dims), tuple(dims_pad),
                       compute_dtype)


# ----------------------------------------------------------------------------- wrapper


def _pick_tb(b_pad8, block_b):
    """Largest batch tile (multiple of 8) that keeps batch padding small."""
    cands = [c for c in (1024, 512, 256, 128, 64, 32, 16, 8) if c <= max(block_b, 8)]
    if block_b % _SUBLANE == 0 and block_b not in cands:
        cands = sorted(set(cands + [block_b]), reverse=True)
    for tb in cands:
        if _round_up(b_pad8, tb) - b_pad8 <= max(b_pad8 // 8, 0):
            return tb
    return 8


def _pick_tn(din_pad, dout_pad, itemsize, max_panel_bytes):
    """Largest lane-multiple panel width dividing dout_pad that fits the panel budget."""
    n128 = dout_pad // _LANE
    for k in range(n128, 0, -1):
        if n128 % k == 0 and din_pad * (_LANE * k) * itemsize <= max_panel_bytes:
            return _LANE * k
    return _LANE


def mlp_forward(x, params, *, compute_dtype=jnp.bfloat16, block_b=256,
                force_stream=False, max_panel_bytes=4 * _MIB, relu_low_precision=None):
    """Run the fused MLP Pallas kernel. Supports arbitrary leading dims (features last).

    `params` is either the raw [(w, b), ...] list or a PreparedMLP (preferred: pad/cast once).
    """
    if isinstance(params, PreparedMLP):
        prep = params
        compute_dtype = prep.compute_dtype
    else:
        prep = prepare_mlp_params(params, compute_dtype)

    num_layers = len(prep.weights)
    dims, dims_pad = list(prep.dims), list(prep.dims_pad)
    if relu_low_precision is None:
        relu_low_precision = _default_relu_low_precision()

    orig_shape = x.shape
    d_in = orig_shape[-1]
    assert d_in == dims[0], (d_in, dims[0])
    x2 = x.reshape(-1, d_in)
    B = x2.shape[0]
    out_dtype = x.dtype

    ic = jnp.dtype(compute_dtype).itemsize
    oc = jnp.dtype(out_dtype).itemsize

    # Batch tiling: TB multiple of 8, chosen to limit padding; pad B to a multiple of TB.
    b_pad8 = _round_up(B, _SUBLANE)
    TB = _pick_tb(b_pad8, block_b)
    B_pad = _round_up(b_pad8, TB)
    grid = (B_pad // TB,)
    n_steps = grid[0]

    # Zero-pad + cast activations once per call (weights are pre-padded in prepare_mlp_params).
    xp = jnp.pad(x2.astype(compute_dtype), ((0, B_pad - B), (0, dims_pad[0] - d_in)))

    # ---- generation-aware VMEM budgeting & per-layer resident-vs-stream decision ----
    cap = _vmem_capacity_bytes()
    cap_budget = cap - max(12 * _MIB, cap // 6)      # headroom for Mosaic internal scratch
    fixed = 2 * TB * dims_pad[0] * ic + 2 * TB * dims_pad[-1] * oc    # double-buffered x/out
    fixed += sum(d * 4 for d in dims_pad[1:])                          # f32 biases (single buf)
    fixed += 2 * TB * max(dims_pad) * (4 + ic)                         # activation working set
    weight_budget = max(cap_budget - fixed, 0)

    stream_cfg = []
    used = 0
    for l in range(num_layers):
        wbytes = dims_pad[l] * dims_pad[l + 1] * ic
        if (not force_stream) and used + wbytes <= weight_budget:
            stream_cfg.append(None)                   # VMEM-resident
            used += wbytes
        else:                                          # stream column panels from HBM
            tn = _pick_tn(dims_pad[l], dims_pad[l + 1], ic, max_panel_bytes)
            stream_cfg.append((tn, dims_pad[l + 1] // tn))
            used += 2 * dims_pad[l] * tn * ic          # double-buffered panel scratch
    stream_cfg = tuple(stream_cfg)
    stream_scratch_bytes = sum(2 * dims_pad[l] * stream_cfg[l][0] * ic
                               for l in range(num_layers) if stream_cfg[l] is not None)
    resident_bytes = sum(dims_pad[l] * dims_pad[l + 1] * ic
                         for l in range(num_layers) if stream_cfg[l] is None)

    # ---- cost estimate (streamed weights are re-read once per batch tile) ----
    flops = 2 * B_pad * sum(dims_pad[l] * dims_pad[l + 1] for l in range(num_layers))
    bytes_accessed = B_pad * dims_pad[0] * ic + B_pad * dims_pad[-1] * oc
    for l in range(num_layers):
        mult = n_steps if stream_cfg[l] is not None else 1
        bytes_accessed += mult * dims_pad[l] * dims_pad[l + 1] * ic + dims_pad[l + 1] * 4
    cost = pl.CostEstimate(flops=flops, transcendentals=0, bytes_accessed=bytes_accessed)

    kernel = functools.partial(
        _fused_mlp_kernel, num_layers=num_layers, compute_dtype=compute_dtype,
        relu_low_precision=relu_low_precision, stream_cfg=stream_cfg)

    # TODO(synk): optional weight-only fp8 (e4m3 + per-output-channel scales) on v7x to
    # halve weight VMEM/DMA and ~2x MXU throughput.

    def _build(single_buffer_invariants):
        inv_kwargs = {"pipeline_mode": pl.Buffered(1)} if single_buffer_invariants else {}
        in_specs = [pl.BlockSpec((TB, dims_pad[0]), lambda i: (i, 0))]
        scratch_shapes = []
        for l in range(num_layers):
            if stream_cfg[l] is None:
                in_specs.append(pl.BlockSpec((dims_pad[l], dims_pad[l + 1]),
                                             lambda i: (0, 0), **inv_kwargs))
            else:
                in_specs.append(pl.BlockSpec(memory_space=pl.ANY))   # weight stays in HBM
                tn, _ = stream_cfg[l]
                scratch_shapes.append(pltpu.VMEM((2, dims_pad[l], tn), compute_dtype))
                scratch_shapes.append(pltpu.SemaphoreType.DMA((2,)))
            in_specs.append(pl.BlockSpec((1, dims_pad[l + 1]), lambda i: (0, 0), **inv_kwargs))

        w_mult = 1 if single_buffer_invariants else 2
        vmem_need = fixed + w_mult * resident_bytes + stream_scratch_bytes + 2 * _MIB
        vmem_limit = int(max(min(max(vmem_need, 32 * _MIB), cap_budget), 16 * _MIB))

        return pl.pallas_call(
            kernel,
            out_shape=jax.ShapeDtypeStruct((B_pad, dims_pad[-1]), out_dtype),
            grid_spec=pltpu.PrefetchScalarGridSpec(
                num_scalar_prefetch=0,
                grid=grid,
                in_specs=in_specs,
                out_specs=pl.BlockSpec((TB, dims_pad[-1]), lambda i: (i, 0)),
                scratch_shapes=scratch_shapes),
            compiler_params=pltpu.CompilerParams(
                dimension_semantics=("parallel",),
                vmem_limit_bytes=vmem_limit),
            cost_estimate=cost,
        )

    wb_inputs = []
    for l in range(num_layers):
        wb_inputs.extend([prep.weights[l], prep.biases[l]])

    try:
        out_pad = _build(True)(xp, *wb_inputs)
    except Exception:
        # Fallback if this JAX build rejects pl.Buffered(1) on grid-invariant blocks.
        out_pad = _build(False)(xp, *wb_inputs)

    out = out_pad[:B, :dims[-1]]
    return out.reshape(orig_shape[:-1] + (dims[-1],))


# ----------------------------------------------------------------------------- reference


def mlp_reference(x, params, *, compute_dtype=jnp.bfloat16):
    """Pure-JAX reference with the same numerics (bf16 matmul, f32 accumulation)."""
    num_layers = len(params)
    h = x.astype(compute_dtype)
    for i, (w, b) in enumerate(params):
        acc = jnp.dot(h, w.astype(compute_dtype), preferred_element_type=jnp.float32)
        acc = acc + b.astype(jnp.float32)[None, :]
        if i < num_layers - 1:
            acc = jnp.maximum(acc, 0.0)
            h = acc.astype(compute_dtype)
        else:
            return acc.astype(x.dtype)
    return h.astype(x.dtype)


if __name__ == "__main__":
    key = jax.random.PRNGKey(0)
    k_x, k_p = jax.random.split(key)

    batch = 512        # -> TB=256, grid=(2,): exercises batch pipelining + megacore sharding
    input_dim = 48     # non-multiples of 128 to exercise feature padding
    hidden_dim = 160   # pads to 256 -> >=2 panels in the forced streaming test
    output_dim = 24
    num_layers = 3

    x = jax.random.normal(k_x, (batch, input_dim), dtype=jnp.float32)
    params = init_mlp_params(k_p, input_dim, hidden_dim, output_dim, num_layers)
    prepared = prepare_mlp_params(params)          # pad/cast weights once (hoisted prep)

    ref = jax.block_until_ready(mlp_reference(x, params))

    # Path 1: all weights VMEM-resident (the common case).
    out = jax.block_until_ready(mlp_forward(x, prepared))
    assert out.shape == (batch, output_dim), out.shape
    assert jnp.allclose(out, ref, atol=2e-3, rtol=2e-3), "resident path mismatch vs reference"

    # Path 2: force weight streaming (the HBM->VMEM double-buffered panel path used when
    # weights exceed the VMEM budget, e.g. large layers on v7x's 64 MiB).
    out_s = jax.block_until_ready(
        mlp_forward(x, prepared, force_stream=True, max_panel_bytes=32 * 1024))
    assert out_s.shape == (batch, output_dim), out_s.shape
    assert jnp.allclose(out_s, ref, atol=2e-3, rtol=2e-3), "streaming path mismatch vs reference"

    print("KERNEL_OK")
</pallas_src>

<mosaic_0001>
module attributes {stable_mosaic.version = 11 : i64} {
  func.func @_fused_mlp_kernel(%arg0: i32, %arg1: memref<256x128xbf16, #tpu.memory_space<vmem>>, %arg2: memref<128x256xbf16, #tpu.memory_space<vmem>>, %arg3: memref<1x256xf32, #tpu.memory_space<vmem>>, %arg4: memref<256x256xbf16, #tpu.memory_space<vmem>>, %arg5: memref<1x256xf32, #tpu.memory_space<vmem>>, %arg6: memref<256x128xbf16, #tpu.memory_space<vmem>>, %arg7: memref<1x128xf32, #tpu.memory_space<vmem>>, %arg8: memref<256x128xf32, #tpu.memory_space<vmem>>) attributes {dimension_semantics = [#tpu.dimension_semantics<parallel>], iteration_bounds = array<i64: 2>, scalar_prefetch = 0 : i64, scratch_operands = 0 : i64, tpu.core_type = #tpu.core_type<tc>, window_params = [{transform_indices = @transform_0, window_bounds = array<i64: 256, 128>}, {pipeline_mode = #tpu.pipeline_mode<synchronous>, transform_indices = @transform_1, window_bounds = array<i64: 128, 256>}, {pipeline_mode = #tpu.pipeline_mode<synchronous>, transform_indices = @transform_2, window_bounds = array<i64: 1, 256>}, {pipeline_mode = #tpu.pipeline_mode<synchronous>, transform_indices = @transform_3, window_bounds = array<i64: 256, 256>}, {pipeline_mode = #tpu.pipeline_mode<synchronous>, transform_indices = @transform_4, window_bounds = array<i64: 1, 256>}, {pipeline_mode = #tpu.pipeline_mode<synchronous>, transform_indices = @transform_5, window_bounds = array<i64: 256, 128>}, {pipeline_mode = #tpu.pipeline_mode<synchronous>, transform_indices = @transform_6, window_bounds = array<i64: 1, 128>}, {transform_indices = @transform_7, window_bounds = array<i64: 256, 128>}]} {
    %c0 = arith.constant 0 : index
    %c0_0 = arith.constant 0 : index
    %0 = vector.load %arg1[%c0, %c0_0] : memref<256x128xbf16, #tpu.memory_space<vmem>>, vector<256x128xbf16>
    %c0_1 = arith.constant 0 : index
    %c0_2 = arith.constant 0 : index
    %1 = vector.load %arg2[%c0_1, %c0_2] : memref<128x256xbf16, #tpu.memory_space<vmem>>, vector<128x256xbf16>
    %cst = arith.constant dense<0.000000e+00> : vector<256x256xf32>
    %2 = tpu.matmul %0, %1, %cst {dimension_numbers = #tpu.dot_dimension_numbers<[1], [0], [0], [1], [0, 0, 1, 1], [], []>} : vector<256x128xbf16>, vector<128x256xbf16>, vector<256x256xf32> -> vector<256x256xf32>
    %c0_3 = arith.constant 0 : index
    %c0_4 = arith.constant 0 : index
    %3 = vector.load %arg3[%c0_3, %c0_4] : memref<1x256xf32, #tpu.memory_space<vmem>>, vector<1x256xf32>
    %4 = vector.broadcast %3 : vector<1x256xf32> to vector<256x256xf32>
    %5 = arith.addf %2, %4 : vector<256x256xf32>
    %cst_5 = arith.constant 0.000000e+00 : f32
    %6 = vector.broadcast %cst_5 : f32 to vector<256x256xf32>
    %7 = arith.maximumf %5, %6 : vector<256x256xf32>
    %8 = arith.truncf %7 : vector<256x256xf32> to vector<256x256xbf16>
    %c0_6 = arith.constant 0 : index
    %c0_7 = arith.constant 0 : index
    %9 = vector.load %arg4[%c0_6, %c0_7] : memref<256x256xbf16, #tpu.memory_space<vmem>>, vector<256x256xbf16>
    %cst_8 = arith.constant dense<0.000000e+00> : vector<256x256xf32>
    %10 = tpu.matmul %8, %9, %cst_8 {dimension_numbers = #tpu.dot_dimension_numbers<[1], [0], [0], [1], [0, 0, 1, 1], [], []>} : vector<256x256xbf16>, vector<256x256xbf16>, vector<256x256xf32> -> vector<256x256xf32>
    %c0_9 = arith.constant 0 : index
    %c0_10 = arith.constant 0 : index
    %11 = vector.load %arg5[%c0_9, %c0_10] : memref<1x256xf32, #tpu.memory_space<vmem>>, vector<1x256xf32>
    %12 = vector.broadcast %11 : vector<1x256xf32> to vector<256x256xf32>
    %13 = arith.addf %10, %12 : vector<256x256xf32>
    %cst_11 = arith.constant 0.000000e+00 : f32
    %14 = vector.broadcast %cst_11 : f32 to vector<256x256xf32>
    %15 = arith.maximumf %13, %14 : vector<256x256xf32>
    %16 = arith.truncf %15 : vector<256x256xf32> to vector<256x256xbf16>
    %c0_12 = arith.constant 0 : index
    %c0_13 = arith.constant 0 : index
    %17 = vector.load %arg6[%c0_12, %c0_13] : memref<256x128xbf16, #tpu.memory_space<vmem>>, vector<256x128xbf16>
    %cst_14 = arith.constant dense<0.000000e+00> : vector<256x128xf32>
    %18 = tpu.matmul %16, %17, %cst_14 {dimension_numbers = #tpu.dot_dimension_numbers<[1], [0], [0], [1], [0, 0, 1, 1], [], []>} : vector<256x256xbf16>, vector<256x128xbf16>, vector<256x128xf32> -> vector<256x128xf32>
    %c0_15 = arith.constant 0 : index
    %c0_16 = arith.constant 0 : index
    %19 = vector.load %arg7[%c0_15, %c0_16] : memref<1x128xf32, #tpu.memory_space<vmem>>, vector<1x128xf32>
    %20 = vector.broadcast %19 : vector<1x128xf32> to vector<256x128xf32>
    %21 = arith.addf %18, %20 : vector<256x128xf32>
    %c0_17 = arith.constant 0 : index
    %c0_18 = arith.constant 0 : index
    %22 = vector.load %arg8[%c0_17, %c0_18] : memref<256x128xf32, #tpu.memory_space<vmem>>, vector<256x128xf32>
    tpu.vector_store %arg8[%c0_17, %c0_18], %21 {strides = array<i32>} : memref<256x128xf32, #tpu.memory_space<vmem>>, vector<256x128xf32>,
    return
  }
  func.func @transform_0(%arg0: i32) -> (i32, i32) {
    %c0_i32 = arith.constant 0 : i32
    %c0_i32_0 = arith.constant 0 : i32
    return %arg0, %c0_i32 : i32, i32
  }
  func.func @transform_1(%arg0: i32) -> (i32, i32) {
    %c0_i32 = arith.constant 0 : i32
    %c0_i32_0 = arith.constant 0 : i32
    %c0_i32_1 = arith.constant 0 : i32
    return %c0_i32, %c0_i32_0 : i32, i32
  }
  func.func @transform_2(%arg0: i32) -> (i32, i32) {
    %c0_i32 = arith.constant 0 : i32
    %c0_i32_0 = arith.constant 0 : i32
    %c0_i32_1 = arith.constant 0 : i32
    return %c0_i32, %c0_i32_0 : i32, i32
  }
  func.func @transform_3(%arg0: i32) -> (i32, i32) {
    %c0_i32 = arith.constant 0 : i32
    %c0_i32_0 = arith.constant 0 : i32
    %c0_i32_1 = arith.constant 0 : i32
    return %c0_i32, %c0_i32_0 : i32, i32
  }
  func.func @transform_4(%arg0: i32) -> (i32, i32) {
    %c0_i32 = arith.constant 0 : i32
    %c0_i32_0 = arith.constant 0 : i32
    %c0_i32_1 = arith.constant 0 : i32
    return %c0_i32, %c0_i32_0 : i32, i32
  }
  func.func @transform_5(%arg0: i32) -> (i32, i32) {
    %c0_i32 = arith.constant 0 : i32
    %c0_i32_0 = arith.constant 0 : i32
    %c0_i32_1 = arith.constant 0 : i32
    return %c0_i32, %c0_i32_0 : i32, i32
  }
  func.func @transform_6(%arg0: i32) -> (i32, i32) {
    %c0_i32 = arith.constant 0 : i32
    %c0_i32_0 = arith.constant 0 : i32
    %c0_i32_1 = arith.constant 0 : i32
    return %c0_i32, %c0_i32_0 : i32, i32
  }
  func.func @transform_7(%arg0: i32) -> (i32, i32) {
    %c0_i32 = arith.constant 0 : i32
    %c0_i32_0 = arith.constant 0 : i32
    return %arg0, %c0_i32 : i32, i32
  }
}

module attributes {stable_mosaic.version = 11 : i64} {
  func.func @_fused_mlp_kernel(%arg0: i32, %arg1: memref<256x128xbf16, #tpu.memory_space<vmem>>, %arg2: memref<128x256xbf16, #tpu.memory_space<vmem>>, %arg3: memref<1x256xf32, #tpu.memory_space<vmem>>, %arg4: memref<256x256xbf16, #tpu.memory_space<vmem>>, %arg5: memref<1x256xf32, #tpu.memory_space<vmem>>, %arg6: memref<256x128xbf16, #tpu.memory_space<vmem>>, %arg7: memref<1x128xf32, #tpu.memory_space<vmem>>, %arg8: memref<256x128xf32, #tpu.memory_space<vmem>>) attributes {dimension_semantics = [#tpu.dimension_semantics<parallel>], iteration_bounds = array<i64: 2>, scalar_prefetch = 0 : i64, scratch_operands = 0 : i64, tpu.core_type = #tpu.core_type<tc>, window_params = [{transform_indices = @transform_0, window_bounds = array<i64: 256, 128>}, {pipeline_mode = #tpu.pipeline_mode<synchronous>, transform_indices = @transform_1, window_bounds = array<i64: 128, 256>}, {pipeline_mode = #tpu.pipeline_mode<synchronous>, transform_indices = @transform_2, window_bounds = array<i64: 1, 256>}, {pipeline_mode = #tpu.pipeline_mode<synchronous>, transform_indices = @transform_3, window_bounds = array<i64: 256, 256>}, {pipeline_mode = #tpu.pipeline_mode<synchronous>, transform_indices = @transform_4, window_bounds = array<i64: 1, 256>}, {pipeline_mode = #tpu.pipeline_mode<synchronous>, transform_indices = @transform_5, window_bounds = array<i64: 256, 128>}, {pipeline_mode = #tpu.pipeline_mode<synchronous>, transform_indices = @transform_6, window_bounds = array<i64: 1, 128>}, {transform_indices = @transform_7, window_bounds = array<i64: 256, 128>}]} {
    %c0 = arith.constant 0 : index
    %c0_0 = arith.constant 0 : index
    %0 = vector.load %arg1[%c0, %c0_0] : memref<256x128xbf16, #tpu.memory_space<vmem>>, vector<256x128xbf16>
    %c0_1 = arith.constant 0 : index
    %c0_2 = arith.constant 0 : index
    %1 = vector.load %arg2[%c0_1, %c0_2] : memref<128x256xbf16, #tpu.memory_space<vmem>>, vector<128x256xbf16>
    %cst = arith.constant dense<0.000000e+00> : vector<256x256xf32>
    %2 = tpu.matmul %0, %1, %cst {dimension_numbers = #tpu.dot_dimension_numbers<[1], [0], [0], [1], [0, 0, 1, 1], [], []>} : vector<256x128xbf16>, vector<128x256xbf16>, vector<256x256xf32> -> vector<256x256xf32>
    %c0_3 = arith.constant 0 : index
    %c0_4 = arith.constant 0 : index
    %3 = vector.load %arg3[%c0_3, %c0_4] : memref<1x256xf32, #tpu.memory_space<vmem>>, vector<1x256xf32>
    %4 = vector.broadcast %3 : vector<1x256xf32> to vector<256x256xf32>
    %5 = arith.addf %2, %4 : vector<256x256xf32>
    %cst_5 = arith.constant 0.000000e+00 : f32
    %6 = vector.broadcast %cst_5 : f32 to vector<256x256xf32>
    %7 = arith.maximumf %5, %6 : vector<256x256xf32>
    %8 = arith.truncf %7 : vector<256x256xf32> to vector<256x256xbf16>
    %c0_6 = arith.constant 0 : index
    %c0_7 = arith.constant 0 : index
    %9 = vector.load %arg4[%c0_6, %c0_7] : memref<256x256xbf16, #tpu.memory_space<vmem>>, vector<256x256xbf16>
    %cst_8 = arith.constant dense<0.000000e+00> : vector<256x256xf32>
    %10 = tpu.matmul %8, %9, %cst_8 {dimension_numbers = #tpu.dot_dimension_numbers<[1], [0], [0], [1], [0, 0, 1, 1], [], []>} : vector<256x256xbf16>, vector<256x256xbf16>, vector<256x256xf32> -> vector<256x256xf32>
    %c0_9 = arith.constant 0 : index
    %c0_10 = arith.constant 0 : index
    %11 = vector.load %arg5[%c0_9, %c0_10] : memref<1x256xf32, #tpu.memory_space<vmem>>, vector<1x256xf32>
    %12 = vector.broadcast %11 : vector<1x256xf32> to vector<256x256xf32>
    %13 = arith.addf %10, %12 : vector<256x256xf32>
    %cst_11 = arith.constant 0.000000e+00 : f32
    %14 = vector.broadcast %cst_11 : f32 to vector<256x256xf32>
    %15 = arith.maximumf %13, %14 : vector<256x256xf32>
    %16 = arith.truncf %15 : vector<256x256xf32> to vector<256x256xbf16>
    %c0_12 = arith.constant 0 : index
    %c0_13 = arith.constant 0 : index
    %17 = vector.load %arg6[%c0_12, %c0_13] : memref<256x128xbf16, #tpu.memory_space<vmem>>, vector<256x128xbf16>
    %cst_14 = arith.constant dense<0.000000e+00> : vector<256x128xf32>
    %18 = tpu.matmul %16, %17, %cst_14 {dimension_numbers = #tpu.dot_dimension_numbers<[1], [0], [0], [1], [0, 0, 1, 1], [], []>} : vector<256x256xbf16>, vector<256x128xbf16>, vector<256x128xf32> -> vector<256x128xf32>
    %c0_15 = arith.constant 0 : index
    %c0_16 = arith.constant 0 : index
    %19 = vector.load %arg7[%c0_15, %c0_16] : memref<1x128xf32, #tpu.memory_space<vmem>>, vector<1x128xf32>
    %20 = vector.broadcast %19 : vector<1x128xf32> to vector<256x128xf32>
    %21 = arith.addf %18, %20 : vector<256x128xf32>
    %c0_17 = arith.constant 0 : index
    %c0_18 = arith.constant 0 : index
    %22 = vector.load %arg8[%c0_17, %c0_18] : memref<256x128xf32, #tpu.memory_space<vmem>>, vector<256x128xf32>
    tpu.vector_store %arg8[%c0_17, %c0_18], %21 {strides = array<i32>} : memref<256x128xf32, #tpu.memory_space<vmem>>, vector<256x128xf32>,
    return
  }
  func.func @transform_0(%arg0: i32) -> (i32, i32) {
    %c0_i32 = arith.constant 0 : i32
    %c0_i32_0 = arith.constant 0 : i32
    return %arg0, %c0_i32 : i32, i32
  }
  func.func @transform_1(%arg0: i32) -> (i32, i32) {
    %c0_i32 = arith.constant 0 : i32
    %c0_i32_0 = arith.constant 0 : i32
    %c0_i32_1 = arith.constant 0 : i32
    return %c0_i32, %c0_i32_0 : i32, i32
  }
  func.func @transform_2(%arg0: i32) -> (i32, i32) {
    %c0_i32 = arith.constant 0 : i32
    %c0_i32_0 = arith.constant 0 : i32
    %c0_i32_1 = arith.constant 0 : i32
    return %c0_i32, %c0_i32_0 : i32, i32
  }
  func.func @transform_3(%arg0: i32) -> (i32, i32) {
    %c0_i32 = arith.constant 0 : i32
    %c0_i32_0 = arith.constant 0 : i32
    %c0_i32_1 = arith.constant 0 : i32
    return %c0_i32, %c0_i32_0 : i32, i32
  }
  func.func @transform_4(%arg0: i32) -> (i32, i32) {
    %c0_i32 = arith.constant 0 : i32
    %c0_i32_0 = arith.constant 0 : i32
    %c0_i32_1 = arith.constant 0 : i32
    return %c0_i32, %c0_i32_0 : i32, i32
  }
  func.func @transform_5(%arg0: i32) -> (i32, i32) {
    %c0_i32 = arith.constant 0 : i32
    %c0_i32_0 = arith.constant 0 : i32
    %c0_i32_1 = arith.constant 0 : i32
    return %c0_i32, %c0_i32_0 : i32, i32
  }
  func.func @transform_6(%arg0: i32) -> (i32, i32) {
    %c0_i32 = arith.constant 0 : i32
    %c0_i32_0 = arith.constant 0 : i32
    %c0_i32_1 = arith.constant 0 : i32
    return %c0_i32, %c0_i32_0 : i32, i32
  }
  func.func @transform_7(%arg0: i32) -> (i32, i32) {
    %c0_i32 = arith.constant 0 : i32
    %c0_i32_0 = arith.constant 0 : i32
    return %arg0, %c0_i32 : i32, i32
  }
}

</mosaic_0001>

<llo_original>
// kernel: tpu_custom_call.1
$region0: #{tpu_custom_call.1}
  #allocation0 [shape = 'u32[]', space=smem, size = 0x4, offset = 0x4, fixed_abs, tag = 'smem constant byte address 0x4 - core index']
  #allocation1 [shape = 'u32[72,128]{1,0:T(1,128)}', space=vmem, size = 0x9000, scoped, tag = 'internal scratch']
  %s0 = inlined_call_operand.hbm [shape: bf16[512,128], index: 0, kind: input, shape index: {}]
  %s1 = inlined_call_operand.hbm [shape: bf16[128,256], index: 1, kind: input, shape index: {}]
  %s2 = inlined_call_operand.hbm [shape: f32[1,256], index: 2, kind: input, shape index: {}]
  %s3 = inlined_call_operand.hbm [shape: bf16[256,256], index: 3, kind: input, shape index: {}]
  %s4 = inlined_call_operand.vmem [shape: f32[1,256], index: 4, kind: input, shape index: {}]
  %s5 = inlined_call_operand.hbm [shape: bf16[256,128], index: 5, kind: input, shape index: {}]
  %s6 = inlined_call_operand.vmem [shape: f32[1,128], index: 6, kind: input, shape index: {}]
  %s7 = inlined_call_operand.hbm [shape: f32[512,128], index: 7, kind: output, shape index: {}]
  %s8 = sld [smem:[#allocation0]]
  $region81: #{tpu_custom_call.1} parent=0
    _
  %s10 = ssub.s32 1, %s8
  %s11 = scalar_select 0, %s10, %s8
  $region1: #{tpu_custom_call.1} parent=0
    #allocation2 [shape = 'u8[131072]{0}', space=vmem, size = 0x20000, scoped, tag = 'input window, operand 0']
    #allocation3 [shape = 's32[2]{0}', space=sflag, size = 0x8, scoped, tag = 'scoped memory for tpu_custom_call.1']
    #allocation4 [shape = 's32[2]{0}', space=sflag, size = 0x8, scoped, tag = 'scoped memory for tpu_custom_call.1']
    #allocation5 [shape = 'u8[65536]{0}', space=vmem, size = 0x10000, scoped, tag = 'input window, operand 1, single buffered']
    #allocation6 [shape = 's32[1]{0}', space=sflag, size = 0x4, scoped, tag = 'scoped memory for tpu_custom_call.1']
    #allocation7 [shape = 'u8[1024]{0}', space=vmem, size = 0x400, scoped, tag = 'input window, operand 2, single buffered']
    #allocation8 [shape = 'u8[131072]{0}', space=vmem, size = 0x20000, scoped, tag = 'input window, operand 3, single buffered']
    #allocation9 [shape = 's32[1]{0}', space=sflag, size = 0x4, scoped, tag = 'scoped memory for tpu_custom_call.1']
    #allocation10 [shape = 'u8[65536]{0}', space=vmem, size = 0x10000, scoped, tag = 'input window, operand 5, single buffered']
    #allocation11 [shape = 'u8[262144]{0}', space=vmem, size = 0x40000, scoped, tag = 'output window, operand 0']
    %12 = vsyncpa [#allocation3], 0
    %s13 = scalar_lea.sflag [#allocation3], 1
    %14 = vsyncpa %s13, 0
    %15 = vsyncpa [#allocation6], 0
    %16 = vsyncpa [#allocation9], 0
    %17 = vsyncpa [#allocation4], 0
    %s18 = scalar_lea.sflag [#allocation4], 1
    %19 = vsyncpa %s18, 0
    loop: start=0, step=1, limit=4
    $region2: #{tpu_custom_call.1} parent=1 // loop_pre_header
      _
    $region3: #{tpu_custom_call.1} parent=1 // loop_header
      %s21 = sphi 0, %s25
      %p22 = scmp.ge.s32.totalorder %s21, 4
      %s31 = sphi 0, %s33
      %s34 = sphi 0, %s31
      %s35 = sphi 0, %s34
      %s51 = sphi 0, %s35
      %s55 = sphi 0, %s55
      %s57 = sphi 0, %s55
      %s58 = sphi 0, %s57
      %s72 = sphi 0, %s58
      %s76 = sphi 0, %s76
      %s78 = sphi 0, %s76
      %s79 = sphi 0, %s78
      %s93 = sphi 0, %s79
      %s97 = sphi 0, %s97
      %s99 = sphi 0, %s97
      %s100 = sphi 0, %s99
      %s114 = sphi 0, %s100
      %s118 = sphi 0, %s118
      %s120 = sphi 0, %s118
      %s121 = sphi 0, %s120
      %s135 = sphi 0, %s121
      %s139 = sphi 0, %s139
      %s141 = sphi 0, %s139
      %s142 = sphi 0, %s141
      %s156 = sphi 0, %s142
      %s160 = sphi 0, %s160
      %s162 = sphi 0, %s160
      %s163 = sphi 0, %s162
      %s177 = sphi 0, %s163
      %s183 = sphi 0, %s185
      %s186 = sphi 0, %s183
      %s187 = sphi 0, %s186
      %s203 = sphi 0, %s187
    $region4: #{tpu_custom_call.1} parent=1 // loop_header_branch
      %24 = sbr.rel (%p22) target = $region8
    $region5: #{tpu_custom_call.1} parent=1 // loop_body
      %s26 = ssub.s32 %s21, 1
      %s27 = ssub.s32 %s21, 2
      %s28 = sadd.s32 %s21, 1
      %s29 = ssub.s32 %s21, %s28
      %p30 = scmp.eq.s32.totalorder %s29, 0
      %s32 = sadd.s32 %s31, 1
      %s33 = scalar_select %p30, %s31, %s32
      %p36 = pneg %p30
      %p37 = scmp.eq.s32.totalorder %s21, 1
      %p38 = por %p36, %p37
      %p39 = scmp.ne.s32.totalorder %s31, %s34
      %p40 = scmp.eq.s32.totalorder %s21, 0
      %p41 = por %p39, %p40
      %p42 = scmp.ne.s32.totalorder %s31, %s34
      %p43 = scmp.eq.s32.totalorder %s26, 1
      %p44 = por %p42, %p43
      %p45 = scmp.ne.s32.totalorder %s34, %s35
      %p46 = scmp.eq.s32.totalorder %s26, 0
      %p47 = por %p45, %p46
      %p48 = scmp.ne.s32.totalorder %s34, %s35
      %p49 = scmp.eq.s32.totalorder %s27, 1
      %p50 = por %p48, %p49
      %p52 = scmp.ne.s32.totalorder %s35, %s51
      %p53 = scmp.eq.s32.totalorder %s27, 0
      %p54 = por %p52, %p53
      %s56 = sadd.s32 %s55, 1
      %p59 = scmp.eq.s32.totalorder %s21, 1
      %p60 = scmp.ne.s32.totalorder %s55, %s57
      %p61 = scmp.eq.s32.totalorder %s21, 0
      %p62 = por %p60, %p61
      %p63 = scmp.ne.s32.totalorder %s55, %s57
      %p64 = scmp.eq.s32.totalorder %s26, 1
      %p65 = por %p63, %p64
      %p66 = scmp.ne.s32.totalorder %s57, %s58
      %p67 = scmp.eq.s32.totalorder %s26, 0
      %p68 = por %p66, %p67
      %p69 = scmp.ne.s32.totalorder %s57, %s58
      %p70 = scmp.eq.s32.totalorder %s27, 1
      %p71 = por %p69, %p70
      %p73 = scmp.ne.s32.totalorder %s58, %s72
      %p74 = scmp.eq.s32.totalorder %s27, 0
      %p75 = por %p73, %p74
      %s77 = sadd.s32 %s76, 1
      %p80 = scmp.eq.s32.totalorder %s21, 1
      %p81 = scmp.ne.s32.totalorder %s76, %s78
      %p82 = scmp.eq.s32.totalorder %s21, 0
      %p83 = por %p81, %p82
      %p84 = scmp.ne.s32.totalorder %s76, %s78
      %p85 = scmp.eq.s32.totalorder %s26, 1
      %p86 = por %p84, %p85
      %p87 = scmp.ne.s32.totalorder %s78, %s79
      %p88 = scmp.eq.s32.totalorder %s26, 0
      %p89 = por %p87, %p88
      %p90 = scmp.ne.s32.totalorder %s78, %s79
      %p91 = scmp.eq.s32.totalorder %s27, 1
      %p92 = por %p90, %p91
      %p94 = scmp.ne.s32.totalorder %s79, %s93
      %p95 = scmp.eq.s32.totalorder %s27, 0
      %p96 = por %p94, %p95
      %s98 = sadd.s32 %s97, 1
      %p101 = scmp.eq.s32.totalorder %s21, 1
      %p102 = scmp.ne.s32.totalorder %s97, %s99
      %p103 = scmp.eq.s32.totalorder %s21, 0
      %p104 = por %p102, %p103
      %p105 = scmp.ne.s32.totalorder %s97, %s99
      %p106 = scmp.eq.s32.totalorder %s26, 1
      %p107 = por %p105, %p106
      %p108 = scmp.ne.s32.totalorder %s99, %s100
      %p109 = scmp.eq.s32.totalorder %s26, 0
      %p110 = por %p108, %p109
      %p111 = scmp.ne.s32.totalorder %s99, %s100
      %p112 = scmp.eq.s32.totalorder %s27, 1
      %p113 = por %p111, %p112
      %p115 = scmp.ne.s32.totalorder %s100, %s114
      %p116 = scmp.eq.s32.totalorder %s27, 0
      %p117 = por %p115, %p116
      %s119 = sadd.s32 %s118, 1
      %p122 = scmp.eq.s32.totalorder %s21, 1
      %p123 = scmp.ne.s32.totalorder %s118, %s120
      %p124 = scmp.eq.s32.totalorder %s21, 0
      %p125 = por %p123, %p124
      %p126 = scmp.ne.s32.totalorder %s118, %s120
      %p127 = scmp.eq.s32.totalorder %s26, 1
      %p128 = por %p126, %p127
      %p129 = scmp.ne.s32.totalorder %s120, %s121
      %p130 = scmp.eq.s32.totalorder %s26, 0
      %p131 = por %p129, %p130
      %p132 = scmp.ne.s32.totalorder %s120, %s121
      %p133 = scmp.eq.s32.totalorder %s27, 1
      %p134 = por %p132, %p133
      %p136 = scmp.ne.s32.totalorder %s121, %s135
      %p137 = scmp.eq.s32.totalorder %s27, 0
      %p138 = por %p136, %p137
      %s140 = sadd.s32 %s139, 1
      %p143 = scmp.eq.s32.totalorder %s21, 1
      %p144 = scmp.ne.s32.totalorder %s139, %s141
      %p145 = scmp.eq.s32.totalorder %s21, 0
      %p146 = por %p144, %p145
      %p147 = scmp.ne.s32.totalorder %s139, %s141
      %p148 = scmp.eq.s32.totalorder %s26, 1
      %p149 = por %p147, %p148
      %p150 = scmp.ne.s32.totalorder %s141, %s142
      %p151 = scmp.eq.s32.totalorder %s26, 0
      %p152 = por %p150, %p151
      %p153 = scmp.ne.s32.totalorder %s141, %s142
      %p154 = scmp.eq.s32.totalorder %s27, 1
      %p155 = por %p153, %p154
      %p157 = scmp.ne.s32.totalorder %s142, %s156
      %p158 = scmp.eq.s32.totalorder %s27, 0
      %p159 = por %p157, %p158
      %s161 = sadd.s32 %s160, 1
      %p164 = scmp.eq.s32.totalorder %s21, 1
      %p165 = scmp.ne.s32.totalorder %s160, %s162
      %p166 = scmp.eq.s32.totalorder %s21, 0
      %p167 = por %p165, %p166
      %p168 = scmp.ne.s32.totalorder %s160, %s162
      %p169 = scmp.eq.s32.totalorder %s26, 1
      %p170 = por %p168, %p169
      %p171 = scmp.ne.s32.totalorder %s162, %s163
      %p172 = scmp.eq.s32.totalorder %s26, 0
      %p173 = por %p171, %p172
      %p174 = scmp.ne.s32.totalorder %s162, %s163
      %p175 = scmp.eq.s32.totalorder %s27, 1
      %p176 = por %p174, %p175
      %p178 = scmp.ne.s32.totalorder %s163, %s177
      %p179 = scmp.eq.s32.totalorder %s27, 0
      %p180 = por %p178, %p179
      %s181 = ssub.s32 %s21, %s28
      %p182 = scmp.eq.s32.totalorder %s181, 0
      %s184 = sadd.s32 %s183, 1
      %s185 = scalar_select %p182, %s183, %s184
      %p188 = pneg %p182
      %p189 = scmp.eq.s32.totalorder %s21, 1
      %p190 = por %p188, %p189
      %p191 = scmp.ne.s32.totalorder %s183, %s186
      %p192 = scmp.eq.s32.totalorder %s21, 0
      %p193 = por %p191, %p192
      %p194 = scmp.ne.s32.totalorder %s183, %s186
      %p195 = scmp.eq.s32.totalorder %s26, 1
      %p196 = por %p194, %p195
      %p197 = scmp.ne.s32.totalorder %s186, %s187
      %p198 = scmp.eq.s32.totalorder %s26, 0
      %p199 = por %p197, %p198
      %p200 = scmp.ne.s32.totalorder %s186, %s187
      %p201 = scmp.eq.s32.totalorder %s27, 1
      %p202 = por %p200, %p201
      %p204 = scmp.ne.s32.totalorder %s187, %s203
      %p205 = scmp.eq.s32.totalorder %s27, 0
      %p206 = por %p204, %p205
      %p207 = scmp.le.s32.totalorder 1, %s21
      %p208 = scmp.lt.s32.totalorder %s21, 3
      %p209 = pnand %p207, %p208
      %p210 = pneg %p209
      // Predicated region
      $region9: #{tpu_custom_call.1} parent=5 // pred_check
        _
      $region10: #{tpu_custom_call.1} parent=5 // pred_check_branch
        %212 = sbr.rel (%p209) target = $region12
      $region11: #{tpu_custom_call.1} parent=5 // pred_region
        %s213 = ssub.s32 %s21, 1
        // Predicated region
        $region13: #{tpu_custom_call.1} parent=11 // pred_check
          %p214 = pneg %p68
        $region14: #{tpu_custom_call.1} parent=11 // pred_check_branch
          %216 = sbr.rel (%p214) target = $region16
        $region15: #{tpu_custom_call.1} parent=11 // pred_region
          %218 = vsyncadd [#allocation6], 0
          %s219 = sshll.u32 %s1, 4
          %s220 = int_to_ptr.hbm [resolvable:$true] %s219
          %s221 = sshll.u32 [#allocation5], 4
          %s222 = int_to_ptr.vmem [resolvable:$true] %s221
          %227 = dma.hbm_to_vmem [thread:$0]  %s220, 2048, %s222, [#allocation6], 128, 128, 8
        $region16: #{tpu_custom_call.1} parent=11 // pred_fallthru
          _
        // Predicated region
        $region17: #{tpu_custom_call.1} parent=11 // pred_check
          %p228 = pneg %p89
        $region18: #{tpu_custom_call.1} parent=11 // pred_check_branch
          %230 = sbr.rel (%p228) target = $region20
        $region19: #{tpu_custom_call.1} parent=11 // pred_region
          %232 = vsyncadd [#allocation6], 0
          %s234 = sshll.u32 %s2, 4
          %s235 = int_to_ptr.hbm [resolvable:$true] %s234
          %s236 = sshll.u32 [#allocation7], 4
          %s237 = int_to_ptr.vmem [resolvable:$true] %s236
          %239 = dma.hbm_to_vmem [thread:$0]  %s235, 32, %s237, [#allocation6]
        $region20: #{tpu_custom_call.1} parent=11 // pred_fallthru
          _
        // Predicated region
        $region21: #{tpu_custom_call.1} parent=11 // pred_check
          %p240 = pneg %p110
        $region22: #{tpu_custom_call.1} parent=11 // pred_check_branch
          %242 = sbr.rel (%p240) target = $region24
        $region23: #{tpu_custom_call.1} parent=11 // pred_region
          %244 = vsyncadd [#allocation9], 0
          %s245 = sshll.u32 %s3, 4
          %s246 = int_to_ptr.hbm [resolvable:$true] %s245
          %s247 = sshll.u32 [#allocation8], 4
          %s248 = int_to_ptr.vmem [resolvable:$true] %s247
          %253 = dma.hbm_to_vmem [thread:$0]  %s246, 4096, %s248, [#allocation9], 128, 128, 8
        $region24: #{tpu_custom_call.1} parent=11 // pred_fallthru
          _
        // Predicated region
        $region25: #{tpu_custom_call.1} parent=11 // pred_check
          %p254 = pneg %p131
        $region26: #{tpu_custom_call.1} parent=11 // pred_check_branch
          %256 = sbr.rel (%p254) target = $region28
        $region27: #{tpu_custom_call.1} parent=11 // pred_region
          _
        $region28: #{tpu_custom_call.1} parent=11 // pred_fallthru
          _
        // Predicated region
        $region29: #{tpu_custom_call.1} parent=11 // pred_check
          %p257 = pneg %p152
        $region30: #{tpu_custom_call.1} parent=11 // pred_check_branch
          %259 = sbr.rel (%p257) target = $region32
        $region31: #{tpu_custom_call.1} parent=11 // pred_region
          %261 = vsyncadd [#allocation9], 0
          %s262 = sshll.u32 %s5, 4
          %s263 = int_to_ptr.hbm [resolvable:$true] %s262
          %s264 = sshll.u32 [#allocation10], 4
          %s265 = int_to_ptr.vmem [resolvable:$true] %s264
          %270 = dma.hbm_to_vmem [thread:$0]  %s263, 2048, %s265, [#allocation9], 64, 64, 4
        $region32: #{tpu_custom_call.1} parent=11 // pred_fallthru
          _
        // Predicated region
        $region33: #{tpu_custom_call.1} parent=11 // pred_check
          %p271 = pneg %p173
        $region34: #{tpu_custom_call.1} parent=11 // pred_check_branch
          %273 = sbr.rel (%p271) target = $region36
        $region35: #{tpu_custom_call.1} parent=11 // pred_region
          _
        $region36: #{tpu_custom_call.1} parent=11 // pred_fallthru
          _
      $region12: #{tpu_custom_call.1} parent=5 // pred_fallthru
        _
      %p274 = scmp.lt.s32.totalorder %s21, 2
      // Predicated region
      $region37: #{tpu_custom_call.1} parent=5 // pred_check
        %p275 = pneg %p274
      $region38: #{tpu_custom_call.1} parent=5 // pred_check_branch
        %277 = sbr.rel (%p275) target = $region40
      $region39: #{tpu_custom_call.1} parent=5 // pred_region
        // Predicated region
        $region41: #{tpu_custom_call.1} parent=39 // pred_check
          %p278 = pneg %p41
        $region42: #{tpu_custom_call.1} parent=39 // pred_check_branch
          %280 = sbr.rel (%p278) target = $region44
        $region43: #{tpu_custom_call.1} parent=39 // pred_region
          %s281 = sand.u32 %s31, 1
          %s282 = scalar_lea.sflag [#allocation3], %s281
          %s283 = sand.u32 %s31, 1
          %s284 = smul.addr %s283, 128
          %s285 = scalar_lea.vmem [#allocation2], %s284
          %s286 = smul.u32 32, %s21
          %288 = vsyncadd %s282, 0
          %s289 = smul.addr %s286, 4
          %s290 = scalar_lea.hbm %s0, %s289
          %s291 = sshll.u32 %s290, 4
          %s292 = int_to_ptr.hbm [resolvable:$true] %s291
          %s293 = sshll.u32 %s285, 4
          %s294 = int_to_ptr.vmem [resolvable:$true] %s293
          %299 = dma.hbm_to_vmem [thread:$0]  %s292, 2048, %s294, %s282, 64, 64, 4
        $region44: #{tpu_custom_call.1} parent=39 // pred_fallthru
          _
      $region40: #{tpu_custom_call.1} parent=5 // pred_fallthru
        _
      %p300 = scmp.le.s32.totalorder 1, %s21
      %p301 = scmp.lt.s32.totalorder %s21, 3
      %p302 = pnand %p300, %p301
      %p303 = pneg %p302
      // Predicated region
      $region45: #{tpu_custom_call.1} parent=5 // pred_check
        _
      $region46: #{tpu_custom_call.1} parent=5 // pred_check_branch
        %305 = sbr.rel (%p302) target = $region48
      $region47: #{tpu_custom_call.1} parent=5 // pred_region
        %s306 = ssub.s32 %s21, 1
        %s307 = sand.u32 %s34, 1
        %s308 = scalar_lea.sflag [#allocation3], %s307
        %s309 = sand.u32 %s34, 1
        %s310 = smul.addr %s309, 128
        %s311 = scalar_lea.vmem [#allocation2], %s310
        // Predicated region
        $region49: #{tpu_custom_call.1} parent=47 // pred_check
          %p312 = pneg %p47
        $region50: #{tpu_custom_call.1} parent=47 // pred_check_branch
          %314 = sbr.rel (%p312) target = $region52
        $region51: #{tpu_custom_call.1} parent=47 // pred_region
          %316 = dma.done %s308, 2048
        $region52: #{tpu_custom_call.1} parent=47 // pred_fallthru
          _
        // Predicated region
        $region53: #{tpu_custom_call.1} parent=47 // pred_check
          %p317 = pneg %p68
        $region54: #{tpu_custom_call.1} parent=47 // pred_check_branch
          %319 = sbr.rel (%p317) target = $region56
        $region55: #{tpu_custom_call.1} parent=47 // pred_region
          %321 = dma.done [#allocation6], 2048
        $region56: #{tpu_custom_call.1} parent=47 // pred_fallthru
          _
        // Predicated region
        $region57: #{tpu_custom_call.1} parent=47 // pred_check
          %p322 = pneg %p89
        $region58: #{tpu_custom_call.1} parent=47 // pred_check_branch
          %324 = sbr.rel (%p322) target = $region60
        $region59: #{tpu_custom_call.1} parent=47 // pred_region
          %326 = dma.done [#allocation6], 32
        $region60: #{tpu_custom_call.1} parent=47 // pred_fallthru
          _
        // Predicated region
        $region61: #{tpu_custom_call.1} parent=47 // pred_check
          %p327 = pneg %p110
        $region62: #{tpu_custom_call.1} parent=47 // pred_check_branch
          %329 = sbr.rel (%p327) target = $region64
        $region63: #{tpu_custom_call.1} parent=47 // pred_region
          %331 = dma.done [#allocation9], 4096
        $region64: #{tpu_custom_call.1} parent=47 // pred_fallthru
          _
        // Predicated region
        $region65: #{tpu_custom_call.1} parent=47 // pred_check
          %p332 = pneg %p152
        $region66: #{tpu_custom_call.1} parent=47 // pred_check_branch
          %334 = sbr.rel (%p332) target = $region68
        $region67: #{tpu_custom_call.1} parent=47 // pred_region
          %336 = dma.done [#allocation9], 2048
        $region68: #{tpu_custom_call.1} parent=47 // pred_fallthru
          _
        %s337 = sand.u32 %s34, 1
        %s338 = scalar_lea.sflag [#allocation3], %s337
        %s339 = sand.u32 %s34, 1
        %s340 = smul.addr %s339, 128
        %s341 = scalar_lea.vmem [#allocation2], %s340
        %p342 = pneg %p47
        %p343 = pneg %p44
        %p344 = pneg %p68
        %p345 = pneg %p65
        %p346 = pneg %p89
        %p347 = pneg %p86
        %p348 = pneg %p110
        %p349 = pneg %p107
        %p350 = pneg %p131
        %p351 = pneg %p128
        %p352 = pneg %p152
        %p353 = pneg %p149
        %p354 = pneg %p173
        %p355 = pneg %p170
        %p356 = pneg %p199
        %p357 = pneg %p196
        %s358 = sand.u32 %s186, 1
        %s359 = scalar_lea.sflag [#allocation4], %s358
        %s360 = sand.u32 %s186, 1
        %s361 = smul.addr %s360, 256
        %s362 = scalar_lea.vmem [#allocation11], %s361
        %s363 = smul.u32 32, %s26
        %s364 = smul.u32 32, %s26
        %v365 = vld [vmem:[%s311] sm:$0xf]
        %v366 = vld [vmem:[%s311 + $0x4] sm:$0xf]
        %v367 = vld [vmem:[%s311 + $0x8] sm:$0xf]
        %v368 = vld [vmem:[%s311 + $0xc] sm:$0xf]
        %v369 = vld [vmem:[%s311 + $0x10] sm:$0xf]
        %v370 = vld [vmem:[%s311 + $0x14] sm:$0xf]
        %v371 = vld [vmem:[%s311 + $0x18] sm:$0xf]
        %v372 = vld [vmem:[%s311 + $0x1c] sm:$0xf]
        %v373 = vld [vmem:[%s311 + $0x20] sm:$0xf]
        %v374 = vld [vmem:[%s311 + $0x24] sm:$0xf]
        %v375 = vld [vmem:[%s311 + $0x28] sm:$0xf]
        %v376 = vld [vmem:[%s311 + $0x2c] sm:$0xf]
        %v377 = vld [vmem:[%s311 + $0x30] sm:$0xf]
        %v378 = vld [vmem:[%s311 + $0x34] sm:$0xf]
        %v379 = vld [vmem:[%s311 + $0x38] sm:$0xf]
        %v380 = vld [vmem:[%s311 + $0x3c] sm:$0xf]
        %v381 = vld [vmem:[%s311 + $0x40] sm:$0xf]
        %v382 = vld [vmem:[%s311 + $0x44] sm:$0xf]
        %v383 = vld [vmem:[%s311 + $0x48] sm:$0xf]
        %v384 = vld [vmem:[%s311 + $0x4c] sm:$0xf]
        %v385 = vld [vmem:[%s311 + $0x50] sm:$0xf]
        %v386 = vld [vmem:[%s311 + $0x54] sm:$0xf]
        %v387 = vld [vmem:[%s311 + $0x58] sm:$0xf]
        %v388 = vld [vmem:[%s311 + $0x5c] sm:$0xf]
        %v389 = vld [vmem:[%s311 + $0x60] sm:$0xf]
        %v390 = vld [vmem:[%s311 + $0x64] sm:$0xf]
        %v391 = vld [vmem:[%s311 + $0x68] sm:$0xf]
        %v392 = vld [vmem:[%s311 + $0x6c] sm:$0xf]
        %v393 = vld [vmem:[%s311 + $0x70] sm:$0xf]
        %v394 = vld [vmem:[%s311 + $0x74] sm:$0xf]
        %v395 = vld [vmem:[%s311 + $0x78] sm:$0xf]
        %v396 = vld [vmem:[%s311 + $0x7c] sm:$0xf]
        %v397 = vld [vmem:[#allocation5] sm:$0xff]
        %v398 = vld [vmem:[#allocation5 + $0x8] sm:$0xff]
        %v399 = vld [vmem:[#allocation5 + $0x10] sm:$0xff]
        %v400 = vld [vmem:[#allocation5 + $0x18] sm:$0xff]
        %v401 = vld [vmem:[#allocation5 + $0x20] sm:$0xff]
        %v402 = vld [vmem:[#allocation5 + $0x28] sm:$0xff]
        %v403 = vld [vmem:[#allocation5 + $0x30] sm:$0xff]
        %v404 = vld [vmem:[#allocation5 + $0x38] sm:$0xff]
        %v405 = vld [vmem:[#allocation5 + $0x40] sm:$0xff]
        %v406 = vld [vmem:[#allocation5 + $0x48] sm:$0xff]
        %v407 = vld [vmem:[#allocation5 + $0x50] sm:$0xff]
        %v408 = vld [vmem:[#allocation5 + $0x58] sm:$0xff]
        %v409 = vld [vmem:[#allocation5 + $0x60] sm:$0xff]
        %v410 = vld [vmem:[#allocation5 + $0x68] sm:$0xff]
        %v411 = vld [vmem:[#allocation5 + $0x70] sm:$0xff]
        %v412 = vld [vmem:[#allocation5 + $0x78] sm:$0xff]
        %v413 = vld [vmem:[#allocation7] sm:$0x3]
        %v415 = vperm.slane %v413, 0
        %v416 = vperm.slane %v413, 1
        %v451 = vunpack.c.l.b16 %v365
        %v452 = vunpack.c.l.b16 %v366
        %v453 = vunpack.c.l.b16 %v367
        %v454 = vunpack.c.l.b16 %v368
        %v455 = vunpack.c.l.b16 %v369
        %v456 = vunpack.c.l.b16 %v370
        %v457 = vunpack.c.l.b16 %v371
        %v458 = vunpack.c.l.b16 %v372
        %v459 = vunpack.c.l.b16 %v373
        %v460 = vunpack.c.l.b16 %v374
        %v461 = vunpack.c.l.b16 %v375
        %v462 = vunpack.c.l.b16 %v376
        %v463 = vunpack.c.l.b16 %v377
        %v464 = vunpack.c.l.b16 %v378
        %v465 = vunpack.c.l.b16 %v379
        %v466 = vunpack.c.l.b16 %v380
        %v467 = vunpack.c.l.b16 %v381
        %v468 = vunpack.c.l.b16 %v382
        %v469 = vunpack.c.l.b16 %v383
        %v470 = vunpack.c.l.b16 %v384
        %v471 = vunpack.c.l.b16 %v385
        %v472 = vunpack.c.l.b16 %v386
        %v473 = vunpack.c.l.b16 %v387
        %v474 = vunpack.c.l.b16 %v388
        %v475 = vunpack.c.l.b16 %v389
        %v476 = vunpack.c.l.b16 %v390
        %v477 = vunpack.c.l.b16 %v391
        %v478 = vunpack.c.l.b16 %v392
        %v479 = vunpack.c.l.b16 %v393
        %v480 = vunpack.c.l.b16 %v394
        %v481 = vunpack.c.l.b16 %v395
        %v482 = vunpack.c.l.b16 %v396
        %v483 = vpack.c.b16 %v452, %v451
        %v484 = vpack.c.b16 %v454, %v453
        %v485 = vpack.c.b16 %v456, %v455
        %v486 = vpack.c.b16 %v458, %v457
        %v487 = vpack.c.b16 %v460, %v459
        %v488 = vpack.c.b16 %v462, %v461
        %v489 = vpack.c.b16 %v464, %v463
        %v490 = vpack.c.b16 %v466, %v465
        %v491 = vpack.c.b16 %v468, %v467
        %v492 = vpack.c.b16 %v470, %v469
        %v493 = vpack.c.b16 %v472, %v471
        %v494 = vpack.c.b16 %v474, %v473
        %v495 = vpack.c.b16 %v476, %v475
        %v496 = vpack.c.b16 %v478, %v477
        %v497 = vpack.c.b16 %v480, %v479
        %v498 = vpack.c.b16 %v482, %v481
        %v531 = vunpack.c.l.b16 %v397
        %v532 = vunpack.c.h.b16 %v397
        %v533 = vunpack.c.l.b16 %v398
        %v534 = vunpack.c.h.b16 %v398
        %v535 = vunpack.c.l.b16 %v399
        %v536 = vunpack.c.h.b16 %v399
        %v537 = vunpack.c.l.b16 %v400
        %v538 = vunpack.c.h.b16 %v400
        %v539 = vunpack.c.l.b16 %v401
        %v540 = vunpack.c.h.b16 %v401
        %v541 = vunpack.c.l.b16 %v402
        %v542 = vunpack.c.h.b16 %v402
        %v543 = vunpack.c.l.b16 %v403
        %v544 = vunpack.c.h.b16 %v403
        %v545 = vunpack.c.l.b16 %v404
        %v546 = vunpack.c.h.b16 %v404
        %v547 = vunpack.c.l.b16 %v405
        %v548 = vunpack.c.h.b16 %v405
        %v549 = vunpack.c.l.b16 %v406
        %v550 = vunpack.c.h.b16 %v406
        %v551 = vunpack.c.l.b16 %v407
        %v552 = vunpack.c.h.b16 %v407
        %v553 = vunpack.c.l.b16 %v408
        %v554 = vunpack.c.h.b16 %v408
        %v555 = vunpack.c.l.b16 %v409
        %v556 = vunpack.c.h.b16 %v409
        %v557 = vunpack.c.l.b16 %v410
        %v558 = vunpack.c.h.b16 %v410
        %v559 = vunpack.c.l.b16 %v411
        %v560 = vunpack.c.h.b16 %v411
        %v561 = vunpack.c.l.b16 %v412
        %v562 = vunpack.c.h.b16 %v412
        %v563 = vpack.c.b16 %v533, %v531
        %v564 = vpack.c.b16 %v534, %v532
        %v565 = vpack.c.b16 %v537, %v535
        %v566 = vpack.c.b16 %v538, %v536
        %v567 = vpack.c.b16 %v541, %v539
        %v568 = vpack.c.b16 %v542, %v540
        %v569 = vpack.c.b16 %v545, %v543
        %v570 = vpack.c.b16 %v546, %v544
        %v571 = vpack.c.b16 %v549, %v547
        %v572 = vpack.c.b16 %v550, %v548
        %v573 = vpack.c.b16 %v553, %v551
        %v574 = vpack.c.b16 %v554, %v552
        %v575 = vpack.c.b16 %v557, %v555
        %v576 = vpack.c.b16 %v558, %v556
        %v577 = vpack.c.b16 %v561, %v559
        %v578 = vpack.c.b16 %v562, %v560
        %595 = vmatpush.bf16.msra.mxu0 %v577
        %596 = vmatpush.bf16.msra.mxu0 %v575
        %597 = vmatpush.bf16.msra.mxu0 %v573
        %598 = vmatpush.bf16.msra.mxu0 %v571
        %599 = vmatpush.bf16.msra.mxu0 %v569
        %600 = vmatpush.bf16.msra.mxu0 %v567
        %601 = vmatpush.bf16.msra.mxu0 %v565
        %602 = vmatpush.bf16.msra.mxu0 %v563
        %603 = vmatmul.bf16.gmra.mxu0 %v483
        %v604 = vpop.f32.mrf.mxu0
        %v605 = vadd.f32 %v415, %v604
        %v606 = vpop.f32.mrf.mxu0
        %v607 = vadd.f32 %v415, %v606
        %608 = vmatmul.bf16.gmra.mxu0 %v484
        %v609 = vpop.f32.mrf.mxu0
        %v610 = vadd.f32 %v415, %v609
        %v611 = vpop.f32.mrf.mxu0
        %v612 = vadd.f32 %v415, %v611
        %613 = vmatmul.bf16.gmra.mxu0 %v485
        %v614 = vpop.f32.mrf.mxu0
        %v615 = vadd.f32 %v415, %v614
        %v616 = vpop.f32.mrf.mxu0
        %v617 = vadd.f32 %v415, %v616
        %618 = vmatmul.bf16.gmra.mxu0 %v486
        %v619 = vpop.f32.mrf.mxu0
        %v620 = vadd.f32 %v415, %v619
        %v621 = vpop.f32.mrf.mxu0
        %v622 = vadd.f32 %v415, %v621
        %623 = vmatmul.bf16.gmra.mxu0 %v487
        %v624 = vpop.f32.mrf.mxu0
        %v625 = vadd.f32 %v415, %v624
        %v626 = vpop.f32.mrf.mxu0
        %v627 = vadd.f32 %v415, %v626
        %628 = vmatmul.bf16.gmra.mxu0 %v488
        %v629 = vpop.f32.mrf.mxu0
        %v630 = vadd.f32 %v415, %v629
        %v631 = vpop.f32.mrf.mxu0
        %v632 = vadd.f32 %v415, %v631
        %633 = vmatmul.bf16.gmra.mxu0 %v489
        %v634 = vpop.f32.mrf.mxu0
        %v635 = vadd.f32 %v415, %v634
        %v636 = vpop.f32.mrf.mxu0
        %v637 = vadd.f32 %v415, %v636
        %638 = vmatmul.bf16.gmra.mxu0 %v490
        %v639 = vpop.f32.mrf.mxu0
        %v640 = vadd.f32 %v415, %v639
        %v641 = vpop.f32.mrf.mxu0
        %v642 = vadd.f32 %v415, %v641
        %643 = vmatmul.bf16.gmra.mxu0 %v491
        %v644 = vpop.f32.mrf.mxu0
        %v645 = vadd.f32 %v415, %v644
        %v646 = vpop.f32.mrf.mxu0
        %v647 = vadd.f32 %v415, %v646
        %648 = vmatmul.bf16.gmra.mxu0 %v492
        %v649 = vpop.f32.mrf.mxu0
        %v650 = vadd.f32 %v415, %v649
        %v651 = vpop.f32.mrf.mxu0
        %v652 = vadd.f32 %v415, %v651
        %653 = vmatmul.bf16.gmra.mxu0 %v493
        %v654 = vpop.f32.mrf.mxu0
        %v655 = vadd.f32 %v415, %v654
        %v656 = vpop.f32.mrf.mxu0
        %v657 = vadd.f32 %v415, %v656
        %658 = vmatmul.bf16.gmra.mxu0 %v494
        %v659 = vpop.f32.mrf.mxu0
        %v660 = vadd.f32 %v415, %v659
        %v661 = vpop.f32.mrf.mxu0
        %v662 = vadd.f32 %v415, %v661
        %663 = vmatmul.bf16.gmra.mxu0 %v495
        %v664 = vpop.f32.mrf.mxu0
        %v665 = vadd.f32 %v415, %v664
        %v666 = vpop.f32.mrf.mxu0
        %v667 = vadd.f32 %v415, %v666
        %668 = vmatmul.bf16.gmra.mxu0 %v496
        %v669 = vpop.f32.mrf.mxu0
        %v670 = vadd.f32 %v415, %v669
        %v671 = vpop.f32.mrf.mxu0
        %v672 = vadd.f32 %v415, %v671
        %673 = vmatmul.bf16.gmra.mxu0 %v497
        %v674 = vpop.f32.mrf.mxu0
        %v675 = vadd.f32 %v415, %v674
        %v676 = vpop.f32.mrf.mxu0
        %v677 = vadd.f32 %v415, %v676
        %678 = vmatmul.bf16.gmra.mxu0 %v498
        %v679 = vpop.f32.mrf.mxu0
        %v680 = vadd.f32 %v415, %v679
        %v681 = vpop.f32.mrf.mxu0
        %v682 = vadd.f32 %v415, %v681
        %683 = vdwg.mxu0
        %684 = vmatpush.bf16.msra.mxu0 %v578
        %685 = vmatpush.bf16.msra.mxu0 %v576
        %686 = vmatpush.bf16.msra.mxu0 %v574
        %687 = vmatpush.bf16.msra.mxu0 %v572
        %688 = vmatpush.bf16.msra.mxu0 %v570
        %689 = vmatpush.bf16.msra.mxu0 %v568
        %690 = vmatpush.bf16.msra.mxu0 %v566
        %691 = vmatpush.bf16.msra.mxu0 %v564
        %692 = vmatmul.bf16.gmra.mxu0 %v483
        %v693 = vpop.f32.mrf.mxu0
        %v694 = vadd.f32 %v416, %v693
        %v695 = vpop.f32.mrf.mxu0
        %v696 = vadd.f32 %v416, %v695
        %697 = vmatmul.bf16.gmra.mxu0 %v484
        %v698 = vpop.f32.mrf.mxu0
        %v699 = vadd.f32 %v416, %v698
        %v700 = vpop.f32.mrf.mxu0
        %v701 = vadd.f32 %v416, %v700
        %702 = vmatmul.bf16.gmra.mxu0 %v485
        %v703 = vpop.f32.mrf.mxu0
        %v704 = vadd.f32 %v416, %v703
        %v705 = vpop.f32.mrf.mxu0
        %v706 = vadd.f32 %v416, %v705
        %707 = vmatmul.bf16.gmra.mxu0 %v486
        %v708 = vpop.f32.mrf.mxu0
        %v709 = vadd.f32 %v416, %v708
        %v710 = vpop.f32.mrf.mxu0
        %v711 = vadd.f32 %v416, %v710
        %712 = vmatmul.bf16.gmra.mxu0 %v487
        %v713 = vpop.f32.mrf.mxu0
        %v714 = vadd.f32 %v416, %v713
        %v715 = vpop.f32.mrf.mxu0
        %v716 = vadd.f32 %v416, %v715
        %717 = vmatmul.bf16.gmra.mxu0 %v488
        %v718 = vpop.f32.mrf.mxu0
        %v719 = vadd.f32 %v416, %v718
        %v720 = vpop.f32.mrf.mxu0
        %v721 = vadd.f32 %v416, %v720
        %722 = vmatmul.bf16.gmra.mxu0 %v489
        %v723 = vpop.f32.mrf.mxu0
        %v724 = vadd.f32 %v416, %v723
        %v725 = vpop.f32.mrf.mxu0
        %v726 = vadd.f32 %v416, %v725
        %727 = vmatmul.bf16.gmra.mxu0 %v490
        %v728 = vpop.f32.mrf.mxu0
        %v729 = vadd.f32 %v416, %v728
        %v730 = vpop.f32.mrf.mxu0
        %v731 = vadd.f32 %v416, %v730
        %732 = vmatmul.bf16.gmra.mxu0 %v491
        %v733 = vpop.f32.mrf.mxu0
        %v734 = vadd.f32 %v416, %v733
        %v735 = vpop.f32.mrf.mxu0
        %v736 = vadd.f32 %v416, %v735
        %737 = vmatmul.bf16.gmra.mxu0 %v492
        %v738 = vpop.f32.mrf.mxu0
        %v739 = vadd.f32 %v416, %v738
        %v740 = vpop.f32.mrf.mxu0
        %v741 = vadd.f32 %v416, %v740
        %742 = vmatmul.bf16.gmra.mxu0 %v493
        %v743 = vpop.f32.mrf.mxu0
        %v744 = vadd.f32 %v416, %v743
        %v745 = vpop.f32.mrf.mxu0
        %v746 = vadd.f32 %v416, %v745
        %747 = vmatmul.bf16.gmra.mxu0 %v494
        %v748 = vpop.f32.mrf.mxu0
        %v749 = vadd.f32 %v416, %v748
        %v750 = vpop.f32.mrf.mxu0
        %v751 = vadd.f32 %v416, %v750
        %752 = vmatmul.bf16.gmra.mxu0 %v495
        %v753 = vpop.f32.mrf.mxu0
        %v754 = vadd.f32 %v416, %v753
        %v755 = vpop.f32.mrf.mxu0
        %v756 = vadd.f32 %v416, %v755
        %757 = vmatmul.bf16.gmra.mxu0 %v496
        %v758 = vpop.f32.mrf.mxu0
        %v759 = vadd.f32 %v416, %v758
        %v760 = vpop.f32.mrf.mxu0
        %v761 = vadd.f32 %v416, %v760
        %762 = vmatmul.bf16.gmra.mxu0 %v497
        %v763 = vpop.f32.mrf.mxu0
        %v764 = vadd.f32 %v416, %v763
        %v765 = vpop.f32.mrf.mxu0
        %v766 = vadd.f32 %v416, %v765
        %767 = vmatmul.bf16.gmra.mxu0 %v498
        %v768 = vpop.f32.mrf.mxu0
        %v769 = vadd.f32 %v416, %v768
        %v770 = vpop.f32.mrf.mxu0
        %v771 = vadd.f32 %v416, %v770
        %772 = vdwg.mxu0
        %v773 = vmax.f32 %v605, 0.0
        %v774 = vmax.f32 %v694, 0.0
        %v775 = vmax.f32 %v607, 0.0
        %v776 = vmax.f32 %v696, 0.0
        %v777 = vmax.f32 %v610, 0.0
        %v778 = vmax.f32 %v699, 0.0
        %v779 = vmax.f32 %v612, 0.0
        %v780 = vmax.f32 %v701, 0.0
        %v781 = vmax.f32 %v615, 0.0
        %v782 = vmax.f32 %v704, 0.0
        %v783 = vmax.f32 %v617, 0.0
        %v784 = vmax.f32 %v706, 0.0
        %v785 = vmax.f32 %v620, 0.0
        %v786 = vmax.f32 %v709, 0.0
        %v787 = vmax.f32 %v622, 0.0
        %v788 = vmax.f32 %v711, 0.0
        %v789 = vmax.f32 %v625, 0.0
        %v790 = vmax.f32 %v714, 0.0
        %v791 = vmax.f32 %v627, 0.0
        %v792 = vmax.f32 %v716, 0.0
        %v793 = vmax.f32 %v630, 0.0
        %v794 = vmax.f32 %v719, 0.0
        %v795 = vmax.f32 %v632, 0.0
        %v796 = vmax.f32 %v721, 0.0
        %v797 = vmax.f32 %v635, 0.0
        %v798 = vmax.f32 %v724, 0.0
        %v799 = vmax.f32 %v637, 0.0
        %v800 = vmax.f32 %v726, 0.0
        %v801 = vmax.f32 %v640, 0.0
        %v802 = vmax.f32 %v729, 0.0
        %v803 = vmax.f32 %v642, 0.0
        %v804 = vmax.f32 %v731, 0.0
        %v805 = vmax.f32 %v645, 0.0
        %v806 = vmax.f32 %v734, 0.0
        %v807 = vmax.f32 %v647, 0.0
        %v808 = vmax.f32 %v736, 0.0
        %v809 = vmax.f32 %v650, 0.0
        %v810 = vmax.f32 %v739, 0.0
        %v811 = vmax.f32 %v652, 0.0
        %v812 = vmax.f32 %v741, 0.0
        %v813 = vmax.f32 %v655, 0.0
        %v814 = vmax.f32 %v744, 0.0
        %v815 = vmax.f32 %v657, 0.0
        %v816 = vmax.f32 %v746, 0.0
        %v817 = vmax.f32 %v660, 0.0
        %v818 = vmax.f32 %v749, 0.0
        %v819 = vmax.f32 %v662, 0.0
        %v820 = vmax.f32 %v751, 0.0
        %v821 = vmax.f32 %v665, 0.0
        %v822 = vmax.f32 %v754, 0.0
        %v823 = vmax.f32 %v667, 0.0
        %v824 = vmax.f32 %v756, 0.0
        %v825 = vmax.f32 %v670, 0.0
        %v826 = vmax.f32 %v759, 0.0
        %v827 = vmax.f32 %v672, 0.0
        %v828 = vmax.f32 %v761, 0.0
        %v829 = vmax.f32 %v675, 0.0
        %v830 = vmax.f32 %v764, 0.0
        %v831 = vmax.f32 %v677, 0.0
        %v832 = vmax.f32 %v766, 0.0
        %v833 = vmax.f32 %v680, 0.0
        %v834 = vmax.f32 %v769, 0.0
        %v835 = vmax.f32 %v682, 0.0
        %v836 = vmax.f32 %v771, 0.0
        %v837 = vpack.c.bf16 %v775, %v773
        %v838 = vpack.c.bf16 %v776, %v774
        %v839 = vpack.c.bf16 %v779, %v777
        %v840 = vpack.c.bf16 %v780, %v778
        %v841 = vpack.c.bf16 %v783, %v781
        %v842 = vpack.c.bf16 %v784, %v782
        %v843 = vpack.c.bf16 %v787, %v785
        %v844 = vpack.c.bf16 %v788, %v786
        %v845 = vpack.c.bf16 %v791, %v789
        %v846 = vpack.c.bf16 %v792, %v790
        %v847 = vpack.c.bf16 %v795, %v793
        %v848 = vpack.c.bf16 %v796, %v794
        %v849 = vpack.c.bf16 %v799, %v797
        %v850 = vpack.c.bf16 %v800, %v798
        %v851 = vpack.c.bf16 %v803, %v801
        %v852 = vpack.c.bf16 %v804, %v802
        %v853 = vpack.c.bf16 %v807, %v805
        %v854 = vpack.c.bf16 %v808, %v806
        %v855 = vpack.c.bf16 %v811, %v809
        %v856 = vpack.c.bf16 %v812, %v810
        %v857 = vpack.c.bf16 %v815, %v813
        %v858 = vpack.c.bf16 %v816, %v814
        %v859 = vpack.c.bf16 %v819, %v817
        %v860 = vpack.c.bf16 %v820, %v818
        %v861 = vpack.c.bf16 %v823, %v821
        %v862 = vpack.c.bf16 %v824, %v822
        %v863 = vpack.c.bf16 %v827, %v825
        %v864 = vpack.c.bf16 %v828, %v826
        %v865 = vpack.c.bf16 %v831, %v829
        %v866 = vpack.c.bf16 %v832, %v830
        %v867 = vpack.c.bf16 %v835, %v833
        %v868 = vpack.c.bf16 %v836, %v834
        %v869 = vld [vmem:[#allocation8] sm:$0xff]
        %v870 = vld [vmem:[#allocation8 + $0x8] sm:$0xff]
        %v871 = vld [vmem:[#allocation8 + $0x10] sm:$0xff]
        %v872 = vld [vmem:[#allocation8 + $0x18] sm:$0xff]
        %v873 = vld [vmem:[#allocation8 + $0x20] sm:$0xff]
        %v874 = vld [vmem:[#allocation8 + $0x28] sm:$0xff]
        %v875 = vld [vmem:[#allocation8 + $0x30] sm:$0xff]
        %v876 = vld [vmem:[#allocation8 + $0x38] sm:$0xff]
        %v877 = vld [vmem:[#allocation8 + $0x40] sm:$0xff]
        %v878 = vld [vmem:[#allocation8 + $0x48] sm:$0xff]
        %v879 = vld [vmem:[#allocation8 + $0x50] sm:$0xff]
        %v880 = vld [vmem:[#allocation8 + $0x58] sm:$0xff]
        %v881 = vld [vmem:[#allocation8 + $0x60] sm:$0xff]
        %v882 = vld [vmem:[#allocation8 + $0x68] sm:$0xff]
        %v883 = vld [vmem:[#allocation8 + $0x70] sm:$0xff]
        %v884 = vld [vmem:[#allocation8 + $0x78] sm:$0xff]
        %v885 = vld [vmem:[#allocation8 + $0x80] sm:$0xff]
        %v886 = vld [vmem:[#allocation8 + $0x88] sm:$0xff]
        %v887 = vld [vmem:[#allocation8 + $0x90] sm:$0xff]
        %v888 = vld [vmem:[#allocation8 + $0x98] sm:$0xff]
        %v889 = vld [vmem:[#allocation8 + $0xa0] sm:$0xff]
        %v890 = vld [vmem:[#allocation8 + $0xa8] sm:$0xff]
        %v891 = vld [vmem:[#allocation8 + $0xb0] sm:$0xff]
        %v892 = vld [vmem:[#allocation8 + $0xb8] sm:$0xff]
        %v893 = vld [vmem:[#allocation8 + $0xc0] sm:$0xff]
        %v894 = vld [vmem:[#allocation8 + $0xc8] sm:$0xff]
        %v895 = vld [vmem:[#allocation8 + $0xd0] sm:$0xff]
        %v896 = vld [vmem:[#allocation8 + $0xd8] sm:$0xff]
        %v897 = vld [vmem:[#allocation8 + $0xe0] sm:$0xff]
        %v898 = vld [vmem:[#allocation8 + $0xe8] sm:$0xff]
        %v899 = vld [vmem:[#allocation8 + $0xf0] sm:$0xff]
        %v900 = vld [vmem:[#allocation8 + $0xf8] sm:$0xff]
        %v901 = vld [vmem:[%s4] sm:$0x3]
        %v903 = vperm.slane %v901, 0
        %v904 = vperm.slane %v901, 1
        %v939 = vunpack.c.l.b16 %v869
        %v940 = vunpack.c.h.b16 %v869
        %v941 = vunpack.c.l.b16 %v870
        %v942 = vunpack.c.h.b16 %v870
        %v943 = vunpack.c.l.b16 %v871
        %v944 = vunpack.c.h.b16 %v871
        %v945 = vunpack.c.l.b16 %v872
        %v946 = vunpack.c.h.b16 %v872
        %v947 = vunpack.c.l.b16 %v873
        %v948 = vunpack.c.h.b16 %v873
        %v949 = vunpack.c.l.b16 %v874
        %v950 = vunpack.c.h.b16 %v874
        %v951 = vunpack.c.l.b16 %v875
        %v952 = vunpack.c.h.b16 %v875
        %v953 = vunpack.c.l.b16 %v876
        %v954 = vunpack.c.h.b16 %v876
        %v955 = vunpack.c.l.b16 %v877
        %v956 = vunpack.c.h.b16 %v877
        %v957 = vunpack.c.l.b16 %v878
        %v958 = vunpack.c.h.b16 %v878
        %v959 = vunpack.c.l.b16 %v879
        %v960 = vunpack.c.h.b16 %v879
        %v961 = vunpack.c.l.b16 %v880
        %v962 = vunpack.c.h.b16 %v880
        %v963 = vunpack.c.l.b16 %v881
        %v964 = vunpack.c.h.b16 %v881
        %v965 = vunpack.c.l.b16 %v882
        %v966 = vunpack.c.h.b16 %v882
        %v967 = vunpack.c.l.b16 %v883
        %v968 = vunpack.c.h.b16 %v883
        %v969 = vunpack.c.l.b16 %v884
        %v970 = vunpack.c.h.b16 %v884
        %v971 = vunpack.c.l.b16 %v885
        %v972 = vunpack.c.h.b16 %v885
        %v973 = vunpack.c.l.b16 %v886
        %v974 = vunpack.c.h.b16 %v886
        %v975 = vunpack.c.l.b16 %v887
        %v976 = vunpack.c.h.b16 %v887
        %v977 = vunpack.c.l.b16 %v888
        %v978 = vunpack.c.h.b16 %v888
        %v979 = vunpack.c.l.b16 %v889
        %v980 = vunpack.c.h.b16 %v889
        %v981 = vunpack.c.l.b16 %v890
        %v982 = vunpack.c.h.b16 %v890
        %v983 = vunpack.c.l.b16 %v891
        %v984 = vunpack.c.h.b16 %v891
        %v985 = vunpack.c.l.b16 %v892
        %v986 = vunpack.c.h.b16 %v892
        %v987 = vunpack.c.l.b16 %v893
        %v988 = vunpack.c.h.b16 %v893
        %v989 = vunpack.c.l.b16 %v894
        %v990 = vunpack.c.h.b16 %v894
        %v991 = vunpack.c.l.b16 %v895
        %v992 = vunpack.c.h.b16 %v895
        %v993 = vunpack.c.l.b16 %v896
        %v994 = vunpack.c.h.b16 %v896
        %v995 = vunpack.c.l.b16 %v897
        %v996 = vunpack.c.h.b16 %v897
        %v997 = vunpack.c.l.b16 %v898
        %v998 = vunpack.c.h.b16 %v898
        %v999 = vunpack.c.l.b16 %v899
        %v1000 = vunpack.c.h.b16 %v899
        %v1001 = vunpack.c.l.b16 %v900
        %v1002 = vunpack.c.h.b16 %v900
        %v1003 = vpack.c.b16 %v941, %v939
        %v1004 = vpack.c.b16 %v942, %v940
        %v1005 = vpack.c.b16 %v945, %v943
        %v1006 = vpack.c.b16 %v946, %v944
        %v1007 = vpack.c.b16 %v949, %v947
        %v1008 = vpack.c.b16 %v950, %v948
        %v1009 = vpack.c.b16 %v953, %v951
        %v1010 = vpack.c.b16 %v954, %v952
        %v1011 = vpack.c.b16 %v957, %v955
        %v1012 = vpack.c.b16 %v958, %v956
        %v1013 = vpack.c.b16 %v961, %v959
        %v1014 = vpack.c.b16 %v962, %v960
        %v1015 = vpack.c.b16 %v965, %v963
        %v1016 = vpack.c.b16 %v966, %v964
        %v1017 = vpack.c.b16 %v969, %v967
        %v1018 = vpack.c.b16 %v970, %v968
        %v1019 = vpack.c.b16 %v973, %v971
        %v1020 = vpack.c.b16 %v974, %v972
        %v1021 = vpack.c.b16 %v977, %v975
        %v1022 = vpack.c.b16 %v978, %v976
        %v1023 = vpack.c.b16 %v981, %v979
        %v1024 = vpack.c.b16 %v982, %v980
        %v1025 = vpack.c.b16 %v985, %v983
        %v1026 = vpack.c.b16 %v986, %v984
        %v1027 = vpack.c.b16 %v989, %v987
        %v1028 = vpack.c.b16 %v990, %v988
        %v1029 = vpack.c.b16 %v993, %v991
        %v1030 = vpack.c.b16 %v994, %v992
        %v1031 = vpack.c.b16 %v997, %v995
        %v1032 = vpack.c.b16 %v998, %v996
        %v1033 = vpack.c.b16 %v1001, %v999
        %v1034 = vpack.c.b16 %v1002, %v1000
        %1067 = vmatpush.bf16.msra.mxu0 %v1017
        %1068 = vmatpush.bf16.msra.mxu0 %v1015
        %1069 = vmatpush.bf16.msra.mxu0 %v1013
        %1070 = vmatpush.bf16.msra.mxu0 %v1011
        %1071 = vmatpush.bf16.msra.mxu0 %v1009
        %1072 = vmatpush.bf16.msra.mxu0 %v1007
        %1073 = vmatpush.bf16.msra.mxu0 %v1005
        %1074 = vmatpush.bf16.msra.mxu0 %v1003
        %1075 = vmatmul.bf16.gmra.mxu0 %v837
        %v1076 = vpop.f32.mrf.mxu0
        %v1077 = vadd.f32 %v903, %v1076
        %v1078 = vpop.f32.mrf.mxu0
        %v1079 = vadd.f32 %v903, %v1078
        %1080 = vmatmul.bf16.gmra.mxu0 %v839
        %v1081 = vpop.f32.mrf.mxu0
        %v1082 = vadd.f32 %v903, %v1081
        %v1083 = vpop.f32.mrf.mxu0
        %v1084 = vadd.f32 %v903, %v1083
        %1085 = vmatmul.bf16.gmra.mxu0 %v841
        %v1086 = vpop.f32.mrf.mxu0
        %v1087 = vadd.f32 %v903, %v1086
        %v1088 = vpop.f32.mrf.mxu0
        %v1089 = vadd.f32 %v903, %v1088
        %1090 = vmatmul.bf16.gmra.mxu0 %v843
        %v1091 = vpop.f32.mrf.mxu0
        %v1092 = vadd.f32 %v903, %v1091
        %v1093 = vpop.f32.mrf.mxu0
        %v1094 = vadd.f32 %v903, %v1093
        %1095 = vmatmul.bf16.gmra.mxu0 %v845
        %v1096 = vpop.f32.mrf.mxu0
        %v1097 = vadd.f32 %v903, %v1096
        %v1098 = vpop.f32.mrf.mxu0
        %v1099 = vadd.f32 %v903, %v1098
        %1100 = vmatmul.bf16.gmra.mxu0 %v847
        %v1101 = vpop.f32.mrf.mxu0
        %v1102 = vadd.f32 %v903, %v1101
        %v1103 = vpop.f32.mrf.mxu0
        %v1104 = vadd.f32 %v903, %v1103
        %1105 = vmatmul.bf16.gmra.mxu0 %v849
        %v1106 = vpop.f32.mrf.mxu0
        %v1107 = vadd.f32 %v903, %v1106
        %v1108 = vpop.f32.mrf.mxu0
        %v1109 = vadd.f32 %v903, %v1108
        %1110 = vmatmul.bf16.gmra.mxu0 %v851
        %v1111 = vpop.f32.mrf.mxu0
        %v1112 = vadd.f32 %v903, %v1111
        %v1113 = vpop.f32.mrf.mxu0
        %v1114 = vadd.f32 %v903, %v1113
        %1115 = vmatmul.bf16.gmra.mxu0 %v853
        %v1116 = vpop.f32.mrf.mxu0
        %v1117 = vadd.f32 %v903, %v1116
        %v1118 = vpop.f32.mrf.mxu0
        %v1119 = vadd.f32 %v903, %v1118
        %1120 = vmatmul.bf16.gmra.mxu0 %v855
        %v1121 = vpop.f32.mrf.mxu0
        %v1122 = vadd.f32 %v903, %v1121
        %v1123 = vpop.f32.mrf.mxu0
        %v1124 = vadd.f32 %v903, %v1123
        %1125 = vmatmul.bf16.gmra.mxu0 %v857
        %v1126 = vpop.f32.mrf.mxu0
        %v1127 = vadd.f32 %v903, %v1126
        %v1128 = vpop.f32.mrf.mxu0
        %v1129 = vadd.f32 %v903, %v1128
        %1130 = vmatmul.bf16.gmra.mxu0 %v859
        %v1131 = vpop.f32.mrf.mxu0
        %v1132 = vadd.f32 %v903, %v1131
        %v1133 = vpop.f32.mrf.mxu0
        %v1134 = vadd.f32 %v903, %v1133
        %1135 = vmatmul.bf16.gmra.mxu0 %v861
        %v1136 = vpop.f32.mrf.mxu0
        %v1137 = vadd.f32 %v903, %v1136
        %v1138 = vpop.f32.mrf.mxu0
        %v1139 = vadd.f32 %v903, %v1138
        %1140 = vmatmul.bf16.gmra.mxu0 %v863
        %v1141 = vpop.f32.mrf.mxu0
        %v1142 = vadd.f32 %v903, %v1141
        %v1143 = vpop.f32.mrf.mxu0
        %v1144 = vadd.f32 %v903, %v1143
        %1145 = vmatmul.bf16.gmra.mxu0 %v865
        %v1146 = vpop.f32.mrf.mxu0
        %v1147 = vadd.f32 %v903, %v1146
        %v1148 = vpop.f32.mrf.mxu0
        %v1149 = vadd.f32 %v903, %v1148
        %1150 = vmatmul.bf16.gmra.mxu0 %v867
        %v1151 = vpop.f32.mrf.mxu0
        %v1152 = vadd.f32 %v903, %v1151
        %v1153 = vpop.f32.mrf.mxu0
        %v1154 = vadd.f32 %v903, %v1153
        %1155 = vdwg.mxu0
        %1156 = vmatpush.bf16.msra.mxu0 %v1033
        %1157 = vmatpush.bf16.msra.mxu0 %v1031
        %1158 = vmatpush.bf16.msra.mxu0 %v1029
        %1159 = vmatpush.bf16.msra.mxu0 %v1027
        %1160 = vmatpush.bf16.msra.mxu0 %v1025
        %1161 = vmatpush.bf16.msra.mxu0 %v1023
        %1162 = vmatpush.bf16.msra.mxu0 %v1021
        %1163 = vmatpush.bf16.msra.mxu0 %v1019
        %1164 = vmatmul.bf16.gmra.mxu0 %v838
        %v1165 = vpop.f32.mrf.mxu0
        %v1166 = vadd.f32 %v1077, %v1165
        %v1167 = vpop.f32.mrf.mxu0
        %v1168 = vadd.f32 %v1079, %v1167
        %1169 = vmatmul.bf16.gmra.mxu0 %v840
        %v1170 = vpop.f32.mrf.mxu0
        %v1171 = vadd.f32 %v1082, %v1170
        %v1172 = vpop.f32.mrf.mxu0
        %v1173 = vadd.f32 %v1084, %v1172
        %1174 = vmatmul.bf16.gmra.mxu0 %v842
        %v1175 = vpop.f32.mrf.mxu0
        %v1176 = vadd.f32 %v1087, %v1175
        %v1177 = vpop.f32.mrf.mxu0
        %v1178 = vadd.f32 %v1089, %v1177
        %1179 = vmatmul.bf16.gmra.mxu0 %v844
        %v1180 = vpop.f32.mrf.mxu0
        %v1181 = vadd.f32 %v1092, %v1180
        %v1182 = vpop.f32.mrf.mxu0
        %v1183 = vadd.f32 %v1094, %v1182
        %1184 = vmatmul.bf16.gmra.mxu0 %v846
        %v1185 = vpop.f32.mrf.mxu0
        %v1186 = vadd.f32 %v1097, %v1185
        %v1187 = vpop.f32.mrf.mxu0
        %v1188 = vadd.f32 %v1099, %v1187
        %1189 = vmatmul.bf16.gmra.mxu0 %v848
        %v1190 = vpop.f32.mrf.mxu0
        %v1191 = vadd.f32 %v1102, %v1190
        %v1192 = vpop.f32.mrf.mxu0
        %v1193 = vadd.f32 %v1104, %v1192
        %1194 = vmatmul.bf16.gmra.mxu0 %v850
        %v1195 = vpop.f32.mrf.mxu0
        %v1196 = vadd.f32 %v1107, %v1195
        %v1197 = vpop.f32.mrf.mxu0
        %v1198 = vadd.f32 %v1109, %v1197
        %1199 = vmatmul.bf16.gmra.mxu0 %v852
        %v1200 = vpop.f32.mrf.mxu0
        %v1201 = vadd.f32 %v1112, %v1200
        %v1202 = vpop.f32.mrf.mxu0
        %v1203 = vadd.f32 %v1114, %v1202
        %1204 = vmatmul.bf16.gmra.mxu0 %v854
        %v1205 = vpop.f32.mrf.mxu0
        %v1206 = vadd.f32 %v1117, %v1205
        %v1207 = vpop.f32.mrf.mxu0
        %v1208 = vadd.f32 %v1119, %v1207
        %1209 = vmatmul.bf16.gmra.mxu0 %v856
        %v1210 = vpop.f32.mrf.mxu0
        %v1211 = vadd.f32 %v1122, %v1210
        %v1212 = vpop.f32.mrf.mxu0
        %v1213 = vadd.f32 %v1124, %v1212
        %1214 = vmatmul.bf16.gmra.mxu0 %v858
        %v1215 = vpop.f32.mrf.mxu0
        %v1216 = vadd.f32 %v1127, %v1215
        %v1217 = vpop.f32.mrf.mxu0
        %v1218 = vadd.f32 %v1129, %v1217
        %1219 = vmatmul.bf16.gmra.mxu0 %v860
        %v1220 = vpop.f32.mrf.mxu0
        %v1221 = vadd.f32 %v1132, %v1220
        %v1222 = vpop.f32.mrf.mxu0
        %v1223 = vadd.f32 %v1134, %v1222
        %1224 = vmatmul.bf16.gmra.mxu0 %v862
        %v1225 = vpop.f32.mrf.mxu0
        %v1226 = vadd.f32 %v1137, %v1225
        %v1227 = vpop.f32.mrf.mxu0
        %v1228 = vadd.f32 %v1139, %v1227
        %1229 = vmatmul.bf16.gmra.mxu0 %v864
        %v1230 = vpop.f32.mrf.mxu0
        %v1231 = vadd.f32 %v1142, %v1230
        %v1232 = vpop.f32.mrf.mxu0
        %v1233 = vadd.f32 %v1144, %v1232
        %1234 = vmatmul.bf16.gmra.mxu0 %v866
        %v1235 = vpop.f32.mrf.mxu0
        %v1236 = vadd.f32 %v1147, %v1235
        %v1237 = vpop.f32.mrf.mxu0
        %v1238 = vadd.f32 %v1149, %v1237
        %1239 = vmatmul.bf16.gmra.mxu0 %v868
        %v1240 = vpop.f32.mrf.mxu0
        %v1241 = vadd.f32 %v1152, %v1240
        %v1242 = vpop.f32.mrf.mxu0
        %v1243 = vadd.f32 %v1154, %v1242
        %1244 = vdwg.mxu0
        %1245 = vmatpush.bf16.msra.mxu0 %v1018
        %1246 = vmatpush.bf16.msra.mxu0 %v1016
        %1247 = vmatpush.bf16.msra.mxu0 %v1014
        %1248 = vmatpush.bf16.msra.mxu0 %v1012
        %1249 = vmatpush.bf16.msra.mxu0 %v1010
        %1250 = vmatpush.bf16.msra.mxu0 %v1008
        %1251 = vmatpush.bf16.msra.mxu0 %v1006
        %1252 = vmatpush.bf16.msra.mxu0 %v1004
        %1253 = vmatmul.bf16.gmra.mxu0 %v837
        %v1254 = vpop.f32.mrf.mxu0
        %v1255 = vadd.f32 %v904, %v1254
        %v1256 = vpop.f32.mrf.mxu0
        %v1257 = vadd.f32 %v904, %v1256
        %1258 = vmatmul.bf16.gmra.mxu0 %v839
        %v1259 = vpop.f32.mrf.mxu0
        %v1260 = vadd.f32 %v904, %v1259
        %v1261 = vpop.f32.mrf.mxu0
        %v1262 = vadd.f32 %v904, %v1261
        %1263 = vmatmul.bf16.gmra.mxu0 %v841
        %v1264 = vpop.f32.mrf.mxu0
        %v1265 = vadd.f32 %v904, %v1264
        %v1266 = vpop.f32.mrf.mxu0
        %v1267 = vadd.f32 %v904, %v1266
        %1268 = vmatmul.bf16.gmra.mxu0 %v843
        %v1269 = vpop.f32.mrf.mxu0
        %v1270 = vadd.f32 %v904, %v1269
        %v1271 = vpop.f32.mrf.mxu0
        %v1272 = vadd.f32 %v904, %v1271
        %1273 = vmatmul.bf16.gmra.mxu0 %v845
        %v1274 = vpop.f32.mrf.mxu0
        %v1275 = vadd.f32 %v904, %v1274
        %v1276 = vpop.f32.mrf.mxu0
        %v1277 = vadd.f32 %v904, %v1276
        %1278 = vmatmul.bf16.gmra.mxu0 %v847
        %v1279 = vpop.f32.mrf.mxu0
        %v1280 = vadd.f32 %v904, %v1279
        %v1281 = vpop.f32.mrf.mxu0
        %v1282 = vadd.f32 %v904, %v1281
        %1283 = vmatmul.bf16.gmra.mxu0 %v849
        %v1284 = vpop.f32.mrf.mxu0
        %v1285 = vadd.f32 %v904, %v1284
        %v1286 = vpop.f32.mrf.mxu0
        %v1287 = vadd.f32 %v904, %v1286
        %1288 = vmatmul.bf16.gmra.mxu0 %v851
        %v1289 = vpop.f32.mrf.mxu0
        %v1290 = vadd.f32 %v904, %v1289
        %v1291 = vpop.f32.mrf.mxu0
        %v1292 = vadd.f32 %v904, %v1291
        %1293 = vmatmul.bf16.gmra.mxu0 %v853
        %v1294 = vpop.f32.mrf.mxu0
        %v1295 = vadd.f32 %v904, %v1294
        %v1296 = vpop.f32.mrf.mxu0
        %v1297 = vadd.f32 %v904, %v1296
        %1298 = vmatmul.bf16.gmra.mxu0 %v855
        %v1299 = vpop.f32.mrf.mxu0
        %v1300 = vadd.f32 %v904, %v1299
        %v1301 = vpop.f32.mrf.mxu0
        %v1302 = vadd.f32 %v904, %v1301
        %1303 = vmatmul.bf16.gmra.mxu0 %v857
        %v1304 = vpop.f32.mrf.mxu0
        %v1305 = vadd.f32 %v904, %v1304
        %v1306 = vpop.f32.mrf.mxu0
        %v1307 = vadd.f32 %v904, %v1306
        %1308 = vmatmul.bf16.gmra.mxu0 %v859
        %v1309 = vpop.f32.mrf.mxu0
        %v1310 = vadd.f32 %v904, %v1309
        %v1311 = vpop.f32.mrf.mxu0
        %v1312 = vadd.f32 %v904, %v1311
        %1313 = vmatmul.bf16.gmra.mxu0 %v861
        %v1314 = vpop.f32.mrf.mxu0
        %v1315 = vadd.f32 %v904, %v1314
        %v1316 = vpop.f32.mrf.mxu0
        %v1317 = vadd.f32 %v904, %v1316
        %1318 = vmatmul.bf16.gmra.mxu0 %v863
        %v1319 = vpop.f32.mrf.mxu0
        %v1320 = vadd.f32 %v904, %v1319
        %v1321 = vpop.f32.mrf.mxu0
        %v1322 = vadd.f32 %v904, %v1321
        %1323 = vmatmul.bf16.gmra.mxu0 %v865
        %v1324 = vpop.f32.mrf.mxu0
        %v1325 = vadd.f32 %v904, %v1324
        %v1326 = vpop.f32.mrf.mxu0
        %v1327 = vadd.f32 %v904, %v1326
        %1328 = vmatmul.bf16.gmra.mxu0 %v867
        %v1329 = vpop.f32.mrf.mxu0
        %v1330 = vadd.f32 %v904, %v1329
        %v1331 = vpop.f32.mrf.mxu0
        %v1332 = vadd.f32 %v904, %v1331
        %1333 = vdwg.mxu0
        %1334 = vmatpush.bf16.msra.mxu0 %v1034
        %1335 = vmatpush.bf16.msra.mxu0 %v1032
        %1336 = vmatpush.bf16.msra.mxu0 %v1030
        %1337 = vmatpush.bf16.msra.mxu0 %v1028
        %1338 = vmatpush.bf16.msra.mxu0 %v1026
        %1339 = vmatpush.bf16.msra.mxu0 %v1024
        %1340 = vmatpush.bf16.msra.mxu0 %v1022
        %1341 = vmatpush.bf16.msra.mxu0 %v1020
        %1342 = vmatmul.bf16.gmra.mxu0 %v838
        %v1343 = vpop.f32.mrf.mxu0
        %v1344 = vadd.f32 %v1255, %v1343
        %v1345 = vpop.f32.mrf.mxu0
        %v1346 = vadd.f32 %v1257, %v1345
        %1347 = vmatmul.bf16.gmra.mxu0 %v840
        %v1348 = vpop.f32.mrf.mxu0
        %v1349 = vadd.f32 %v1260, %v1348
        %v1350 = vpop.f32.mrf.mxu0
        %v1351 = vadd.f32 %v1262, %v1350
        %1352 = vmatmul.bf16.gmra.mxu0 %v842
        %v1353 = vpop.f32.mrf.mxu0
        %v1354 = vadd.f32 %v1265, %v1353
        %v1355 = vpop.f32.mrf.mxu0
        %v1356 = vadd.f32 %v1267, %v1355
        %1357 = vmatmul.bf16.gmra.mxu0 %v844
        %v1358 = vpop.f32.mrf.mxu0
        %v1359 = vadd.f32 %v1270, %v1358
        %v1360 = vpop.f32.mrf.mxu0
        %v1361 = vadd.f32 %v1272, %v1360
        %1362 = vmatmul.bf16.gmra.mxu0 %v846
        %v1363 = vpop.f32.mrf.mxu0
        %v1364 = vadd.f32 %v1275, %v1363
        %v1365 = vpop.f32.mrf.mxu0
        %v1366 = vadd.f32 %v1277, %v1365
        %1367 = vmatmul.bf16.gmra.mxu0 %v848
        %v1368 = vpop.f32.mrf.mxu0
        %v1369 = vadd.f32 %v1280, %v1368
        %v1370 = vpop.f32.mrf.mxu0
        %v1371 = vadd.f32 %v1282, %v1370
        %1372 = vmatmul.bf16.gmra.mxu0 %v850
        %v1373 = vpop.f32.mrf.mxu0
        %v1374 = vadd.f32 %v1285, %v1373
        %v1375 = vpop.f32.mrf.mxu0
        %v1376 = vadd.f32 %v1287, %v1375
        %1377 = vmatmul.bf16.gmra.mxu0 %v852
        %v1378 = vpop.f32.mrf.mxu0
        %v1379 = vadd.f32 %v1290, %v1378
        %v1380 = vpop.f32.mrf.mxu0
        %v1381 = vadd.f32 %v1292, %v1380
        %1382 = vmatmul.bf16.gmra.mxu0 %v854
        %v1383 = vpop.f32.mrf.mxu0
        %v1384 = vadd.f32 %v1295, %v1383
        %v1385 = vpop.f32.mrf.mxu0
        %v1386 = vadd.f32 %v1297, %v1385
        %1387 = vmatmul.bf16.gmra.mxu0 %v856
        %v1388 = vpop.f32.mrf.mxu0
        %v1389 = vadd.f32 %v1300, %v1388
        %v1390 = vpop.f32.mrf.mxu0
        %v1391 = vadd.f32 %v1302, %v1390
        %1392 = vmatmul.bf16.gmra.mxu0 %v858
        %v1393 = vpop.f32.mrf.mxu0
        %v1394 = vadd.f32 %v1305, %v1393
        %v1395 = vpop.f32.mrf.mxu0
        %v1396 = vadd.f32 %v1307, %v1395
        %1397 = vmatmul.bf16.gmra.mxu0 %v860
        %v1398 = vpop.f32.mrf.mxu0
        %v1399 = vadd.f32 %v1310, %v1398
        %v1400 = vpop.f32.mrf.mxu0
        %v1401 = vadd.f32 %v1312, %v1400
        %1402 = vmatmul.bf16.gmra.mxu0 %v862
        %v1403 = vpop.f32.mrf.mxu0
        %v1404 = vadd.f32 %v1315, %v1403
        %v1405 = vpop.f32.mrf.mxu0
        %v1406 = vadd.f32 %v1317, %v1405
        %1407 = vmatmul.bf16.gmra.mxu0 %v864
        %v1408 = vpop.f32.mrf.mxu0
        %v1409 = vadd.f32 %v1320, %v1408
        %v1410 = vpop.f32.mrf.mxu0
        %v1411 = vadd.f32 %v1322, %v1410
        %1412 = vmatmul.bf16.gmra.mxu0 %v866
        %v1413 = vpop.f32.mrf.mxu0
        %v1414 = vadd.f32 %v1325, %v1413
        %v1415 = vpop.f32.mrf.mxu0
        %v1416 = vadd.f32 %v1327, %v1415
        %1417 = vmatmul.bf16.gmra.mxu0 %v868
        %v1418 = vpop.f32.mrf.mxu0
        %v1419 = vadd.f32 %v1330, %v1418
        %v1420 = vpop.f32.mrf.mxu0
        %v1421 = vadd.f32 %v1332, %v1420
        %1422 = vdwg.mxu0
        %v1423 = vmax.f32 %v1166, 0.0
        %v1424 = vmax.f32 %v1344, 0.0
        %v1425 = vmax.f32 %v1168, 0.0
        %v1426 = vmax.f32 %v1346, 0.0
        %v1427 = vmax.f32 %v1171, 0.0
        %v1428 = vmax.f32 %v1349, 0.0
        %v1429 = vmax.f32 %v1173, 0.0
        %v1430 = vmax.f32 %v1351, 0.0
        %v1431 = vmax.f32 %v1176, 0.0
        %v1432 = vmax.f32 %v1354, 0.0
        %v1433 = vmax.f32 %v1178, 0.0
        %v1434 = vmax.f32 %v1356, 0.0
        %v1435 = vmax.f32 %v1181, 0.0
        %v1436 = vmax.f32 %v1359, 0.0
        %v1437 = vmax.f32 %v1183, 0.0
        %v1438 = vmax.f32 %v1361, 0.0
        %v1439 = vmax.f32 %v1186, 0.0
        %v1440 = vmax.f32 %v1364, 0.0
        %v1441 = vmax.f32 %v1188, 0.0
        %v1442 = vmax.f32 %v1366, 0.0
        %v1443 = vmax.f32 %v1191, 0.0
        %v1444 = vmax.f32 %v1369, 0.0
        %v1445 = vmax.f32 %v1193, 0.0
        %v1446 = vmax.f32 %v1371, 0.0
        %v1447 = vmax.f32 %v1196, 0.0
        %v1448 = vmax.f32 %v1374, 0.0
        %v1449 = vmax.f32 %v1198, 0.0
        %v1450 = vmax.f32 %v1376, 0.0
        %v1451 = vmax.f32 %v1201, 0.0
        %v1452 = vmax.f32 %v1379, 0.0
        %v1453 = vmax.f32 %v1203, 0.0
        %v1454 = vmax.f32 %v1381, 0.0
        %v1455 = vmax.f32 %v1206, 0.0
        %v1456 = vmax.f32 %v1384, 0.0
        %v1457 = vmax.f32 %v1208, 0.0
        %v1458 = vmax.f32 %v1386, 0.0
        %v1459 = vmax.f32 %v1211, 0.0
        %v1460 = vmax.f32 %v1389, 0.0
        %v1461 = vmax.f32 %v1213, 0.0
        %v1462 = vmax.f32 %v1391, 0.0
        %v1463 = vmax.f32 %v1216, 0.0
        %v1464 = vmax.f32 %v1394, 0.0
        %v1465 = vmax.f32 %v1218, 0.0
        %v1466 = vmax.f32 %v1396, 0.0
        %v1467 = vmax.f32 %v1221, 0.0
        %v1468 = vmax.f32 %v1399, 0.0
        %v1469 = vmax.f32 %v1223, 0.0
        %v1470 = vmax.f32 %v1401, 0.0
        %v1471 = vmax.f32 %v1226, 0.0
        %v1472 = vmax.f32 %v1404, 0.0
        %v1473 = vmax.f32 %v1228, 0.0
        %v1474 = vmax.f32 %v1406, 0.0
        %v1475 = vmax.f32 %v1231, 0.0
        %v1476 = vmax.f32 %v1409, 0.0
        %v1477 = vmax.f32 %v1233, 0.0
        %v1478 = vmax.f32 %v1411, 0.0
        %v1479 = vmax.f32 %v1236, 0.0
        %v1480 = vmax.f32 %v1414, 0.0
        %v1481 = vmax.f32 %v1238, 0.0
        %v1482 = vmax.f32 %v1416, 0.0
        %v1483 = vmax.f32 %v1241, 0.0
        %v1484 = vmax.f32 %v1419, 0.0
        %v1485 = vmax.f32 %v1243, 0.0
        %v1486 = vmax.f32 %v1421, 0.0
        %v1487 = vpack.c.bf16 %v1425, %v1423
        %v1488 = vpack.c.bf16 %v1426, %v1424
        %v1489 = vpack.c.bf16 %v1429, %v1427
        %v1490 = vpack.c.bf16 %v1430, %v1428
        %v1491 = vpack.c.bf16 %v1433, %v1431
        %v1492 = vpack.c.bf16 %v1434, %v1432
        %v1493 = vpack.c.bf16 %v1437, %v1435
        %v1494 = vpack.c.bf16 %v1438, %v1436
        %v1495 = vpack.c.bf16 %v1441, %v1439
        %v1496 = vpack.c.bf16 %v1442, %v1440
        %v1497 = vpack.c.bf16 %v1445, %v1443
        %v1498 = vpack.c.bf16 %v1446, %v1444
        %v1499 = vpack.c.bf16 %v1449, %v1447
        %v1500 = vpack.c.bf16 %v1450, %v1448
        %v1501 = vpack.c.bf16 %v1453, %v1451
        %v1502 = vpack.c.bf16 %v1454, %v1452
        %v1503 = vpack.c.bf16 %v1457, %v1455
        %v1504 = vpack.c.bf16 %v1458, %v1456
        %v1505 = vpack.c.bf16 %v1461, %v1459
        %v1506 = vpack.c.bf16 %v1462, %v1460
        %v1507 = vpack.c.bf16 %v1465, %v1463
        %v1508 = vpack.c.bf16 %v1466, %v1464
        %v1509 = vpack.c.bf16 %v1469, %v1467
        %v1510 = vpack.c.bf16 %v1470, %v1468
        %v1511 = vpack.c.bf16 %v1473, %v1471
        %v1512 = vpack.c.bf16 %v1474, %v1472
        %v1513 = vpack.c.bf16 %v1477, %v1475
        %v1514 = vpack.c.bf16 %v1478, %v1476
        %v1515 = vpack.c.bf16 %v1481, %v1479
        %v1516 = vpack.c.bf16 %v1482, %v1480
        %v1517 = vpack.c.bf16 %v1485, %v1483
        %v1518 = vpack.c.bf16 %v1486, %v1484
        %v1519 = vld [vmem:[#allocation10] sm:$0xf]
        %v1520 = vld [vmem:[#allocation10 + $0x4] sm:$0xf]
        %v1521 = vld [vmem:[#allocation10 + $0x8] sm:$0xf]
        %v1522 = vld [vmem:[#allocation10 + $0xc] sm:$0xf]
        %v1523 = vld [vmem:[#allocation10 + $0x10] sm:$0xf]
        %v1524 = vld [vmem:[#allocation10 + $0x14] sm:$0xf]
        %v1525 = vld [vmem:[#allocation10 + $0x18] sm:$0xf]
        %v1526 = vld [vmem:[#allocation10 + $0x1c] sm:$0xf]
        %v1527 = vld [vmem:[#allocation10 + $0x20] sm:$0xf]
        %v1528 = vld [vmem:[#allocation10 + $0x24] sm:$0xf]
        %v1529 = vld [vmem:[#allocation10 + $0x28] sm:$0xf]
        %v1530 = vld [vmem:[#allocation10 + $0x2c] sm:$0xf]
        %v1531 = vld [vmem:[#allocation10 + $0x30] sm:$0xf]
        %v1532 = vld [vmem:[#allocation10 + $0x34] sm:$0xf]
        %v1533 = vld [vmem:[#allocation10 + $0x38] sm:$0xf]
        %v1534 = vld [vmem:[#allocation10 + $0x3c] sm:$0xf]
        %v1535 = vld [vmem:[#allocation10 + $0x40] sm:$0xf]
        %v1536 = vld [vmem:[#allocation10 + $0x44] sm:$0xf]
        %v1537 = vld [vmem:[#allocation10 + $0x48] sm:$0xf]
        %v1538 = vld [vmem:[#allocation10 + $0x4c] sm:$0xf]
        %v1539 = vld [vmem:[#allocation10 + $0x50] sm:$0xf]
        %v1540 = vld [vmem:[#allocation10 + $0x54] sm:$0xf]
        %v1541 = vld [vmem:[#allocation10 + $0x58] sm:$0xf]
        %v1542 = vld [vmem:[#allocation10 + $0x5c] sm:$0xf]
        %v1543 = vld [vmem:[#allocation10 + $0x60] sm:$0xf]
        %v1544 = vld [vmem:[#allocation10 + $0x64] sm:$0xf]
        %v1545 = vld [vmem:[#allocation10 + $0x68] sm:$0xf]
        %v1546 = vld [vmem:[#allocation10 + $0x6c] sm:$0xf]
        %v1547 = vld [vmem:[#allocation10 + $0x70] sm:$0xf]
        %v1548 = vld [vmem:[#allocation10 + $0x74] sm:$0xf]
        %v1549 = vld [vmem:[#allocation10 + $0x78] sm:$0xf]
        %v1550 = vld [vmem:[#allocation10 + $0x7c] sm:$0xf]
        %v1551 = vld [vmem:[%s6] sm:$0x1]
        %v1553 = vperm.slane %v1551, 0
        %v1587 = vunpack.c.l.b16 %v1519
        %v1588 = vunpack.c.l.b16 %v1520
        %v1589 = vunpack.c.l.b16 %v1521
        %v1590 = vunpack.c.l.b16 %v1522
        %v1591 = vunpack.c.l.b16 %v1523
        %v1592 = vunpack.c.l.b16 %v1524
        %v1593 = vunpack.c.l.b16 %v1525
        %v1594 = vunpack.c.l.b16 %v1526
        %v1595 = vunpack.c.l.b16 %v1527
        %v1596 = vunpack.c.l.b16 %v1528
        %v1597 = vunpack.c.l.b16 %v1529
        %v1598 = vunpack.c.l.b16 %v1530
        %v1599 = vunpack.c.l.b16 %v1531
        %v1600 = vunpack.c.l.b16 %v1532
        %v1601 = vunpack.c.l.b16 %v1533
        %v1602 = vunpack.c.l.b16 %v1534
        %v1603 = vunpack.c.l.b16 %v1535
        %v1604 = vunpack.c.l.b16 %v1536
        %v1605 = vunpack.c.l.b16 %v1537
        %v1606 = vunpack.c.l.b16 %v1538
        %v1607 = vunpack.c.l.b16 %v1539
        %v1608 = vunpack.c.l.b16 %v1540
        %v1609 = vunpack.c.l.b16 %v1541
        %v1610 = vunpack.c.l.b16 %v1542
        %v1611 = vunpack.c.l.b16 %v1543
        %v1612 = vunpack.c.l.b16 %v1544
        %v1613 = vunpack.c.l.b16 %v1545
        %v1614 = vunpack.c.l.b16 %v1546
        %v1615 = vunpack.c.l.b16 %v1547
        %v1616 = vunpack.c.l.b16 %v1548
        %v1617 = vunpack.c.l.b16 %v1549
        %v1618 = vunpack.c.l.b16 %v1550
        %v1619 = vpack.c.b16 %v1588, %v1587
        %v1620 = vpack.c.b16 %v1590, %v1589
        %v1621 = vpack.c.b16 %v1592, %v1591
        %v1622 = vpack.c.b16 %v1594, %v1593
        %v1623 = vpack.c.b16 %v1596, %v1595
        %v1624 = vpack.c.b16 %v1598, %v1597
        %v1625 = vpack.c.b16 %v1600, %v1599
        %v1626 = vpack.c.b16 %v1602, %v1601
        %v1627 = vpack.c.b16 %v1604, %v1603
        %v1628 = vpack.c.b16 %v1606, %v1605
        %v1629 = vpack.c.b16 %v1608, %v1607
        %v1630 = vpack.c.b16 %v1610, %v1609
        %v1631 = vpack.c.b16 %v1612, %v1611
        %v1632 = vpack.c.b16 %v1614, %v1613
        %v1633 = vpack.c.b16 %v1616, %v1615
        %v1634 = vpack.c.b16 %v1618, %v1617
        %1651 = vmatpush.bf16.msra.mxu0 %v1626
        %1652 = vmatpush.bf16.msra.mxu0 %v1625
        %1653 = vmatpush.bf16.msra.mxu0 %v1624
        %1654 = vmatpush.bf16.msra.mxu0 %v1623
        %1655 = vmatpush.bf16.msra.mxu0 %v1622
        %1656 = vmatpush.bf16.msra.mxu0 %v1621
        %1657 = vmatpush.bf16.msra.mxu0 %v1620
        %1658 = vmatpush.bf16.msra.mxu0 %v1619
        %1659 = vmatmul.bf16.gmra.mxu0 %v1487
        %v1660 = vpop.f32.mrf.mxu0
        %v1661 = vadd.f32 %v1553, %v1660
        %v1662 = vpop.f32.mrf.mxu0
        %v1663 = vadd.f32 %v1553, %v1662
        %1664 = vmatmul.bf16.gmra.mxu0 %v1489
        %v1665 = vpop.f32.mrf.mxu0
        %v1666 = vadd.f32 %v1553, %v1665
        %v1667 = vpop.f32.mrf.mxu0
        %v1668 = vadd.f32 %v1553, %v1667
        %1669 = vmatmul.bf16.gmra.mxu0 %v1491
        %v1670 = vpop.f32.mrf.mxu0
        %v1671 = vadd.f32 %v1553, %v1670
        %v1672 = vpop.f32.mrf.mxu0
        %v1673 = vadd.f32 %v1553, %v1672
        %1674 = vmatmul.bf16.gmra.mxu0 %v1493
        %v1675 = vpop.f32.mrf.mxu0
        %v1676 = vadd.f32 %v1553, %v1675
        %v1677 = vpop.f32.mrf.mxu0
        %v1678 = vadd.f32 %v1553, %v1677
        %1679 = vmatmul.bf16.gmra.mxu0 %v1495
        %v1680 = vpop.f32.mrf.mxu0
        %v1681 = vadd.f32 %v1553, %v1680
        %v1682 = vpop.f32.mrf.mxu0
        %v1683 = vadd.f32 %v1553, %v1682
        %1684 = vmatmul.bf16.gmra.mxu0 %v1497
        %v1685 = vpop.f32.mrf.mxu0
        %v1686 = vadd.f32 %v1553, %v1685
        %v1687 = vpop.f32.mrf.mxu0
        %v1688 = vadd.f32 %v1553, %v1687
        %1689 = vmatmul.bf16.gmra.mxu0 %v1499
        %v1690 = vpop.f32.mrf.mxu0
        %v1691 = vadd.f32 %v1553, %v1690
        %v1692 = vpop.f32.mrf.mxu0
        %v1693 = vadd.f32 %v1553, %v1692
        %1694 = vmatmul.bf16.gmra.mxu0 %v1501
        %v1695 = vpop.f32.mrf.mxu0
        %v1696 = vadd.f32 %v1553, %v1695
        %v1697 = vpop.f32.mrf.mxu0
        %v1698 = vadd.f32 %v1553, %v1697
        %1699 = vmatmul.bf16.gmra.mxu0 %v1503
        %v1700 = vpop.f32.mrf.mxu0
        %v1701 = vadd.f32 %v1553, %v1700
        %v1702 = vpop.f32.mrf.mxu0
        %v1703 = vadd.f32 %v1553, %v1702
        %1704 = vmatmul.bf16.gmra.mxu0 %v1505
        %v1705 = vpop.f32.mrf.mxu0
        %v1706 = vadd.f32 %v1553, %v1705
        %v1707 = vpop.f32.mrf.mxu0
        %v1708 = vadd.f32 %v1553, %v1707
        %1709 = vmatmul.bf16.gmra.mxu0 %v1507
        %v1710 = vpop.f32.mrf.mxu0
        %v1711 = vadd.f32 %v1553, %v1710
        %v1712 = vpop.f32.mrf.mxu0
        %v1713 = vadd.f32 %v1553, %v1712
        %1714 = vmatmul.bf16.gmra.mxu0 %v1509
        %v1715 = vpop.f32.mrf.mxu0
        %v1716 = vadd.f32 %v1553, %v1715
        %v1717 = vpop.f32.mrf.mxu0
        %v1718 = vadd.f32 %v1553, %v1717
        %1719 = vmatmul.bf16.gmra.mxu0 %v1511
        %v1720 = vpop.f32.mrf.mxu0
        %v1721 = vadd.f32 %v1553, %v1720
        %v1722 = vpop.f32.mrf.mxu0
        %v1723 = vadd.f32 %v1553, %v1722
        %1724 = vmatmul.bf16.gmra.mxu0 %v1513
        %v1725 = vpop.f32.mrf.mxu0
        %v1726 = vadd.f32 %v1553, %v1725
        %v1727 = vpop.f32.mrf.mxu0
        %v1728 = vadd.f32 %v1553, %v1727
        %1729 = vmatmul.bf16.gmra.mxu0 %v1515
        %v1730 = vpop.f32.mrf.mxu0
        %v1731 = vadd.f32 %v1553, %v1730
        %v1732 = vpop.f32.mrf.mxu0
        %v1733 = vadd.f32 %v1553, %v1732
        %1734 = vmatmul.bf16.gmra.mxu0 %v1517
        %v1735 = vpop.f32.mrf.mxu0
        %v1736 = vadd.f32 %v1553, %v1735
        %v1737 = vpop.f32.mrf.mxu0
        %v1738 = vadd.f32 %v1553, %v1737
        %1739 = vdwg.mxu0
        %1740 = vmatpush.bf16.msra.mxu0 %v1634
        %1741 = vmatpush.bf16.msra.mxu0 %v1633
        %1742 = vmatpush.bf16.msra.mxu0 %v1632
        %1743 = vmatpush.bf16.msra.mxu0 %v1631
        %1744 = vmatpush.bf16.msra.mxu0 %v1630
        %1745 = vmatpush.bf16.msra.mxu0 %v1629
        %1746 = vmatpush.bf16.msra.mxu0 %v1628
        %1747 = vmatpush.bf16.msra.mxu0 %v1627
        %1748 = vmatmul.bf16.gmra.mxu0 %v1488
        %v1749 = vpop.f32.mrf.mxu0
        %v1750 = vadd.f32 %v1661, %v1749
        %v1751 = vpop.f32.mrf.mxu0
        %v1752 = vadd.f32 %v1663, %v1751
        %1753 = vmatmul.bf16.gmra.mxu0 %v1490
        %v1754 = vpop.f32.mrf.mxu0
        %v1755 = vadd.f32 %v1666, %v1754
        %v1756 = vpop.f32.mrf.mxu0
        %v1757 = vadd.f32 %v1668, %v1756
        %1758 = vmatmul.bf16.gmra.mxu0 %v1492
        %v1759 = vpop.f32.mrf.mxu0
        %v1760 = vadd.f32 %v1671, %v1759
        %v1761 = vpop.f32.mrf.mxu0
        %v1762 = vadd.f32 %v1673, %v1761
        %1763 = vmatmul.bf16.gmra.mxu0 %v1494
        %v1764 = vpop.f32.mrf.mxu0
        %v1765 = vadd.f32 %v1676, %v1764
        %v1766 = vpop.f32.mrf.mxu0
        %v1767 = vadd.f32 %v1678, %v1766
        %1768 = vmatmul.bf16.gmra.mxu0 %v1496
        %v1769 = vpop.f32.mrf.mxu0
        %v1770 = vadd.f32 %v1681, %v1769
        %v1771 = vpop.f32.mrf.mxu0
        %v1772 = vadd.f32 %v1683, %v1771
        %1773 = vmatmul.bf16.gmra.mxu0 %v1498
        %v1774 = vpop.f32.mrf.mxu0
        %v1775 = vadd.f32 %v1686, %v1774
        %v1776 = vpop.f32.mrf.mxu0
        %v1777 = vadd.f32 %v1688, %v1776
        %1778 = vmatmul.bf16.gmra.mxu0 %v1500
        %v1779 = vpop.f32.mrf.mxu0
        %v1780 = vadd.f32 %v1691, %v1779
        %v1781 = vpop.f32.mrf.mxu0
        %v1782 = vadd.f32 %v1693, %v1781
        %1783 = vmatmul.bf16.gmra.mxu0 %v1502
        %v1784 = vpop.f32.mrf.mxu0
        %v1785 = vadd.f32 %v1696, %v1784
        %v1786 = vpop.f32.mrf.mxu0
        %v1787 = vadd.f32 %v1698, %v1786
        %1788 = vmatmul.bf16.gmra.mxu0 %v1504
        %v1789 = vpop.f32.mrf.mxu0
        %v1790 = vadd.f32 %v1701, %v1789
        %v1791 = vpop.f32.mrf.mxu0
        %v1792 = vadd.f32 %v1703, %v1791
        %1793 = vmatmul.bf16.gmra.mxu0 %v1506
        %v1794 = vpop.f32.mrf.mxu0
        %v1795 = vadd.f32 %v1706, %v1794
        %v1796 = vpop.f32.mrf.mxu0
        %v1797 = vadd.f32 %v1708, %v1796
        %1798 = vmatmul.bf16.gmra.mxu0 %v1508
        %v1799 = vpop.f32.mrf.mxu0
        %v1800 = vadd.f32 %v1711, %v1799
        %v1801 = vpop.f32.mrf.mxu0
        %v1802 = vadd.f32 %v1713, %v1801
        %1803 = vmatmul.bf16.gmra.mxu0 %v1510
        %v1804 = vpop.f32.mrf.mxu0
        %v1805 = vadd.f32 %v1716, %v1804
        %v1806 = vpop.f32.mrf.mxu0
        %v1807 = vadd.f32 %v1718, %v1806
        %1808 = vmatmul.bf16.gmra.mxu0 %v1512
        %v1809 = vpop.f32.mrf.mxu0
        %v1810 = vadd.f32 %v1721, %v1809
        %v1811 = vpop.f32.mrf.mxu0
        %v1812 = vadd.f32 %v1723, %v1811
        %1813 = vmatmul.bf16.gmra.mxu0 %v1514
        %v1814 = vpop.f32.mrf.mxu0
        %v1815 = vadd.f32 %v1726, %v1814
        %v1816 = vpop.f32.mrf.mxu0
        %v1817 = vadd.f32 %v1728, %v1816
        %1818 = vmatmul.bf16.gmra.mxu0 %v1516
        %v1819 = vpop.f32.mrf.mxu0
        %v1820 = vadd.f32 %v1731, %v1819
        %v1821 = vpop.f32.mrf.mxu0
        %v1822 = vadd.f32 %v1733, %v1821
        %1823 = vmatmul.bf16.gmra.mxu0 %v1518
        %v1824 = vpop.f32.mrf.mxu0
        %v1825 = vadd.f32 %v1736, %v1824
        %v1826 = vpop.f32.mrf.mxu0
        %v1827 = vadd.f32 %v1738, %v1826
        %1828 = vdwg.mxu0
        %1829 = vst [vmem:[%s362] sm:$0xff] %v1750
        %1830 = vst [vmem:[%s362 + $0x8] sm:$0xff] %v1752
        %1831 = vst [vmem:[%s362 + $0x10] sm:$0xff] %v1755
        %1832 = vst [vmem:[%s362 + $0x18] sm:$0xff] %v1757
        %1833 = vst [vmem:[%s362 + $0x20] sm:$0xff] %v1760
        %1834 = vst [vmem:[%s362 + $0x28] sm:$0xff] %v1762
        %1835 = vst [vmem:[%s362 + $0x30] sm:$0xff] %v1765
        %1836 = vst [vmem:[%s362 + $0x38] sm:$0xff] %v1767
        %1837 = vst [vmem:[%s362 + $0x40] sm:$0xff] %v1770
        %1838 = vst [vmem:[%s362 + $0x48] sm:$0xff] %v1772
        %1839 = vst [vmem:[%s362 + $0x50] sm:$0xff] %v1775
        %1840 = vst [vmem:[%s362 + $0x58] sm:$0xff] %v1777
        %1841 = vst [vmem:[%s362 + $0x60] sm:$0xff] %v1780
        %1842 = vst [vmem:[%s362 + $0x68] sm:$0xff] %v1782
        %1843 = vst [vmem:[%s362 + $0x70] sm:$0xff] %v1785
        %1844 = vst [vmem:[%s362 + $0x78] sm:$0xff] %v1787
        %1845 = vst [vmem:[%s362 + $0x80] sm:$0xff] %v1790
        %1846 = vst [vmem:[%s362 + $0x88] sm:$0xff] %v1792
        %1847 = vst [vmem:[%s362 + $0x90] sm:$0xff] %v1795
        %1848 = vst [vmem:[%s362 + $0x98] sm:$0xff] %v1797
        %1849 = vst [vmem:[%s362 + $0xa0] sm:$0xff] %v1800
        %1850 = vst [vmem:[%s362 + $0xa8] sm:$0xff] %v1802
        %1851 = vst [vmem:[%s362 + $0xb0] sm:$0xff] %v1805
        %1852 = vst [vmem:[%s362 + $0xb8] sm:$0xff] %v1807
        %1853 = vst [vmem:[%s362 + $0xc0] sm:$0xff] %v1810
        %1854 = vst [vmem:[%s362 + $0xc8] sm:$0xff] %v1812
        %1855 = vst [vmem:[%s362 + $0xd0] sm:$0xff] %v1815
        %1856 = vst [vmem:[%s362 + $0xd8] sm:$0xff] %v1817
        %1857 = vst [vmem:[%s362 + $0xe0] sm:$0xff] %v1820
        %1858 = vst [vmem:[%s362 + $0xe8] sm:$0xff] %v1822
        %1859 = vst [vmem:[%s362 + $0xf0] sm:$0xff] %v1825
        %1860 = vst [vmem:[%s362 + $0xf8] sm:$0xff] %v1827
        %s1861 = sand.u32 %s186, 1
        %s1862 = scalar_lea.sflag [#allocation4], %s1861
        %s1863 = sand.u32 %s186, 1
        %s1864 = smul.addr %s1863, 256
        %s1865 = scalar_lea.vmem [#allocation11], %s1864
        // Predicated region
        $region69: #{tpu_custom_call.1} parent=47 // pred_check
          %p1866 = pneg %p196
        $region70: #{tpu_custom_call.1} parent=47 // pred_check_branch
          %1868 = sbr.rel (%p1866) target = $region72
        $region71: #{tpu_custom_call.1} parent=47 // pred_region
          %s1869 = smul.u32 32, %s26
          %1871 = vsyncadd %s1862, 0
          %s1872 = smul.addr %s1869, 8
          %s1873 = scalar_lea.hbm %s7, %s1872
          %s1874 = sshll.u32 %s1865, 4
          %s1875 = int_to_ptr.vmem [resolvable:$true] %s1874
          %s1876 = sshll.u32 %s1873, 4
          %s1877 = int_to_ptr.hbm [resolvable:$true] %s1876
          %1882 = dma.vmem_to_hbm [thread:$0]  %s1875, 4096, %s1877, %s1862, 128, 128, 8
        $region72: #{tpu_custom_call.1} parent=47 // pred_fallthru
          _
      $region48: #{tpu_custom_call.1} parent=5 // pred_fallthru
        _
      %p1883 = scmp.le.s32.totalorder 2, %s21
      // Predicated region
      $region73: #{tpu_custom_call.1} parent=5 // pred_check
        %p1884 = pneg %p1883
      $region74: #{tpu_custom_call.1} parent=5 // pred_check_branch
        %1886 = sbr.rel (%p1884) target = $region76
      $region75: #{tpu_custom_call.1} parent=5 // pred_region
        %s1887 = ssub.s32 %s21, 2
        // Predicated region
        $region77: #{tpu_custom_call.1} parent=75 // pred_check
          %p1888 = pneg %p202
        $region78: #{tpu_custom_call.1} parent=75 // pred_check_branch
          %1890 = sbr.rel (%p1888) target = $region80
        $region79: #{tpu_custom_call.1} parent=75 // pred_region
          %s1891 = sand.u32 %s187, 1
          %s1892 = scalar_lea.sflag [#allocation4], %s1891
          %s1893 = sand.u32 %s187, 1
          %s1894 = smul.addr %s1893, 256
          %s1895 = scalar_lea.vmem [#allocation11], %s1894
          %1897 = dma.done %s1892, 4096
        $region80: #{tpu_custom_call.1} parent=75 // pred_fallthru
          _
      $region76: #{tpu_custom_call.1} parent=5 // pred_fallthru
        _
    $region6: #{tpu_custom_call.1} parent=1 // loop_footer
      %s25 = sadd.s32 1, %s21
    $region7: #{tpu_custom_call.1} parent=1 // loop_footer_branch
      %20 = sbr.rel target = $region3
    $region8: #{tpu_custom_call.1} parent=1 // loop_exit
      _
    %1898 = vsyncpa [#allocation3], 1
    %s1899 = scalar_lea.sflag [#allocation3], 1
    %1900 = vsyncpa %s1899, 1
    %1901 = vsyncpa [#allocation6], 1
    %1902 = vsyncpa [#allocation9], 1
    %1903 = vsyncpa [#allocation4], 1
    %s1904 = scalar_lea.sflag [#allocation4], 1
    %1905 = vsyncpa %s1904, 1

// kernel: tpu_custom_call.1
$region0: #{tpu_custom_call.1}
  #allocation0 [shape = 'u32[]', space=smem, size = 0x4, offset = 0x4, fixed_abs, tag = 'smem constant byte address 0x4 - core index']
  #allocation1 [shape = 'u32[72,128]{1,0:T(1,128)}', space=vmem, size = 0x9000, scoped, tag = 'internal scratch']
  %s0 = inlined_call_operand.hbm [shape: bf16[512,128], index: 0, kind: input, shape index: {}]
  %s1 = inlined_call_operand.hbm [shape: bf16[128,256], index: 1, kind: input, shape index: {}]
  %s2 = inlined_call_operand.hbm [shape: f32[1,256], index: 2, kind: input, shape index: {}]
  %s3 = inlined_call_operand.hbm [shape: bf16[256,256], index: 3, kind: input, shape index: {}]
  %s4 = inlined_call_operand.vmem [shape: f32[1,256], index: 4, kind: input, shape index: {}]
  %s5 = inlined_call_operand.hbm [shape: bf16[256,128], index: 5, kind: input, shape index: {}]
  %s6 = inlined_call_operand.vmem [shape: f32[1,128], index: 6, kind: input, shape index: {}]
  %s7 = inlined_call_operand.hbm [shape: f32[512,128], index: 7, kind: output, shape index: {}]
  %s8 = sld [smem:[#allocation0]]
  $region81: #{tpu_custom_call.1} parent=0
    _
  %s10 = ssub.s32 1, %s8
  %s11 = scalar_select 0, %s10, %s8
  $region1: #{tpu_custom_call.1} parent=0
    #allocation2 [shape = 'u8[131072]{0}', space=vmem, size = 0x20000, scoped, tag = 'input window, operand 0']
    #allocation3 [shape = 's32[2]{0}', space=sflag, size = 0x8, scoped, tag = 'scoped memory for tpu_custom_call.1']
    #allocation4 [shape = 's32[2]{0}', space=sflag, size = 0x8, scoped, tag = 'scoped memory for tpu_custom_call.1']
    #allocation5 [shape = 'u8[65536]{0}', space=vmem, size = 0x10000, scoped, tag = 'input window, operand 1, single buffered']
    #allocation6 [shape = 's32[1]{0}', space=sflag, size = 0x4, scoped, tag = 'scoped memory for tpu_custom_call.1']
    #allocation7 [shape = 'u8[1024]{0}', space=vmem, size = 0x400, scoped, tag = 'input window, operand 2, single buffered']
    #allocation8 [shape = 'u8[131072]{0}', space=vmem, size = 0x20000, scoped, tag = 'input window, operand 3, single buffered']
    #allocation9 [shape = 's32[1]{0}', space=sflag, size = 0x4, scoped, tag = 'scoped memory for tpu_custom_call.1']
    #allocation10 [shape = 'u8[65536]{0}', space=vmem, size = 0x10000, scoped, tag = 'input window, operand 5, single buffered']
    #allocation11 [shape = 'u8[262144]{0}', space=vmem, size = 0x40000, scoped, tag = 'output window, operand 0']
    %12 = vsyncpa [#allocation3], 0
    %s13 = scalar_lea.sflag [#allocation3], 1
    %14 = vsyncpa %s13, 0
    %15 = vsyncpa [#allocation6], 0
    %16 = vsyncpa [#allocation9], 0
    %17 = vsyncpa [#allocation4], 0
    %s18 = scalar_lea.sflag [#allocation4], 1
    %19 = vsyncpa %s18, 0
    loop: start=0, step=1, limit=4
    $region2: #{tpu_custom_call.1} parent=1 // loop_pre_header
      _
    $region3: #{tpu_custom_call.1} parent=1 // loop_header
      %s21 = sphi 0, %s25
      %p22 = scmp.ge.s32.totalorder %s21, 4
      %s31 = sphi 0, %s33
      %s34 = sphi 0, %s31
      %s35 = sphi 0, %s34
      %s51 = sphi 0, %s35
      %s55 = sphi 0, %s55
      %s57 = sphi 0, %s55
      %s58 = sphi 0, %s57
      %s72 = sphi 0, %s58
      %s76 = sphi 0, %s76
      %s78 = sphi 0, %s76
      %s79 = sphi 0, %s78
      %s93 = sphi 0, %s79
      %s97 = sphi 0, %s97
      %s99 = sphi 0, %s97
      %s100 = sphi 0, %s99
      %s114 = sphi 0, %s100
      %s118 = sphi 0, %s118
      %s120 = sphi 0, %s118
      %s121 = sphi 0, %s120
      %s135 = sphi 0, %s121
      %s139 = sphi 0, %s139
      %s141 = sphi 0, %s139
      %s142 = sphi 0, %s141
      %s156 = sphi 0, %s142
      %s160 = sphi 0, %s160
      %s162 = sphi 0, %s160
      %s163 = sphi 0, %s162
      %s177 = sphi 0, %s163
      %s183 = sphi 0, %s185
      %s186 = sphi 0, %s183
      %s187 = sphi 0, %s186
      %s203 = sphi 0, %s187
    $region4: #{tpu_custom_call.1} parent=1 // loop_header_branch
      %24 = sbr.rel (%p22) target = $region8
    $region5: #{tpu_custom_call.1} parent=1 // loop_body
      %s26 = ssub.s32 %s21, 1
      %s27 = ssub.s32 %s21, 2
      %s28 = sadd.s32 %s21, 1
      %s29 = ssub.s32 %s21, %s28
      %p30 = scmp.eq.s32.totalorder %s29, 0
      %s32 = sadd.s32 %s31, 1
      %s33 = scalar_select %p30, %s31, %s32
      %p36 = pneg %p30
      %p37 = scmp.eq.s32.totalorder %s21, 1
      %p38 = por %p36, %p37
      %p39 = scmp.ne.s32.totalorder %s31, %s34
      %p40 = scmp.eq.s32.totalorder %s21, 0
      %p41 = por %p39, %p40
      %p42 = scmp.ne.s32.totalorder %s31, %s34
      %p43 = scmp.eq.s32.totalorder %s26, 1
      %p44 = por %p42, %p43
      %p45 = scmp.ne.s32.totalorder %s34, %s35
      %p46 = scmp.eq.s32.totalorder %s26, 0
      %p47 = por %p45, %p46
      %p48 = scmp.ne.s32.totalorder %s34, %s35
      %p49 = scmp.eq.s32.totalorder %s27, 1
      %p50 = por %p48, %p49
      %p52 = scmp.ne.s32.totalorder %s35, %s51
      %p53 = scmp.eq.s32.totalorder %s27, 0
      %p54 = por %p52, %p53
      %s56 = sadd.s32 %s55, 1
      %p59 = scmp.eq.s32.totalorder %s21, 1
      %p60 = scmp.ne.s32.totalorder %s55, %s57
      %p61 = scmp.eq.s32.totalorder %s21, 0
      %p62 = por %p60, %p61
      %p63 = scmp.ne.s32.totalorder %s55, %s57
      %p64 = scmp.eq.s32.totalorder %s26, 1
      %p65 = por %p63, %p64
      %p66 = scmp.ne.s32.totalorder %s57, %s58
      %p67 = scmp.eq.s32.totalorder %s26, 0
      %p68 = por %p66, %p67
      %p69 = scmp.ne.s32.totalorder %s57, %s58
      %p70 = scmp.eq.s32.totalorder %s27, 1
      %p71 = por %p69, %p70
      %p73 = scmp.ne.s32.totalorder %s58, %s72
      %p74 = scmp.eq.s32.totalorder %s27, 0
      %p75 = por %p73, %p74
      %s77 = sadd.s32 %s76, 1
      %p80 = scmp.eq.s32.totalorder %s21, 1
      %p81 = scmp.ne.s32.totalorder %s76, %s78
      %p82 = scmp.eq.s32.totalorder %s21, 0
      %p83 = por %p81, %p82
      %p84 = scmp.ne.s32.totalorder %s76, %s78
      %p85 = scmp.eq.s32.totalorder %s26, 1
      %p86 = por %p84, %p85
      %p87 = scmp.ne.s32.totalorder %s78, %s79
      %p88 = scmp.eq.s32.totalorder %s26, 0
      %p89 = por %p87, %p88
      %p90 = scmp.ne.s32.totalorder %s78, %s79
      %p91 = scmp.eq.s32.totalorder %s27, 1
      %p92 = por %p90, %p91
      %p94 = scmp.ne.s32.totalorder %s79, %s93
      %p95 = scmp.eq.s32.totalorder %s27, 0
      %p96 = por %p94, %p95
      %s98 = sadd.s32 %s97, 1
      %p101 = scmp.eq.s32.totalorder %s21, 1
      %p102 = scmp.ne.s32.totalorder %s97, %s99
      %p103 = scmp.eq.s32.totalorder %s21, 0
      %p104 = por %p102, %p103
      %p105 = scmp.ne.s32.totalorder %s97, %s99
      %p106 = scmp.eq.s32.totalorder %s26, 1
      %p107 = por %p105, %p106
      %p108 = scmp.ne.s32.totalorder %s99, %s100
      %p109 = scmp.eq.s32.totalorder %s26, 0
      %p110 = por %p108, %p109
      %p111 = scmp.ne.s32.totalorder %s99, %s100
      %p112 = scmp.eq.s32.totalorder %s27, 1
      %p113 = por %p111, %p112
      %p115 = scmp.ne.s32.totalorder %s100, %s114
      %p116 = scmp.eq.s32.totalorder %s27, 0
      %p117 = por %p115, %p116
      %s119 = sadd.s32 %s118, 1
      %p122 = scmp.eq.s32.totalorder %s21, 1
      %p123 = scmp.ne.s32.totalorder %s118, %s120
      %p124 = scmp.eq.s32.totalorder %s21, 0
      %p125 = por %p123, %p124
      %p126 = scmp.ne.s32.totalorder %s118, %s120
      %p127 = scmp.eq.s32.totalorder %s26, 1
      %p128 = por %p126, %p127
      %p129 = scmp.ne.s32.totalorder %s120, %s121
      %p130 = scmp.eq.s32.totalorder %s26, 0
      %p131 = por %p129, %p130
      %p132 = scmp.ne.s32.totalorder %s120, %s121
      %p133 = scmp.eq.s32.totalorder %s27, 1
      %p134 = por %p132, %p133
      %p136 = scmp.ne.s32.totalorder %s121, %s135
      %p137 = scmp.eq.s32.totalorder %s27, 0
      %p138 = por %p136, %p137
      %s140 = sadd.s32 %s139, 1
      %p143 = scmp.eq.s32.totalorder %s21, 1
      %p144 = scmp.ne.s32.totalorder %s139, %s141
      %p145 = scmp.eq.s32.totalorder %s21, 0
      %p146 = por %p144, %p145
      %p147 = scmp.ne.s32.totalorder %s139, %s141
      %p148 = scmp.eq.s32.totalorder %s26, 1
      %p149 = por %p147, %p148
      %p150 = scmp.ne.s32.totalorder %s141, %s142
      %p151 = scmp.eq.s32.totalorder %s26, 0
      %p152 = por %p150, %p151
      %p153 = scmp.ne.s32.totalorder %s141, %s142
      %p154 = scmp.eq.s32.totalorder %s27, 1
      %p155 = por %p153, %p154
      %p157 = scmp.ne.s32.totalorder %s142, %s156
      %p158 = scmp.eq.s32.totalorder %s27, 0
      %p159 = por %p157, %p158
      %s161 = sadd.s32 %s160, 1
      %p164 = scmp.eq.s32.totalorder %s21, 1
      %p165 = scmp.ne.s32.totalorder %s160, %s162
      %p166 = scmp.eq.s32.totalorder %s21, 0
      %p167 = por %p165, %p166
      %p168 = scmp.ne.s32.totalorder %s160, %s162
      %p169 = scmp.eq.s32.totalorder %s26, 1
      %p170 = por %p168, %p169
      %p171 = scmp.ne.s32.totalorder %s162, %s163
      %p172 = scmp.eq.s32.totalorder %s26, 0
      %p173 = por %p171, %p172
      %p174 = scmp.ne.s32.totalorder %s162, %s163
      %p175 = scmp.eq.s32.totalorder %s27, 1
      %p176 = por %p174, %p175
      %p178 = scmp.ne.s32.totalorder %s163, %s177
      %p179 = scmp.eq.s32.totalorder %s27, 0
      %p180 = por %p178, %p179
      %s181 = ssub.s32 %s21, %s28
      %p182 = scmp.eq.s32.totalorder %s181, 0
      %s184 = sadd.s32 %s183, 1
      %s185 = scalar_select %p182, %s183, %s184
      %p188 = pneg %p182
      %p189 = scmp.eq.s32.totalorder %s21, 1
      %p190 = por %p188, %p189
      %p191 = scmp.ne.s32.totalorder %s183, %s186
      %p192 = scmp.eq.s32.totalorder %s21, 0
      %p193 = por %p191, %p192
      %p194 = scmp.ne.s32.totalorder %s183, %s186
      %p195 = scmp.eq.s32.totalorder %s26, 1
      %p196 = por %p194, %p195
      %p197 = scmp.ne.s32.totalorder %s186, %s187
      %p198 = scmp.eq.s32.totalorder %s26, 0
      %p199 = por %p197, %p198
      %p200 = scmp.ne.s32.totalorder %s186, %s187
      %p201 = scmp.eq.s32.totalorder %s27, 1
      %p202 = por %p200, %p201
      %p204 = scmp.ne.s32.totalorder %s187, %s203
      %p205 = scmp.eq.s32.totalorder %s27, 0
      %p206 = por %p204, %p205
      %p207 = scmp.le.s32.totalorder 1, %s21
      %p208 = scmp.lt.s32.totalorder %s21, 3
      %p209 = pnand %p207, %p208
      %p210 = pneg %p209
      // Predicated region
      $region9: #{tpu_custom_call.1} parent=5 // pred_check
        _
      $region10: #{tpu_custom_call.1} parent=5 // pred_check_branch
        %212 = sbr.rel (%p209) target = $region12
      $region11: #{tpu_custom_call.1} parent=5 // pred_region
        %s213 = ssub.s32 %s21, 1
        // Predicated region
        $region13: #{tpu_custom_call.1} parent=11 // pred_check
          %p214 = pneg %p68
        $region14: #{tpu_custom_call.1} parent=11 // pred_check_branch
          %216 = sbr.rel (%p214) target = $region16
        $region15: #{tpu_custom_call.1} parent=11 // pred_region
          %218 = vsyncadd [#allocation6], 0
          %s219 = sshll.u32 %s1, 4
          %s220 = int_to_ptr.hbm [resolvable:$true] %s219
          %s221 = sshll.u32 [#allocation5], 4
          %s222 = int_to_ptr.vmem [resolvable:$true] %s221
          %227 = dma.hbm_to_vmem [thread:$0]  %s220, 2048, %s222, [#allocation6], 128, 128, 8
        $region16: #{tpu_custom_call.1} parent=11 // pred_fallthru
          _
        // Predicated region
        $region17: #{tpu_custom_call.1} parent=11 // pred_check
          %p228 = pneg %p89
        $region18: #{tpu_custom_call.1} parent=11 // pred_check_branch
          %230 = sbr.rel (%p228) target = $region20
        $region19: #{tpu_custom_call.1} parent=11 // pred_region
          %232 = vsyncadd [#allocation6], 0
          %s234 = sshll.u32 %s2, 4
          %s235 = int_to_ptr.hbm [resolvable:$true] %s234
          %s236 = sshll.u32 [#allocation7], 4
          %s237 = int_to_ptr.vmem [resolvable:$true] %s236
          %239 = dma.hbm_to_vmem [thread:$0]  %s235, 32, %s237, [#allocation6]
        $region20: #{tpu_custom_call.1} parent=11 // pred_fallthru
          _
        // Predicated region
        $region21: #{tpu_custom_call.1} parent=11 // pred_check
          %p240 = pneg %p110
        $region22: #{tpu_custom_call.1} parent=11 // pred_check_branch
          %242 = sbr.rel (%p240) target = $region24
        $region23: #{tpu_custom_call.1} parent=11 // pred_region
          %244 = vsyncadd [#allocation9], 0
          %s245 = sshll.u32 %s3, 4
          %s246 = int_to_ptr.hbm [resolvable:$true] %s245
          %s247 = sshll.u32 [#allocation8], 4
          %s248 = int_to_ptr.vmem [resolvable:$true] %s247
          %253 = dma.hbm_to_vmem [thread:$0]  %s246, 4096, %s248, [#allocation9], 128, 128, 8
        $region24: #{tpu_custom_call.1} parent=11 // pred_fallthru
          _
        // Predicated region
        $region25: #{tpu_custom_call.1} parent=11 // pred_check
          %p254 = pneg %p131
        $region26: #{tpu_custom_call.1} parent=11 // pred_check_branch
          %256 = sbr.rel (%p254) target = $region28
        $region27: #{tpu_custom_call.1} parent=11 // pred_region
          _
        $region28: #{tpu_custom_call.1} parent=11 // pred_fallthru
          _
        // Predicated region
        $region29: #{tpu_custom_call.1} parent=11 // pred_check
          %p257 = pneg %p152
        $region30: #{tpu_custom_call.1} parent=11 // pred_check_branch
          %259 = sbr.rel (%p257) target = $region32
        $region31: #{tpu_custom_call.1} parent=11 // pred_region
          %261 = vsyncadd [#allocation9], 0
          %s262 = sshll.u32 %s5, 4
          %s263 = int_to_ptr.hbm [resolvable:$true] %s262
          %s264 = sshll.u32 [#allocation10], 4
          %s265 = int_to_ptr.vmem [resolvable:$true] %s264
          %270 = dma.hbm_to_vmem [thread:$0]  %s263, 2048, %s265, [#allocation9], 64, 64, 4
        $region32: #{tpu_custom_call.1} parent=11 // pred_fallthru
          _
        // Predicated region
        $region33: #{tpu_custom_call.1} parent=11 // pred_check
          %p271 = pneg %p173
        $region34: #{tpu_custom_call.1} parent=11 // pred_check_branch
          %273 = sbr.rel (%p271) target = $region36
        $region35: #{tpu_custom_call.1} parent=11 // pred_region
          _
        $region36: #{tpu_custom_call.1} parent=11 // pred_fallthru
          _
      $region12: #{tpu_custom_call.1} parent=5 // pred_fallthru
        _
      %p274 = scmp.lt.s32.totalorder %s21, 2
      // Predicated region
      $region37: #{tpu_custom_call.1} parent=5 // pred_check
        %p275 = pneg %p274
      $region38: #{tpu_custom_call.1} parent=5 // pred_check_branch
        %277 = sbr.rel (%p275) target = $region40
      $region39: #{tpu_custom_call.1} parent=5 // pred_region
        // Predicated region
        $region41: #{tpu_custom_call.1} parent=39 // pred_check
          %p278 = pneg %p41
        $region42: #{tpu_custom_call.1} parent=39 // pred_check_branch
          %280 = sbr.rel (%p278) target = $region44
        $region43: #{tpu_custom_call.1} parent=39 // pred_region
          %s281 = sand.u32 %s31, 1
          %s282 = scalar_lea.sflag [#allocation3], %s281
          %s283 = sand.u32 %s31, 1
          %s284 = smul.addr %s283, 128
          %s285 = scalar_lea.vmem [#allocation2], %s284
          %s286 = smul.u32 32, %s21
          %288 = vsyncadd %s282, 0
          %s289 = smul.addr %s286, 4
          %s290 = scalar_lea.hbm %s0, %s289
          %s291 = sshll.u32 %s290, 4
          %s292 = int_to_ptr.hbm [resolvable:$true] %s291
          %s293 = sshll.u32 %s285, 4
          %s294 = int_to_ptr.vmem [resolvable:$true] %s293
          %299 = dma.hbm_to_vmem [thread:$0]  %s292, 2048, %s294, %s282, 64, 64, 4
        $region44: #{tpu_custom_call.1} parent=39 // pred_fallthru
          _
      $region40: #{tpu_custom_call.1} parent=5 // pred_fallthru
        _
      %p300 = scmp.le.s32.totalorder 1, %s21
      %p301 = scmp.lt.s32.totalorder %s21, 3
      %p302 = pnand %p300, %p301
      %p303 = pneg %p302
      // Predicated region
      $region45: #{tpu_custom_call.1} parent=5 // pred_check
        _
      $region46: #{tpu_custom_call.1} parent=5 // pred_check_branch
        %305 = sbr.rel (%p302) target = $region48
      $region47: #{tpu_custom_call.1} parent=5 // pred_region
        %s306 = ssub.s32 %s21, 1
        %s307 = sand.u32 %s34, 1
        %s308 = scalar_lea.sflag [#allocation3], %s307
        %s309 = sand.u32 %s34, 1
        %s310 = smul.addr %s309, 128
        %s311 = scalar_lea.vmem [#allocation2], %s310
        // Predicated region
        $region49: #{tpu_custom_call.1} parent=47 // pred_check
          %p312 = pneg %p47
        $region50: #{tpu_custom_call.1} parent=47 // pred_check_branch
          %314 = sbr.rel (%p312) target = $region52
        $region51: #{tpu_custom_call.1} parent=47 // pred_region
          %316 = dma.done %s308, 2048
        $region52: #{tpu_custom_call.1} parent=47 // pred_fallthru
          _
        // Predicated region
        $region53: #{tpu_custom_call.1} parent=47 // pred_check
          %p317 = pneg %p68
        $region54: #{tpu_custom_call.1} parent=47 // pred_check_branch
          %319 = sbr.rel (%p317) target = $region56
        $region55: #{tpu_custom_call.1} parent=47 // pred_region
          %321 = dma.done [#allocation6], 2048
        $region56: #{tpu_custom_call.1} parent=47 // pred_fallthru
          _
        // Predicated region
        $region57: #{tpu_custom_call.1} parent=47 // pred_check
          %p322 = pneg %p89
        $region58: #{tpu_custom_call.1} parent=47 // pred_check_branch
          %324 = sbr.rel (%p322) target = $region60
        $region59: #{tpu_custom_call.1} parent=47 // pred_region
          %326 = dma.done [#allocation6], 32
        $region60: #{tpu_custom_call.1} parent=47 // pred_fallthru
          _
        // Predicated region
        $region61: #{tpu_custom_call.1} parent=47 // pred_check
          %p327 = pneg %p110
        $region62: #{tpu_custom_call.1} parent=47 // pred_check_branch
          %329 = sbr.rel (%p327) target = $region64
        $region63: #{tpu_custom_call.1} parent=47 // pred_region
          %331 = dma.done [#allocation9], 4096
        $region64: #{tpu_custom_call.1} parent=47 // pred_fallthru
          _
        // Predicated region
        $region65: #{tpu_custom_call.1} parent=47 // pred_check
          %p332 = pneg %p152
        $region66: #{tpu_custom_call.1} parent=47 // pred_check_branch
          %334 = sbr.rel (%p332) target = $region68
        $region67: #{tpu_custom_call.1} parent=47 // pred_region
          %336 = dma.done [#allocation9], 2048
        $region68: #{tpu_custom_call.1} parent=47 // pred_fallthru
          _
        %s337 = sand.u32 %s34, 1
        %s338 = scalar_lea.sflag [#allocation3], %s337
        %s339 = sand.u32 %s34, 1
        %s340 = smul.addr %s339, 128
        %s341 = scalar_lea.vmem [#allocation2], %s340
        %p342 = pneg %p47
        %p343 = pneg %p44
        %p344 = pneg %p68
        %p345 = pneg %p65
        %p346 = pneg %p89
        %p347 = pneg %p86
        %p348 = pneg %p110
        %p349 = pneg %p107
        %p350 = pneg %p131
        %p351 = pneg %p128
        %p352 = pneg %p152
        %p353 = pneg %p149
        %p354 = pneg %p173
        %p355 = pneg %p170
        %p356 = pneg %p199
        %p357 = pneg %p196
        %s358 = sand.u32 %s186, 1
        %s359 = scalar_lea.sflag [#allocation4], %s358
        %s360 = sand.u32 %s186, 1
        %s361 = smul.addr %s360, 256
        %s362 = scalar_lea.vmem [#allocation11], %s361
        %s363 = smul.u32 32, %s26
        %s364 = smul.u32 32, %s26
        %v365 = vld [vmem:[%s311] sm:$0xf]
        %v366 = vld [vmem:[%s311 + $0x4] sm:$0xf]
        %v367 = vld [vmem:[%s311 + $0x8] sm:$0xf]
        %v368 = vld [vmem:[%s311 + $0xc] sm:$0xf]
        %v369 = vld [vmem:[%s311 + $0x10] sm:$0xf]
        %v370 = vld [vmem:[%s311 + $0x14] sm:$0xf]
        %v371 = vld [vmem:[%s311 + $0x18] sm:$0xf]
        %v372 = vld [vmem:[%s311 + $0x1c] sm:$0xf]
        %v373 = vld [vmem:[%s311 + $0x20] sm:$0xf]
        %v374 = vld [vmem:[%s311 + $0x24] sm:$0xf]
        %v375 = vld [vmem:[%s311 + $0x28] sm:$0xf]
        %v376 = vld [vmem:[%s311 + $0x2c] sm:$0xf]
        %v377 = vld [vmem:[%s311 + $0x30] sm:$0xf]
        %v378 = vld [vmem:[%s311 + $0x34] sm:$0xf]
        %v379 = vld [vmem:[%s311 + $0x38] sm:$0xf]
        %v380 = vld [vmem:[%s311 + $0x3c] sm:$0xf]
        %v381 = vld [vmem:[%s311 + $0x40] sm:$0xf]
        %v382 = vld [vmem:[%s311 + $0x44] sm:$0xf]
        %v383 = vld [vmem:[%s311 + $0x48] sm:$0xf]
        %v384 = vld [vmem:[%s311 + $0x4c] sm:$0xf]
        %v385 = vld [vmem:[%s311 + $0x50] sm:$0xf]
        %v386 = vld [vmem:[%s311 + $0x54] sm:$0xf]
        %v387 = vld [vmem:[%s311 + $0x58] sm:$0xf]
        %v388 = vld [vmem:[%s311 + $0x5c] sm:$0xf]
        %v389 = vld [vmem:[%s311 + $0x60] sm:$0xf]
        %v390 = vld [vmem:[%s311 + $0x64] sm:$0xf]
        %v391 = vld [vmem:[%s311 + $0x68] sm:$0xf]
        %v392 = vld [vmem:[%s311 + $0x6c] sm:$0xf]
        %v393 = vld [vmem:[%s311 + $0x70] sm:$0xf]
        %v394 = vld [vmem:[%s311 + $0x74] sm:$0xf]
        %v395 = vld [vmem:[%s311 + $0x78] sm:$0xf]
        %v396 = vld [vmem:[%s311 + $0x7c] sm:$0xf]
        %v397 = vld [vmem:[#allocation5] sm:$0xff]
        %v398 = vld [vmem:[#allocation5 + $0x8] sm:$0xff]
        %v399 = vld [vmem:[#allocation5 + $0x10] sm:$0xff]
        %v400 = vld [vmem:[#allocation5 + $0x18] sm:$0xff]
        %v401 = vld [vmem:[#allocation5 + $0x20] sm:$0xff]
        %v402 = vld [vmem:[#allocation5 + $0x28] sm:$0xff]
        %v403 = vld [vmem:[#allocation5 + $0x30] sm:$0xff]
        %v404 = vld [vmem:[#allocation5 + $0x38] sm:$0xff]
        %v405 = vld [vmem:[#allocation5 + $0x40] sm:$0xff]
        %v406 = vld [vmem:[#allocation5 + $0x48] sm:$0xff]
        %v407 = vld [vmem:[#allocation5 + $0x50] sm:$0xff]
        %v408 = vld [vmem:[#allocation5 + $0x58] sm:$0xff]
        %v409 = vld [vmem:[#allocation5 + $0x60] sm:$0xff]
        %v410 = vld [vmem:[#allocation5 + $0x68] sm:$0xff]
        %v411 = vld [vmem:[#allocation5 + $0x70] sm:$0xff]
        %v412 = vld [vmem:[#allocation5 + $0x78] sm:$0xff]
        %v413 = vld [vmem:[#allocation7] sm:$0x3]
        %v415 = vperm.slane %v413, 0
        %v416 = vperm.slane %v413, 1
        %v451 = vunpack.c.l.b16 %v365
        %v452 = vunpack.c.l.b16 %v366
        %v453 = vunpack.c.l.b16 %v367
        %v454 = vunpack.c.l.b16 %v368
        %v455 = vunpack.c.l.b16 %v369
        %v456 = vunpack.c.l.b16 %v370
        %v457 = vunpack.c.l.b16 %v371
        %v458 = vunpack.c.l.b16 %v372
        %v459 = vunpack.c.l.b16 %v373
        %v460 = vunpack.c.l.b16 %v374
        %v461 = vunpack.c.l.b16 %v375
        %v462 = vunpack.c.l.b16 %v376
        %v463 = vunpack.c.l.b16 %v377
        %v464 = vunpack.c.l.b16 %v378
        %v465 = vunpack.c.l.b16 %v379
        %v466 = vunpack.c.l.b16 %v380
        %v467 = vunpack.c.l.b16 %v381
        %v468 = vunpack.c.l.b16 %v382
        %v469 = vunpack.c.l.b16 %v383
        %v470 = vunpack.c.l.b16 %v384
        %v471 = vunpack.c.l.b16 %v385
        %v472 = vunpack.c.l.b16 %v386
        %v473 = vunpack.c.l.b16 %v387
        %v474 = vunpack.c.l.b16 %v388
        %v475 = vunpack.c.l.b16 %v389
        %v476 = vunpack.c.l.b16 %v390
        %v477 = vunpack.c.l.b16 %v391
        %v478 = vunpack.c.l.b16 %v392
        %v479 = vunpack.c.l.b16 %v393
        %v480 = vunpack.c.l.b16 %v394
        %v481 = vunpack.c.l.b16 %v395
        %v482 = vunpack.c.l.b16 %v396
        %v483 = vpack.c.b16 %v452, %v451
        %v484 = vpack.c.b16 %v454, %v453
        %v485 = vpack.c.b16 %v456, %v455
        %v486 = vpack.c.b16 %v458, %v457
        %v487 = vpack.c.b16 %v460, %v459
        %v488 = vpack.c.b16 %v462, %v461
        %v489 = vpack.c.b16 %v464, %v463
        %v490 = vpack.c.b16 %v466, %v465
        %v491 = vpack.c.b16 %v468, %v467
        %v492 = vpack.c.b16 %v470, %v469
        %v493 = vpack.c.b16 %v472, %v471
        %v494 = vpack.c.b16 %v474, %v473
        %v495 = vpack.c.b16 %v476, %v475
        %v496 = vpack.c.b16 %v478, %v477
        %v497 = vpack.c.b16 %v480, %v479
        %v498 = vpack.c.b16 %v482, %v481
        %v531 = vunpack.c.l.b16 %v397
        %v532 = vunpack.c.h.b16 %v397
        %v533 = vunpack.c.l.b16 %v398
        %v534 = vunpack.c.h.b16 %v398
        %v535 = vunpack.c.l.b16 %v399
        %v536 = vunpack.c.h.b16 %v399
        %v537 = vunpack.c.l.b16 %v400
        %v538 = vunpack.c.h.b16 %v400
        %v539 = vunpack.c.l.b16 %v401
        %v540 = vunpack.c.h.b16 %v401
        %v541 = vunpack.c.l.b16 %v402
        %v542 = vunpack.c.h.b16 %v402
        %v543 = vunpack.c.l.b16 %v403
        %v544 = vunpack.c.h.b16 %v403
        %v545 = vunpack.c.l.b16 %v404
        %v546 = vunpack.c.h.b16 %v404
        %v547 = vunpack.c.l.b16 %v405
        %v548 = vunpack.c.h.b16 %v405
        %v549 = vunpack.c.l.b16 %v406
        %v550 = vunpack.c.h.b16 %v406
        %v551 = vunpack.c.l.b16 %v407
        %v552 = vunpack.c.h.b16 %v407
        %v553 = vunpack.c.l.b16 %v408
        %v554 = vunpack.c.h.b16 %v408
        %v555 = vunpack.c.l.b16 %v409
        %v556 = vunpack.c.h.b16 %v409
        %v557 = vunpack.c.l.b16 %v410
        %v558 = vunpack.c.h.b16 %v410
        %v559 = vunpack.c.l.b16 %v411
        %v560 = vunpack.c.h.b16 %v411
        %v561 = vunpack.c.l.b16 %v412
        %v562 = vunpack.c.h.b16 %v412
        %v563 = vpack.c.b16 %v533, %v531
        %v564 = vpack.c.b16 %v534, %v532
        %v565 = vpack.c.b16 %v537, %v535
        %v566 = vpack.c.b16 %v538, %v536
        %v567 = vpack.c.b16 %v541, %v539
        %v568 = vpack.c.b16 %v542, %v540
        %v569 = vpack.c.b16 %v545, %v543
        %v570 = vpack.c.b16 %v546, %v544
        %v571 = vpack.c.b16 %v549, %v547
        %v572 = vpack.c.b16 %v550, %v548
        %v573 = vpack.c.b16 %v553, %v551
        %v574 = vpack.c.b16 %v554, %v552
        %v575 = vpack.c.b16 %v557, %v555
        %v576 = vpack.c.b16 %v558, %v556
        %v577 = vpack.c.b16 %v561, %v559
        %v578 = vpack.c.b16 %v562, %v560
        %595 = vmatpush.bf16.msra.mxu0 %v577
        %596 = vmatpush.bf16.msra.mxu0 %v575
        %597 = vmatpush.bf16.msra.mxu0 %v573
        %598 = vmatpush.bf16.msra.mxu0 %v571
        %599 = vmatpush.bf16.msra.mxu0 %v569
        %600 = vmatpush.bf16.msra.mxu0 %v567
        %601 = vmatpush.bf16.msra.mxu0 %v565
        %602 = vmatpush.bf16.msra.mxu0 %v563
        %603 = vmatmul.bf16.gmra.mxu0 %v483
        %v604 = vpop.f32.mrf.mxu0
        %v605 = vadd.f32 %v415, %v604
        %v606 = vpop.f32.mrf.mxu0
        %v607 = vadd.f32 %v415, %v606
        %608 = vmatmul.bf16.gmra.mxu0 %v484
        %v609 = vpop.f32.mrf.mxu0
        %v610 = vadd.f32 %v415, %v609
        %v611 = vpop.f32.mrf.mxu0
        %v612 = vadd.f32 %v415, %v611
        %613 = vmatmul.bf16.gmra.mxu0 %v485
        %v614 = vpop.f32.mrf.mxu0
        %v615 = vadd.f32 %v415, %v614
        %v616 = vpop.f32.mrf.mxu0
        %v617 = vadd.f32 %v415, %v616
        %618 = vmatmul.bf16.gmra.mxu0 %v486
        %v619 = vpop.f32.mrf.mxu0
        %v620 = vadd.f32 %v415, %v619
        %v621 = vpop.f32.mrf.mxu0
        %v622 = vadd.f32 %v415, %v621
        %623 = vmatmul.bf16.gmra.mxu0 %v487
        %v624 = vpop.f32.mrf.mxu0
        %v625 = vadd.f32 %v415, %v624
        %v626 = vpop.f32.mrf.mxu0
        %v627 = vadd.f32 %v415, %v626
        %628 = vmatmul.bf16.gmra.mxu0 %v488
        %v629 = vpop.f32.mrf.mxu0
        %v630 = vadd.f32 %v415, %v629
        %v631 = vpop.f32.mrf.mxu0
        %v632 = vadd.f32 %v415, %v631
        %633 = vmatmul.bf16.gmra.mxu0 %v489
        %v634 = vpop.f32.mrf.mxu0
        %v635 = vadd.f32 %v415, %v634
        %v636 = vpop.f32.mrf.mxu0
        %v637 = vadd.f32 %v415, %v636
        %638 = vmatmul.bf16.gmra.mxu0 %v490
        %v639 = vpop.f32.mrf.mxu0
        %v640 = vadd.f32 %v415, %v639
        %v641 = vpop.f32.mrf.mxu0
        %v642 = vadd.f32 %v415, %v641
        %643 = vmatmul.bf16.gmra.mxu0 %v491
        %v644 = vpop.f32.mrf.mxu0
        %v645 = vadd.f32 %v415, %v644
        %v646 = vpop.f32.mrf.mxu0
        %v647 = vadd.f32 %v415, %v646
        %648 = vmatmul.bf16.gmra.mxu0 %v492
        %v649 = vpop.f32.mrf.mxu0
        %v650 = vadd.f32 %v415, %v649
        %v651 = vpop.f32.mrf.mxu0
        %v652 = vadd.f32 %v415, %v651
        %653 = vmatmul.bf16.gmra.mxu0 %v493
        %v654 = vpop.f32.mrf.mxu0
        %v655 = vadd.f32 %v415, %v654
        %v656 = vpop.f32.mrf.mxu0
        %v657 = vadd.f32 %v415, %v656
        %658 = vmatmul.bf16.gmra.mxu0 %v494
        %v659 = vpop.f32.mrf.mxu0
        %v660 = vadd.f32 %v415, %v659
        %v661 = vpop.f32.mrf.mxu0
        %v662 = vadd.f32 %v415, %v661
        %663 = vmatmul.bf16.gmra.mxu0 %v495
        %v664 = vpop.f32.mrf.mxu0
        %v665 = vadd.f32 %v415, %v664
        %v666 = vpop.f32.mrf.mxu0
        %v667 = vadd.f32 %v415, %v666
        %668 = vmatmul.bf16.gmra.mxu0 %v496
        %v669 = vpop.f32.mrf.mxu0
        %v670 = vadd.f32 %v415, %v669
        %v671 = vpop.f32.mrf.mxu0
        %v672 = vadd.f32 %v415, %v671
        %673 = vmatmul.bf16.gmra.mxu0 %v497
        %v674 = vpop.f32.mrf.mxu0
        %v675 = vadd.f32 %v415, %v674
        %v676 = vpop.f32.mrf.mxu0
        %v677 = vadd.f32 %v415, %v676
        %678 = vmatmul.bf16.gmra.mxu0 %v498
        %v679 = vpop.f32.mrf.mxu0
        %v680 = vadd.f32 %v415, %v679
        %v681 = vpop.f32.mrf.mxu0
        %v682 = vadd.f32 %v415, %v681
        %683 = vdwg.mxu0
        %684 = vmatpush.bf16.msra.mxu0 %v578
        %685 = vmatpush.bf16.msra.mxu0 %v576
        %686 = vmatpush.bf16.msra.mxu0 %v574
        %687 = vmatpush.bf16.msra.mxu0 %v572
        %688 = vmatpush.bf16.msra.mxu0 %v570
        %689 = vmatpush.bf16.msra.mxu0 %v568
        %690 = vmatpush.bf16.msra.mxu0 %v566
        %691 = vmatpush.bf16.msra.mxu0 %v564
        %692 = vmatmul.bf16.gmra.mxu0 %v483
        %v693 = vpop.f32.mrf.mxu0
        %v694 = vadd.f32 %v416, %v693
        %v695 = vpop.f32.mrf.mxu0
        %v696 = vadd.f32 %v416, %v695
        %697 = vmatmul.bf16.gmra.mxu0 %v484
        %v698 = vpop.f32.mrf.mxu0
        %v699 = vadd.f32 %v416, %v698
        %v700 = vpop.f32.mrf.mxu0
        %v701 = vadd.f32 %v416, %v700
        %702 = vmatmul.bf16.gmra.mxu0 %v485
        %v703 = vpop.f32.mrf.mxu0
        %v704 = vadd.f32 %v416, %v703
        %v705 = vpop.f32.mrf.mxu0
        %v706 = vadd.f32 %v416, %v705
        %707 = vmatmul.bf16.gmra.mxu0 %v486
        %v708 = vpop.f32.mrf.mxu0
        %v709 = vadd.f32 %v416, %v708
        %v710 = vpop.f32.mrf.mxu0
        %v711 = vadd.f32 %v416, %v710
        %712 = vmatmul.bf16.gmra.mxu0 %v487
        %v713 = vpop.f32.mrf.mxu0
        %v714 = vadd.f32 %v416, %v713
        %v715 = vpop.f32.mrf.mxu0
        %v716 = vadd.f32 %v416, %v715
        %717 = vmatmul.bf16.gmra.mxu0 %v488
        %v718 = vpop.f32.mrf.mxu0
        %v719 = vadd.f32 %v416, %v718
        %v720 = vpop.f32.mrf.mxu0
        %v721 = vadd.f32 %v416, %v720
        %722 = vmatmul.bf16.gmra.mxu0 %v489
        %v723 = vpop.f32.mrf.mxu0
        %v724 = vadd.f32 %v416, %v723
        %v725 = vpop.f32.mrf.mxu0
        %v726 = vadd.f32 %v416, %v725
        %727 = vmatmul.bf16.gmra.mxu0 %v490
        %v728 = vpop.f32.mrf.mxu0
        %v729 = vadd.f32 %v416, %v728
        %v730 = vpop.f32.mrf.mxu0
        %v731 = vadd.f32 %v416, %v730
        %732 = vmatmul.bf16.gmra.mxu0 %v491
        %v733 = vpop.f32.mrf.mxu0
        %v734 = vadd.f32 %v416, %v733
        %v735 = vpop.f32.mrf.mxu0
        %v736 = vadd.f32 %v416, %v735
        %737 = vmatmul.bf16.gmra.mxu0 %v492
        %v738 = vpop.f32.mrf.mxu0
        %v739 = vadd.f32 %v416, %v738
        %v740 = vpop.f32.mrf.mxu0
        %v741 = vadd.f32 %v416, %v740
        %742 = vmatmul.bf16.gmra.mxu0 %v493
        %v743 = vpop.f32.mrf.mxu0
        %v744 = vadd.f32 %v416, %v743
        %v745 = vpop.f32.mrf.mxu0
        %v746 = vadd.f32 %v416, %v745
        %747 = vmatmul.bf16.gmra.mxu0 %v494
        %v748 = vpop.f32.mrf.mxu0
        %v749 = vadd.f32 %v416, %v748
        %v750 = vpop.f32.mrf.mxu0
        %v751 = vadd.f32 %v416, %v750
        %752 = vmatmul.bf16.gmra.mxu0 %v495
        %v753 = vpop.f32.mrf.mxu0
        %v754 = vadd.f32 %v416, %v753
        %v755 = vpop.f32.mrf.mxu0
        %v756 = vadd.f32 %v416, %v755
        %757 = vmatmul.bf16.gmra.mxu0 %v496
        %v758 = vpop.f32.mrf.mxu0
        %v759 = vadd.f32 %v416, %v758
        %v760 = vpop.f32.mrf.mxu0
        %v761 = vadd.f32 %v416, %v760
        %762 = vmatmul.bf16.gmra.mxu0 %v497
        %v763 = vpop.f32.mrf.mxu0
        %v764 = vadd.f32 %v416, %v763
        %v765 = vpop.f32.mrf.mxu0
        %v766 = vadd.f32 %v416, %v765
        %767 = vmatmul.bf16.gmra.mxu0 %v498
        %v768 = vpop.f32.mrf.mxu0
        %v769 = vadd.f32 %v416, %v768
        %v770 = vpop.f32.mrf.mxu0
        %v771 = vadd.f32 %v416, %v770
        %772 = vdwg.mxu0
        %v773 = vmax.f32 %v605, 0.0
        %v774 = vmax.f32 %v694, 0.0
        %v775 = vmax.f32 %v607, 0.0
        %v776 = vmax.f32 %v696, 0.0
        %v777 = vmax.f32 %v610, 0.0
        %v778 = vmax.f32 %v699, 0.0
        %v779 = vmax.f32 %v612, 0.0
        %v780 = vmax.f32 %v701, 0.0
        %v781 = vmax.f32 %v615, 0.0
        %v782 = vmax.f32 %v704, 0.0
        %v783 = vmax.f32 %v617, 0.0
        %v784 = vmax.f32 %v706, 0.0
        %v785 = vmax.f32 %v620, 0.0
        %v786 = vmax.f32 %v709, 0.0
        %v787 = vmax.f32 %v622, 0.0
        %v788 = vmax.f32 %v711, 0.0
        %v789 = vmax.f32 %v625, 0.0
        %v790 = vmax.f32 %v714, 0.0
        %v791 = vmax.f32 %v627, 0.0
        %v792 = vmax.f32 %v716, 0.0
        %v793 = vmax.f32 %v630, 0.0
        %v794 = vmax.f32 %v719, 0.0
        %v795 = vmax.f32 %v632, 0.0
        %v796 = vmax.f32 %v721, 0.0
        %v797 = vmax.f32 %v635, 0.0
        %v798 = vmax.f32 %v724, 0.0
        %v799 = vmax.f32 %v637, 0.0
        %v800 = vmax.f32 %v726, 0.0
        %v801 = vmax.f32 %v640, 0.0
        %v802 = vmax.f32 %v729, 0.0
        %v803 = vmax.f32 %v642, 0.0
        %v804 = vmax.f32 %v731, 0.0
        %v805 = vmax.f32 %v645, 0.0
        %v806 = vmax.f32 %v734, 0.0
        %v807 = vmax.f32 %v647, 0.0
        %v808 = vmax.f32 %v736, 0.0
        %v809 = vmax.f32 %v650, 0.0
        %v810 = vmax.f32 %v739, 0.0
        %v811 = vmax.f32 %v652, 0.0
        %v812 = vmax.f32 %v741, 0.0
        %v813 = vmax.f32 %v655, 0.0
        %v814 = vmax.f32 %v744, 0.0
        %v815 = vmax.f32 %v657, 0.0
        %v816 = vmax.f32 %v746, 0.0
        %v817 = vmax.f32 %v660, 0.0
        %v818 = vmax.f32 %v749, 0.0
        %v819 = vmax.f32 %v662, 0.0
        %v820 = vmax.f32 %v751, 0.0
        %v821 = vmax.f32 %v665, 0.0
        %v822 = vmax.f32 %v754, 0.0
        %v823 = vmax.f32 %v667, 0.0
        %v824 = vmax.f32 %v756, 0.0
        %v825 = vmax.f32 %v670, 0.0
        %v826 = vmax.f32 %v759, 0.0
        %v827 = vmax.f32 %v672, 0.0
        %v828 = vmax.f32 %v761, 0.0
        %v829 = vmax.f32 %v675, 0.0
        %v830 = vmax.f32 %v764, 0.0
        %v831 = vmax.f32 %v677, 0.0
        %v832 = vmax.f32 %v766, 0.0
        %v833 = vmax.f32 %v680, 0.0
        %v834 = vmax.f32 %v769, 0.0
        %v835 = vmax.f32 %v682, 0.0
        %v836 = vmax.f32 %v771, 0.0
        %v837 = vpack.c.bf16 %v775, %v773
        %v838 = vpack.c.bf16 %v776, %v774
        %v839 = vpack.c.bf16 %v779, %v777
        %v840 = vpack.c.bf16 %v780, %v778
        %v841 = vpack.c.bf16 %v783, %v781
        %v842 = vpack.c.bf16 %v784, %v782
        %v843 = vpack.c.bf16 %v787, %v785
        %v844 = vpack.c.bf16 %v788, %v786
        %v845 = vpack.c.bf16 %v791, %v789
        %v846 = vpack.c.bf16 %v792, %v790
        %v847 = vpack.c.bf16 %v795, %v793
        %v848 = vpack.c.bf16 %v796, %v794
        %v849 = vpack.c.bf16 %v799, %v797
        %v850 = vpack.c.bf16 %v800, %v798
        %v851 = vpack.c.bf16 %v803, %v801
        %v852 = vpack.c.bf16 %v804, %v802
        %v853 = vpack.c.bf16 %v807, %v805
        %v854 = vpack.c.bf16 %v808, %v806
        %v855 = vpack.c.bf16 %v811, %v809
        %v856 = vpack.c.bf16 %v812, %v810
        %v857 = vpack.c.bf16 %v815, %v813
        %v858 = vpack.c.bf16 %v816, %v814
        %v859 = vpack.c.bf16 %v819, %v817
        %v860 = vpack.c.bf16 %v820, %v818
        %v861 = vpack.c.bf16 %v823, %v821
        %v862 = vpack.c.bf16 %v824, %v822
        %v863 = vpack.c.bf16 %v827, %v825
        %v864 = vpack.c.bf16 %v828, %v826
        %v865 = vpack.c.bf16 %v831, %v829
        %v866 = vpack.c.bf16 %v832, %v830
        %v867 = vpack.c.bf16 %v835, %v833
        %v868 = vpack.c.bf16 %v836, %v834
        %v869 = vld [vmem:[#allocation8] sm:$0xff]
        %v870 = vld [vmem:[#allocation8 + $0x8] sm:$0xff]
        %v871 = vld [vmem:[#allocation8 + $0x10] sm:$0xff]
        %v872 = vld [vmem:[#allocation8 + $0x18] sm:$0xff]
        %v873 = vld [vmem:[#allocation8 + $0x20] sm:$0xff]
        %v874 = vld [vmem:[#allocation8 + $0x28] sm:$0xff]
        %v875 = vld [vmem:[#allocation8 + $0x30] sm:$0xff]
        %v876 = vld [vmem:[#allocation8 + $0x38] sm:$0xff]
        %v877 = vld [vmem:[#allocation8 + $0x40] sm:$0xff]
        %v878 = vld [vmem:[#allocation8 + $0x48] sm:$0xff]
        %v879 = vld [vmem:[#allocation8 + $0x50] sm:$0xff]
        %v880 = vld [vmem:[#allocation8 + $0x58] sm:$0xff]
        %v881 = vld [vmem:[#allocation8 + $0x60] sm:$0xff]
        %v882 = vld [vmem:[#allocation8 + $0x68] sm:$0xff]
        %v883 = vld [vmem:[#allocation8 + $0x70] sm:$0xff]
        %v884 = vld [vmem:[#allocation8 + $0x78] sm:$0xff]
        %v885 = vld [vmem:[#allocation8 + $0x80] sm:$0xff]
        %v886 = vld [vmem:[#allocation8 + $0x88] sm:$0xff]
        %v887 = vld [vmem:[#allocation8 + $0x90] sm:$0xff]
        %v888 = vld [vmem:[#allocation8 + $0x98] sm:$0xff]
        %v889 = vld [vmem:[#allocation8 + $0xa0] sm:$0xff]
        %v890 = vld [vmem:[#allocation8 + $0xa8] sm:$0xff]
        %v891 = vld [vmem:[#allocation8 + $0xb0] sm:$0xff]
        %v892 = vld [vmem:[#allocation8 + $0xb8] sm:$0xff]
        %v893 = vld [vmem:[#allocation8 + $0xc0] sm:$0xff]
        %v894 = vld [vmem:[#allocation8 + $0xc8] sm:$0xff]
        %v895 = vld [vmem:[#allocation8 + $0xd0] sm:$0xff]
        %v896 = vld [vmem:[#allocation8 + $0xd8] sm:$0xff]
        %v897 = vld [vmem:[#allocation8 + $0xe0] sm:$0xff]
        %v898 = vld [vmem:[#allocation8 + $0xe8] sm:$0xff]
        %v899 = vld [vmem:[#allocation8 + $0xf0] sm:$0xff]
        %v900 = vld [vmem:[#allocation8 + $0xf8] sm:$0xff]
        %v901 = vld [vmem:[%s4] sm:$0x3]
        %v903 = vperm.slane %v901, 0
        %v904 = vperm.slane %v901, 1
        %v939 = vunpack.c.l.b16 %v869
        %v940 = vunpack.c.h.b16 %v869
        %v941 = vunpack.c.l.b16 %v870
        %v942 = vunpack.c.h.b16 %v870
        %v943 = vunpack.c.l.b16 %v871
        %v944 = vunpack.c.h.b16 %v871
        %v945 = vunpack.c.l.b16 %v872
        %v946 = vunpack.c.h.b16 %v872
        %v947 = vunpack.c.l.b16 %v873
        %v948 = vunpack.c.h.b16 %v873
        %v949 = vunpack.c.l.b16 %v874
        %v950 = vunpack.c.h.b16 %v874
        %v951 = vunpack.c.l.b16 %v875
        %v952 = vunpack.c.h.b16 %v875
        %v953 = vunpack.c.l.b16 %v876
        %v954 = vunpack.c.h.b16 %v876
        %v955 = vunpack.c.l.b16 %v877
        %v956 = vunpack.c.h.b16 %v877
        %v957 = vunpack.c.l.b16 %v878
        %v958 = vunpack.c.h.b16 %v878
        %v959 = vunpack.c.l.b16 %v879
        %v960 = vunpack.c.h.b16 %v879
        %v961 = vunpack.c.l.b16 %v880
        %v962 = vunpack.c.h.b16 %v880
        %v963 = vunpack.c.l.b16 %v881
        %v964 = vunpack.c.h.b16 %v881
        %v965 = vunpack.c.l.b16 %v882
        %v966 = vunpack.c.h.b16 %v882
        %v967 = vunpack.c.l.b16 %v883
        %v968 = vunpack.c.h.b16 %v883
        %v969 = vunpack.c.l.b16 %v884
        %v970 = vunpack.c.h.b16 %v884
        %v971 = vunpack.c.l.b16 %v885
        %v972 = vunpack.c.h.b16 %v885
        %v973 = vunpack.c.l.b16 %v886
        %v974 = vunpack.c.h.b16 %v886
        %v975 = vunpack.c.l.b16 %v887
        %v976 = vunpack.c.h.b16 %v887
        %v977 = vunpack.c.l.b16 %v888
        %v978 = vunpack.c.h.b16 %v888
        %v979 = vunpack.c.l.b16 %v889
        %v980 = vunpack.c.h.b16 %v889
        %v981 = vunpack.c.l.b16 %v890
        %v982 = vunpack.c.h.b16 %v890
        %v983 = vunpack.c.l.b16 %v891
        %v984 = vunpack.c.h.b16 %v891
        %v985 = vunpack.c.l.b16 %v892
        %v986 = vunpack.c.h.b16 %v892
        %v987 = vunpack.c.l.b16 %v893
        %v988 = vunpack.c.h.b16 %v893
        %v989 = vunpack.c.l.b16 %v894
        %v990 = vunpack.c.h.b16 %v894
        %v991 = vunpack.c.l.b16 %v895
        %v992 = vunpack.c.h.b16 %v895
        %v993 = vunpack.c.l.b16 %v896
        %v994 = vunpack.c.h.b16 %v896
        %v995 = vunpack.c.l.b16 %v897
        %v996 = vunpack.c.h.b16 %v897
        %v997 = vunpack.c.l.b16 %v898
        %v998 = vunpack.c.h.b16 %v898
        %v999 = vunpack.c.l.b16 %v899
        %v1000 = vunpack.c.h.b16 %v899
        %v1001 = vunpack.c.l.b16 %v900
        %v1002 = vunpack.c.h.b16 %v900
        %v1003 = vpack.c.b16 %v941, %v939
        %v1004 = vpack.c.b16 %v942, %v940
        %v1005 = vpack.c.b16 %v945, %v943
        %v1006 = vpack.c.b16 %v946, %v944
        %v1007 = vpack.c.b16 %v949, %v947
        %v1008 = vpack.c.b16 %v950, %v948
        %v1009 = vpack.c.b16 %v953, %v951
        %v1010 = vpack.c.b16 %v954, %v952
        %v1011 = vpack.c.b16 %v957, %v955
        %v1012 = vpack.c.b16 %v958, %v956
        %v1013 = vpack.c.b16 %v961, %v959
        %v1014 = vpack.c.b16 %v962, %v960
        %v1015 = vpack.c.b16 %v965, %v963
        %v1016 = vpack.c.b16 %v966, %v964
        %v1017 = vpack.c.b16 %v969, %v967
        %v1018 = vpack.c.b16 %v970, %v968
        %v1019 = vpack.c.b16 %v973, %v971
        %v1020 = vpack.c.b16 %v974, %v972
        %v1021 = vpack.c.b16 %v977, %v975
        %v1022 = vpack.c.b16 %v978, %v976
        %v1023 = vpack.c.b16 %v981, %v979
        %v1024 = vpack.c.b16 %v982, %v980
        %v1025 = vpack.c.b16 %v985, %v983
        %v1026 = vpack.c.b16 %v986, %v984
        %v1027 = vpack.c.b16 %v989, %v987
        %v1028 = vpack.c.b16 %v990, %v988
        %v1029 = vpack.c.b16 %v993, %v991
        %v1030 = vpack.c.b16 %v994, %v992
        %v1031 = vpack.c.b16 %v997, %v995
        %v1032 = vpack.c.b16 %v998, %v996
        %v1033 = vpack.c.b16 %v1001, %v999
        %v1034 = vpack.c.b16 %v1002, %v1000
        %1067 = vmatpush.bf16.msra.mxu0 %v1017
        %1068 = vmatpush.bf16.msra.mxu0 %v1015
        %1069 = vmatpush.bf16.msra.mxu0 %v1013
        %1070 = vmatpush.bf16.msra.mxu0 %v1011
        %1071 = vmatpush.bf16.msra.mxu0 %v1009
        %1072 = vmatpush.bf16.msra.mxu0 %v1007
        %1073 = vmatpush.bf16.msra.mxu0 %v1005
        %1074 = vmatpush.bf16.msra.mxu0 %v1003
        %1075 = vmatmul.bf16.gmra.mxu0 %v837
        %v1076 = vpop.f32.mrf.mxu0
        %v1077 = vadd.f32 %v903, %v1076
        %v1078 = vpop.f32.mrf.mxu0
        %v1079 = vadd.f32 %v903, %v1078
        %1080 = vmatmul.bf16.gmra.mxu0 %v839
        %v1081 = vpop.f32.mrf.mxu0
        %v1082 = vadd.f32 %v903, %v1081
        %v1083 = vpop.f32.mrf.mxu0
        %v1084 = vadd.f32 %v903, %v1083
        %1085 = vmatmul.bf16.gmra.mxu0 %v841
        %v1086 = vpop.f32.mrf.mxu0
        %v1087 = vadd.f32 %v903, %v1086
        %v1088 = vpop.f32.mrf.mxu0
        %v1089 = vadd.f32 %v903, %v1088
        %1090 = vmatmul.bf16.gmra.mxu0 %v843
        %v1091 = vpop.f32.mrf.mxu0
        %v1092 = vadd.f32 %v903, %v1091
        %v1093 = vpop.f32.mrf.mxu0
        %v1094 = vadd.f32 %v903, %v1093
        %1095 = vmatmul.bf16.gmra.mxu0 %v845
        %v1096 = vpop.f32.mrf.mxu0
        %v1097 = vadd.f32 %v903, %v1096
        %v1098 = vpop.f32.mrf.mxu0
        %v1099 = vadd.f32 %v903, %v1098
        %1100 = vmatmul.bf16.gmra.mxu0 %v847
        %v1101 = vpop.f32.mrf.mxu0
        %v1102 = vadd.f32 %v903, %v1101
        %v1103 = vpop.f32.mrf.mxu0
        %v1104 = vadd.f32 %v903, %v1103
        %1105 = vmatmul.bf16.gmra.mxu0 %v849
        %v1106 = vpop.f32.mrf.mxu0
        %v1107 = vadd.f32 %v903, %v1106
        %v1108 = vpop.f32.mrf.mxu0
        %v1109 = vadd.f32 %v903, %v1108
        %1110 = vmatmul.bf16.gmra.mxu0 %v851
        %v1111 = vpop.f32.mrf.mxu0
        %v1112 = vadd.f32 %v903, %v1111
        %v1113 = vpop.f32.mrf.mxu0
        %v1114 = vadd.f32 %v903, %v1113
        %1115 = vmatmul.bf16.gmra.mxu0 %v853
        %v1116 = vpop.f32.mrf.mxu0
        %v1117 = vadd.f32 %v903, %v1116
        %v1118 = vpop.f32.mrf.mxu0
        %v1119 = vadd.f32 %v903, %v1118
        %1120 = vmatmul.bf16.gmra.mxu0 %v855
        %v1121 = vpop.f32.mrf.mxu0
        %v1122 = vadd.f32 %v903, %v1121
        %v1123 = vpop.f32.mrf.mxu0
        %v1124 = vadd.f32 %v903, %v1123
        %1125 = vmatmul.bf16.gmra.mxu0 %v857
        %v1126 = vpop.f32.mrf.mxu0
        %v1127 = vadd.f32 %v903, %v1126
        %v1128 = vpop.f32.mrf.mxu0
        %v1129 = vadd.f32 %v903, %v1128
        %1130 = vmatmul.bf16.gmra.mxu0 %v859
        %v1131 = vpop.f32.mrf.mxu0
        %v1132 = vadd.f32 %v903, %v1131
        %v1133 = vpop.f32.mrf.mxu0
        %v1134 = vadd.f32 %v903, %v1133
        %1135 = vmatmul.bf16.gmra.mxu0 %v861
        %v1136 = vpop.f32.mrf.mxu0
        %v1137 = vadd.f32 %v903, %v1136
        %v1138 = vpop.f32.mrf.mxu0
        %v1139 = vadd.f32 %v903, %v1138
        %1140 = vmatmul.bf16.gmra.mxu0 %v863
        %v1141 = vpop.f32.mrf.mxu0
        %v1142 = vadd.f32 %v903, %v1141
        %v1143 = vpop.f32.mrf.mxu0
        %v1144 = vadd.f32 %v903, %v1143
        %1145 = vmatmul.bf16.gmra.mxu0 %v865
        %v1146 = vpop.f32.mrf.mxu0
        %v1147 = vadd.f32 %v903, %v1146
        %v1148 = vpop.f32.mrf.mxu0
        %v1149 = vadd.f32 %v903, %v1148
        %1150 = vmatmul.bf16.gmra.mxu0 %v867
        %v1151 = vpop.f32.mrf.mxu0
        %v1152 = vadd.f32 %v903, %v1151
        %v1153 = vpop.f32.mrf.mxu0
        %v1154 = vadd.f32 %v903, %v1153
        %1155 = vdwg.mxu0
        %1156 = vmatpush.bf16.msra.mxu0 %v1033
        %1157 = vmatpush.bf16.msra.mxu0 %v1031
        %1158 = vmatpush.bf16.msra.mxu0 %v1029
        %1159 = vmatpush.bf16.msra.mxu0 %v1027
        %1160 = vmatpush.bf16.msra.mxu0 %v1025
        %1161 = vmatpush.bf16.msra.mxu0 %v1023
        %1162 = vmatpush.bf16.msra.mxu0 %v1021
        %1163 = vmatpush.bf16.msra.mxu0 %v1019
        %1164 = vmatmul.bf16.gmra.mxu0 %v838
        %v1165 = vpop.f32.mrf.mxu0
        %v1166 = vadd.f32 %v1077, %v1165
        %v1167 = vpop.f32.mrf.mxu0
        %v1168 = vadd.f32 %v1079, %v1167
        %1169 = vmatmul.bf16.gmra.mxu0 %v840
        %v1170 = vpop.f32.mrf.mxu0
        %v1171 = vadd.f32 %v1082, %v1170
        %v1172 = vpop.f32.mrf.mxu0
        %v1173 = vadd.f32 %v1084, %v1172
        %1174 = vmatmul.bf16.gmra.mxu0 %v842
        %v1175 = vpop.f32.mrf.mxu0
        %v1176 = vadd.f32 %v1087, %v1175
        %v1177 = vpop.f32.mrf.mxu0
        %v1178 = vadd.f32 %v1089, %v1177
        %1179 = vmatmul.bf16.gmra.mxu0 %v844
        %v1180 = vpop.f32.mrf.mxu0
        %v1181 = vadd.f32 %v1092, %v1180
        %v1182 = vpop.f32.mrf.mxu0
        %v1183 = vadd.f32 %v1094, %v1182
        %1184 = vmatmul.bf16.gmra.mxu0 %v846
        %v1185 = vpop.f32.mrf.mxu0
        %v1186 = vadd.f32 %v1097, %v1185
        %v1187 = vpop.f32.mrf.mxu0
        %v1188 = vadd.f32 %v1099, %v1187
        %1189 = vmatmul.bf16.gmra.mxu0 %v848
        %v1190 = vpop.f32.mrf.mxu0
        %v1191 = vadd.f32 %v1102, %v1190
        %v1192 = vpop.f32.mrf.mxu0
        %v1193 = vadd.f32 %v1104, %v1192
        %1194 = vmatmul.bf16.gmra.mxu0 %v850
        %v1195 = vpop.f32.mrf.mxu0
        %v1196 = vadd.f32 %v1107, %v1195
        %v1197 = vpop.f32.mrf.mxu0
        %v1198 = vadd.f32 %v1109, %v1197
        %1199 = vmatmul.bf16.gmra.mxu0 %v852
        %v1200 = vpop.f32.mrf.mxu0
        %v1201 = vadd.f32 %v1112, %v1200
        %v1202 = vpop.f32.mrf.mxu0
        %v1203 = vadd.f32 %v1114, %v1202
        %1204 = vmatmul.bf16.gmra.mxu0 %v854
        %v1205 = vpop.f32.mrf.mxu0
        %v1206 = vadd.f32 %v1117, %v1205
        %v1207 = vpop.f32.mrf.mxu0
        %v1208 = vadd.f32 %v1119, %v1207
        %1209 = vmatmul.bf16.gmra.mxu0 %v856
        %v1210 = vpop.f32.mrf.mxu0
        %v1211 = vadd.f32 %v1122, %v1210
        %v1212 = vpop.f32.mrf.mxu0
        %v1213 = vadd.f32 %v1124, %v1212
        %1214 = vmatmul.bf16.gmra.mxu0 %v858
        %v1215 = vpop.f32.mrf.mxu0
        %v1216 = vadd.f32 %v1127, %v1215
        %v1217 = vpop.f32.mrf.mxu0
        %v1218 = vadd.f32 %v1129, %v1217
        %1219 = vmatmul.bf16.gmra.mxu0 %v860
        %v1220 = vpop.f32.mrf.mxu0
        %v1221 = vadd.f32 %v1132, %v1220
        %v1222 = vpop.f32.mrf.mxu0
        %v1223 = vadd.f32 %v1134, %v1222
        %1224 = vmatmul.bf16.gmra.mxu0 %v862
        %v1225 = vpop.f32.mrf.mxu0
        %v1226 = vadd.f32 %v1137, %v1225
        %v1227 = vpop.f32.mrf.mxu0
        %v1228 = vadd.f32 %v1139, %v1227
        %1229 = vmatmul.bf16.gmra.mxu0 %v864
        %v1230 = vpop.f32.mrf.mxu0
        %v1231 = vadd.f32 %v1142, %v1230
        %v1232 = vpop.f32.mrf.mxu0
        %v1233 = vadd.f32 %v1144, %v1232
        %1234 = vmatmul.bf16.gmra.mxu0 %v866
        %v1235 = vpop.f32.mrf.mxu0
        %v1236 = vadd.f32 %v1147, %v1235
        %v1237 = vpop.f32.mrf.mxu0
        %v1238 = vadd.f32 %v1149, %v1237
        %1239 = vmatmul.bf16.gmra.mxu0 %v868
        %v1240 = vpop.f32.mrf.mxu0
        %v1241 = vadd.f32 %v1152, %v1240
        %v1242 = vpop.f32.mrf.mxu0
        %v1243 = vadd.f32 %v1154, %v1242
        %1244 = vdwg.mxu0
        %1245 = vmatpush.bf16.msra.mxu0 %v1018
        %1246 = vmatpush.bf16.msra.mxu0 %v1016
        %1247 = vmatpush.bf16.msra.mxu0 %v1014
        %1248 = vmatpush.bf16.msra.mxu0 %v1012
        %1249 = vmatpush.bf16.msra.mxu0 %v1010
        %1250 = vmatpush.bf16.msra.mxu0 %v1008
        %1251 = vmatpush.bf16.msra.mxu0 %v1006
        %1252 = vmatpush.bf16.msra.mxu0 %v1004
        %1253 = vmatmul.bf16.gmra.mxu0 %v837
        %v1254 = vpop.f32.mrf.mxu0
        %v1255 = vadd.f32 %v904, %v1254
        %v1256 = vpop.f32.mrf.mxu0
        %v1257 = vadd.f32 %v904, %v1256
        %1258 = vmatmul.bf16.gmra.mxu0 %v839
        %v1259 = vpop.f32.mrf.mxu0
        %v1260 = vadd.f32 %v904, %v1259
        %v1261 = vpop.f32.mrf.mxu0
        %v1262 = vadd.f32 %v904, %v1261
        %1263 = vmatmul.bf16.gmra.mxu0 %v841
        %v1264 = vpop.f32.mrf.mxu0
        %v1265 = vadd.f32 %v904, %v1264
        %v1266 = vpop.f32.mrf.mxu0
        %v1267 = vadd.f32 %v904, %v1266
        %1268 = vmatmul.bf16.gmra.mxu0 %v843
        %v1269 = vpop.f32.mrf.mxu0
        %v1270 = vadd.f32 %v904, %v1269
        %v1271 = vpop.f32.mrf.mxu0
        %v1272 = vadd.f32 %v904, %v1271
        %1273 = vmatmul.bf16.gmra.mxu0 %v845
        %v1274 = vpop.f32.mrf.mxu0
        %v1275 = vadd.f32 %v904, %v1274
        %v1276 = vpop.f32.mrf.mxu0
        %v1277 = vadd.f32 %v904, %v1276
        %1278 = vmatmul.bf16.gmra.mxu0 %v847
        %v1279 = vpop.f32.mrf.mxu0
        %v1280 = vadd.f32 %v904, %v1279
        %v1281 = vpop.f32.mrf.mxu0
        %v1282 = vadd.f32 %v904, %v1281
        %1283 = vmatmul.bf16.gmra.mxu0 %v849
        %v1284 = vpop.f32.mrf.mxu0
        %v1285 = vadd.f32 %v904, %v1284
        %v1286 = vpop.f32.mrf.mxu0
        %v1287 = vadd.f32 %v904, %v1286
        %1288 = vmatmul.bf16.gmra.mxu0 %v851
        %v1289 = vpop.f32.mrf.mxu0
        %v1290 = vadd.f32 %v904, %v1289
        %v1291 = vpop.f32.mrf.mxu0
        %v1292 = vadd.f32 %v904, %v1291
        %1293 = vmatmul.bf16.gmra.mxu0 %v853
        %v1294 = vpop.f32.mrf.mxu0
        %v1295 = vadd.f32 %v904, %v1294
        %v1296 = vpop.f32.mrf.mxu0
        %v1297 = vadd.f32 %v904, %v1296
        %1298 = vmatmul.bf16.gmra.mxu0 %v855
        %v1299 = vpop.f32.mrf.mxu0
        %v1300 = vadd.f32 %v904, %v1299
        %v1301 = vpop.f32.mrf.mxu0
        %v1302 = vadd.f32 %v904, %v1301
        %1303 = vmatmul.bf16.gmra.mxu0 %v857
        %v1304 = vpop.f32.mrf.mxu0
        %v1305 = vadd.f32 %v904, %v1304
        %v1306 = vpop.f32.mrf.mxu0
        %v1307 = vadd.f32 %v904, %v1306
        %1308 = vmatmul.bf16.gmra.mxu0 %v859
        %v1309 = vpop.f32.mrf.mxu0
        %v1310 = vadd.f32 %v904, %v1309
        %v1311 = vpop.f32.mrf.mxu0
        %v1312 = vadd.f32 %v904, %v1311
        %1313 = vmatmul.bf16.gmra.mxu0 %v861
        %v1314 = vpop.f32.mrf.mxu0
        %v1315 = vadd.f32 %v904, %v1314
        %v1316 = vpop.f32.mrf.mxu0
        %v1317 = vadd.f32 %v904, %v1316
        %1318 = vmatmul.bf16.gmra.mxu0 %v863
        %v1319 = vpop.f32.mrf.mxu0
        %v1320 = vadd.f32 %v904, %v1319
        %v1321 = vpop.f32.mrf.mxu0
        %v1322 = vadd.f32 %v904, %v1321
        %1323 = vmatmul.bf16.gmra.mxu0 %v865
        %v1324 = vpop.f32.mrf.mxu0
        %v1325 = vadd.f32 %v904, %v1324
        %v1326 = vpop.f32.mrf.mxu0
        %v1327 = vadd.f32 %v904, %v1326
        %1328 = vmatmul.bf16.gmra.mxu0 %v867
        %v1329 = vpop.f32.mrf.mxu0
        %v1330 = vadd.f32 %v904, %v1329
        %v1331 = vpop.f32.mrf.mxu0
        %v1332 = vadd.f32 %v904, %v1331
        %1333 = vdwg.mxu0
        %1334 = vmatpush.bf16.msra.mxu0 %v1034
        %1335 = vmatpush.bf16.msra.mxu0 %v1032
        %1336 = vmatpush.bf16.msra.mxu0 %v1030
        %1337 = vmatpush.bf16.msra.mxu0 %v1028
        %1338 = vmatpush.bf16.msra.mxu0 %v1026
        %1339 = vmatpush.bf16.msra.mxu0 %v1024
        %1340 = vmatpush.bf16.msra.mxu0 %v1022
        %1341 = vmatpush.bf16.msra.mxu0 %v1020
        %1342 = vmatmul.bf16.gmra.mxu0 %v838
        %v1343 = vpop.f32.mrf.mxu0
        %v1344 = vadd.f32 %v1255, %v1343
        %v1345 = vpop.f32.mrf.mxu0
        %v1346 = vadd.f32 %v1257, %v1345
        %1347 = vmatmul.bf16.gmra.mxu0 %v840
        %v1348 = vpop.f32.mrf.mxu0
        %v1349 = vadd.f32 %v1260, %v1348
        %v1350 = vpop.f32.mrf.mxu0
        %v1351 = vadd.f32 %v1262, %v1350
        %1352 = vmatmul.bf16.gmra.mxu0 %v842
        %v1353 = vpop.f32.mrf.mxu0
        %v1354 = vadd.f32 %v1265, %v1353
        %v1355 = vpop.f32.mrf.mxu0
        %v1356 = vadd.f32 %v1267, %v1355
        %1357 = vmatmul.bf16.gmra.mxu0 %v844
        %v1358 = vpop.f32.mrf.mxu0
        %v1359 = vadd.f32 %v1270, %v1358
        %v1360 = vpop.f32.mrf.mxu0
        %v1361 = vadd.f32 %v1272, %v1360
        %1362 = vmatmul.bf16.gmra.mxu0 %v846
        %v1363 = vpop.f32.mrf.mxu0
        %v1364 = vadd.f32 %v1275, %v1363
        %v1365 = vpop.f32.mrf.mxu0
        %v1366 = vadd.f32 %v1277, %v1365
        %1367 = vmatmul.bf16.gmra.mxu0 %v848
        %v1368 = vpop.f32.mrf.mxu0
        %v1369 = vadd.f32 %v1280, %v1368
        %v1370 = vpop.f32.mrf.mxu0
        %v1371 = vadd.f32 %v1282, %v1370
        %1372 = vmatmul.bf16.gmra.mxu0 %v850
        %v1373 = vpop.f32.mrf.mxu0
        %v1374 = vadd.f32 %v1285, %v1373
        %v1375 = vpop.f32.mrf.mxu0
        %v1376 = vadd.f32 %v1287, %v1375
        %1377 = vmatmul.bf16.gmra.mxu0 %v852
        %v1378 = vpop.f32.mrf.mxu0
        %v1379 = vadd.f32 %v1290, %v1378
        %v1380 = vpop.f32.mrf.mxu0
        %v1381 = vadd.f32 %v1292, %v1380
        %1382 = vmatmul.bf16.gmra.mxu0 %v854
        %v1383 = vpop.f32.mrf.mxu0
        %v1384 = vadd.f32 %v1295, %v1383
        %v1385 = vpop.f32.mrf.mxu0
        %v1386 = vadd.f32 %v1297, %v1385
        %1387 = vmatmul.bf16.gmra.mxu0 %v856
        %v1388 = vpop.f32.mrf.mxu0
        %v1389 = vadd.f32 %v1300, %v1388
        %v1390 = vpop.f32.mrf.mxu0
        %v1391 = vadd.f32 %v1302, %v1390
        %1392 = vmatmul.bf16.gmra.mxu0 %v858
        %v1393 = vpop.f32.mrf.mxu0
        %v1394 = vadd.f32 %v1305, %v1393
        %v1395 = vpop.f32.mrf.mxu0
        %v1396 = vadd.f32 %v1307, %v1395
        %1397 = vmatmul.bf16.gmra.mxu0 %v860
        %v1398 = vpop.f32.mrf.mxu0
        %v1399 = vadd.f32 %v1310, %v1398
        %v1400 = vpop.f32.mrf.mxu0
        %v1401 = vadd.f32 %v1312, %v1400
        %1402 = vmatmul.bf16.gmra.mxu0 %v862
        %v1403 = vpop.f32.mrf.mxu0
        %v1404 = vadd.f32 %v1315, %v1403
        %v1405 = vpop.f32.mrf.mxu0
        %v1406 = vadd.f32 %v1317, %v1405
        %1407 = vmatmul.bf16.gmra.mxu0 %v864
        %v1408 = vpop.f32.mrf.mxu0
        %v1409 = vadd.f32 %v1320, %v1408
        %v1410 = vpop.f32.mrf.mxu0
        %v1411 = vadd.f32 %v1322, %v1410
        %1412 = vmatmul.bf16.gmra.mxu0 %v866
        %v1413 = vpop.f32.mrf.mxu0
        %v1414 = vadd.f32 %v1325, %v1413
        %v1415 = vpop.f32.mrf.mxu0
        %v1416 = vadd.f32 %v1327, %v1415
        %1417 = vmatmul.bf16.gmra.mxu0 %v868
        %v1418 = vpop.f32.mrf.mxu0
        %v1419 = vadd.f32 %v1330, %v1418
        %v1420 = vpop.f32.mrf.mxu0
        %v1421 = vadd.f32 %v1332, %v1420
        %1422 = vdwg.mxu0
        %v1423 = vmax.f32 %v1166, 0.0
        %v1424 = vmax.f32 %v1344, 0.0
        %v1425 = vmax.f32 %v1168, 0.0
        %v1426 = vmax.f32 %v1346, 0.0
        %v1427 = vmax.f32 %v1171, 0.0
        %v1428 = vmax.f32 %v1349, 0.0
        %v1429 = vmax.f32 %v1173, 0.0
        %v1430 = vmax.f32 %v1351, 0.0
        %v1431 = vmax.f32 %v1176, 0.0
        %v1432 = vmax.f32 %v1354, 0.0
        %v1433 = vmax.f32 %v1178, 0.0
        %v1434 = vmax.f32 %v1356, 0.0
        %v1435 = vmax.f32 %v1181, 0.0
        %v1436 = vmax.f32 %v1359, 0.0
        %v1437 = vmax.f32 %v1183, 0.0
        %v1438 = vmax.f32 %v1361, 0.0
        %v1439 = vmax.f32 %v1186, 0.0
        %v1440 = vmax.f32 %v1364, 0.0
        %v1441 = vmax.f32 %v1188, 0.0
        %v1442 = vmax.f32 %v1366, 0.0
        %v1443 = vmax.f32 %v1191, 0.0
        %v1444 = vmax.f32 %v1369, 0.0
        %v1445 = vmax.f32 %v1193, 0.0
        %v1446 = vmax.f32 %v1371, 0.0
        %v1447 = vmax.f32 %v1196, 0.0
        %v1448 = vmax.f32 %v1374, 0.0
        %v1449 = vmax.f32 %v1198, 0.0
        %v1450 = vmax.f32 %v1376, 0.0
        %v1451 = vmax.f32 %v1201, 0.0
        %v1452 = vmax.f32 %v1379, 0.0
        %v1453 = vmax.f32 %v1203, 0.0
        %v1454 = vmax.f32 %v1381, 0.0
        %v1455 = vmax.f32 %v1206, 0.0
        %v1456 = vmax.f32 %v1384, 0.0
        %v1457 = vmax.f32 %v1208, 0.0
        %v1458 = vmax.f32 %v1386, 0.0
        %v1459 = vmax.f32 %v1211, 0.0
        %v1460 = vmax.f32 %v1389, 0.0
        %v1461 = vmax.f32 %v1213, 0.0
        %v1462 = vmax.f32 %v1391, 0.0
        %v1463 = vmax.f32 %v1216, 0.0
        %v1464 = vmax.f32 %v1394, 0.0
        %v1465 = vmax.f32 %v1218, 0.0
        %v1466 = vmax.f32 %v1396, 0.0
        %v1467 = vmax.f32 %v1221, 0.0
        %v1468 = vmax.f32 %v1399, 0.0
        %v1469 = vmax.f32 %v1223, 0.0
        %v1470 = vmax.f32 %v1401, 0.0
        %v1471 = vmax.f32 %v1226, 0.0
        %v1472 = vmax.f32 %v1404, 0.0
        %v1473 = vmax.f32 %v1228, 0.0
        %v1474 = vmax.f32 %v1406, 0.0
        %v1475 = vmax.f32 %v1231, 0.0
        %v1476 = vmax.f32 %v1409, 0.0
        %v1477 = vmax.f32 %v1233, 0.0
        %v1478 = vmax.f32 %v1411, 0.0
        %v1479 = vmax.f32 %v1236, 0.0
        %v1480 = vmax.f32 %v1414, 0.0
        %v1481 = vmax.f32 %v1238, 0.0
        %v1482 = vmax.f32 %v1416, 0.0
        %v1483 = vmax.f32 %v1241, 0.0
        %v1484 = vmax.f32 %v1419, 0.0
        %v1485 = vmax.f32 %v1243, 0.0
        %v1486 = vmax.f32 %v1421, 0.0
        %v1487 = vpack.c.bf16 %v1425, %v1423
        %v1488 = vpack.c.bf16 %v1426, %v1424
        %v1489 = vpack.c.bf16 %v1429, %v1427
        %v1490 = vpack.c.bf16 %v1430, %v1428
        %v1491 = vpack.c.bf16 %v1433, %v1431
        %v1492 = vpack.c.bf16 %v1434, %v1432
        %v1493 = vpack.c.bf16 %v1437, %v1435
        %v1494 = vpack.c.bf16 %v1438, %v1436
        %v1495 = vpack.c.bf16 %v1441, %v1439
        %v1496 = vpack.c.bf16 %v1442, %v1440
        %v1497 = vpack.c.bf16 %v1445, %v1443
        %v1498 = vpack.c.bf16 %v1446, %v1444
        %v1499 = vpack.c.bf16 %v1449, %v1447
        %v1500 = vpack.c.bf16 %v1450, %v1448
        %v1501 = vpack.c.bf16 %v1453, %v1451
        %v1502 = vpack.c.bf16 %v1454, %v1452
        %v1503 = vpack.c.bf16 %v1457, %v1455
        %v1504 = vpack.c.bf16 %v1458, %v1456
        %v1505 = vpack.c.bf16 %v1461, %v1459
        %v1506 = vpack.c.bf16 %v1462, %v1460
        %v1507 = vpack.c.bf16 %v1465, %v1463
        %v1508 = vpack.c.bf16 %v1466, %v1464
        %v1509 = vpack.c.bf16 %v1469, %v1467
        %v1510 = vpack.c.bf16 %v1470, %v1468
        %v1511 = vpack.c.bf16 %v1473, %v1471
        %v1512 = vpack.c.bf16 %v1474, %v1472
        %v1513 = vpack.c.bf16 %v1477, %v1475
        %v1514 = vpack.c.bf16 %v1478, %v1476
        %v1515 = vpack.c.bf16 %v1481, %v1479
        %v1516 = vpack.c.bf16 %v1482, %v1480
        %v1517 = vpack.c.bf16 %v1485, %v1483
        %v1518 = vpack.c.bf16 %v1486, %v1484
        %v1519 = vld [vmem:[#allocation10] sm:$0xf]
        %v1520 = vld [vmem:[#allocation10 + $0x4] sm:$0xf]
        %v1521 = vld [vmem:[#allocation10 + $0x8] sm:$0xf]
        %v1522 = vld [vmem:[#allocation10 + $0xc] sm:$0xf]
        %v1523 = vld [vmem:[#allocation10 + $0x10] sm:$0xf]
        %v1524 = vld [vmem:[#allocation10 + $0x14] sm:$0xf]
        %v1525 = vld [vmem:[#allocation10 + $0x18] sm:$0xf]
        %v1526 = vld [vmem:[#allocation10 + $0x1c] sm:$0xf]
        %v1527 = vld [vmem:[#allocation10 + $0x20] sm:$0xf]
        %v1528 = vld [vmem:[#allocation10 + $0x24] sm:$0xf]
        %v1529 = vld [vmem:[#allocation10 + $0x28] sm:$0xf]
        %v1530 = vld [vmem:[#allocation10 + $0x2c] sm:$0xf]
        %v1531 = vld [vmem:[#allocation10 + $0x30] sm:$0xf]
        %v1532 = vld [vmem:[#allocation10 + $0x34] sm:$0xf]
        %v1533 = vld [vmem:[#allocation10 + $0x38] sm:$0xf]
        %v1534 = vld [vmem:[#allocation10 + $0x3c] sm:$0xf]
        %v1535 = vld [vmem:[#allocation10 + $0x40] sm:$0xf]
        %v1536 = vld [vmem:[#allocation10 + $0x44] sm:$0xf]
        %v1537 = vld [vmem:[#allocation10 + $0x48] sm:$0xf]
        %v1538 = vld [vmem:[#allocation10 + $0x4c] sm:$0xf]
        %v1539 = vld [vmem:[#allocation10 + $0x50] sm:$0xf]
        %v1540 = vld [vmem:[#allocation10 + $0x54] sm:$0xf]
        %v1541 = vld [vmem:[#allocation10 + $0x58] sm:$0xf]
        %v1542 = vld [vmem:[#allocation10 + $0x5c] sm:$0xf]
        %v1543 = vld [vmem:[#allocation10 + $0x60] sm:$0xf]
        %v1544 = vld [vmem:[#allocation10 + $0x64] sm:$0xf]
        %v1545 = vld [vmem:[#allocation10 + $0x68] sm:$0xf]
        %v1546 = vld [vmem:[#allocation10 + $0x6c] sm:$0xf]
        %v1547 = vld [vmem:[#allocation10 + $0x70] sm:$0xf]
        %v1548 = vld [vmem:[#allocation10 + $0x74] sm:$0xf]
        %v1549 = vld [vmem:[#allocation10 + $0x78] sm:$0xf]
        %v1550 = vld [vmem:[#allocation10 + $0x7c] sm:$0xf]
        %v1551 = vld [vmem:[%s6] sm:$0x1]
        %v1553 = vperm.slane %v1551, 0
        %v1587 = vunpack.c.l.b16 %v1519
        %v1588 = vunpack.c.l.b16 %v1520
        %v1589 = vunpack.c.l.b16 %v1521
        %v1590 = vunpack.c.l.b16 %v1522
        %v1591 = vunpack.c.l.b16 %v1523
        %v1592 = vunpack.c.l.b16 %v1524
        %v1593 = vunpack.c.l.b16 %v1525
        %v1594 = vunpack.c.l.b16 %v1526
        %v1595 = vunpack.c.l.b16 %v1527
        %v1596 = vunpack.c.l.b16 %v1528
        %v1597 = vunpack.c.l.b16 %v1529
        %v1598 = vunpack.c.l.b16 %v1530
        %v1599 = vunpack.c.l.b16 %v1531
        %v1600 = vunpack.c.l.b16 %v1532
        %v1601 = vunpack.c.l.b16 %v1533
        %v1602 = vunpack.c.l.b16 %v1534
        %v1603 = vunpack.c.l.b16 %v1535
        %v1604 = vunpack.c.l.b16 %v1536
        %v1605 = vunpack.c.l.b16 %v1537
        %v1606 = vunpack.c.l.b16 %v1538
        %v1607 = vunpack.c.l.b16 %v1539
        %v1608 = vunpack.c.l.b16 %v1540
        %v1609 = vunpack.c.l.b16 %v1541
        %v1610 = vunpack.c.l.b16 %v1542
        %v1611 = vunpack.c.l.b16 %v1543
        %v1612 = vunpack.c.l.b16 %v1544
        %v1613 = vunpack.c.l.b16 %v1545
        %v1614 = vunpack.c.l.b16 %v1546
        %v1615 = vunpack.c.l.b16 %v1547
        %v1616 = vunpack.c.l.b16 %v1548
        %v1617 = vunpack.c.l.b16 %v1549
        %v1618 = vunpack.c.l.b16 %v1550
        %v1619 = vpack.c.b16 %v1588, %v1587
        %v1620 = vpack.c.b16 %v1590, %v1589
        %v1621 = vpack.c.b16 %v1592, %v1591
        %v1622 = vpack.c.b16 %v1594, %v1593
        %v1623 = vpack.c.b16 %v1596, %v1595
        %v1624 = vpack.c.b16 %v1598, %v1597
        %v1625 = vpack.c.b16 %v1600, %v1599
        %v1626 = vpack.c.b16 %v1602, %v1601
        %v1627 = vpack.c.b16 %v1604, %v1603
        %v1628 = vpack.c.b16 %v1606, %v1605
        %v1629 = vpack.c.b16 %v1608, %v1607
        %v1630 = vpack.c.b16 %v1610, %v1609
        %v1631 = vpack.c.b16 %v1612, %v1611
        %v1632 = vpack.c.b16 %v1614, %v1613
        %v1633 = vpack.c.b16 %v1616, %v1615
        %v1634 = vpack.c.b16 %v1618, %v1617
        %1651 = vmatpush.bf16.msra.mxu0 %v1626
        %1652 = vmatpush.bf16.msra.mxu0 %v1625
        %1653 = vmatpush.bf16.msra.mxu0 %v1624
        %1654 = vmatpush.bf16.msra.mxu0 %v1623
        %1655 = vmatpush.bf16.msra.mxu0 %v1622
        %1656 = vmatpush.bf16.msra.mxu0 %v1621
        %1657 = vmatpush.bf16.msra.mxu0 %v1620
        %1658 = vmatpush.bf16.msra.mxu0 %v1619
        %1659 = vmatmul.bf16.gmra.mxu0 %v1487
        %v1660 = vpop.f32.mrf.mxu0
        %v1661 = vadd.f32 %v1553, %v1660
        %v1662 = vpop.f32.mrf.mxu0
        %v1663 = vadd.f32 %v1553, %v1662
        %1664 = vmatmul.bf16.gmra.mxu0 %v1489
        %v1665 = vpop.f32.mrf.mxu0
        %v1666 = vadd.f32 %v1553, %v1665
        %v1667 = vpop.f32.mrf.mxu0
        %v1668 = vadd.f32 %v1553, %v1667
        %1669 = vmatmul.bf16.gmra.mxu0 %v1491
        %v1670 = vpop.f32.mrf.mxu0
        %v1671 = vadd.f32 %v1553, %v1670
        %v1672 = vpop.f32.mrf.mxu0
        %v1673 = vadd.f32 %v1553, %v1672
        %1674 = vmatmul.bf16.gmra.mxu0 %v1493
        %v1675 = vpop.f32.mrf.mxu0
        %v1676 = vadd.f32 %v1553, %v1675
        %v1677 = vpop.f32.mrf.mxu0
        %v1678 = vadd.f32 %v1553, %v1677
        %1679 = vmatmul.bf16.gmra.mxu0 %v1495
        %v1680 = vpop.f32.mrf.mxu0
        %v1681 = vadd.f32 %v1553, %v1680
        %v1682 = vpop.f32.mrf.mxu0
        %v1683 = vadd.f32 %v1553, %v1682
        %1684 = vmatmul.bf16.gmra.mxu0 %v1497
        %v1685 = vpop.f32.mrf.mxu0
        %v1686 = vadd.f32 %v1553, %v1685
        %v1687 = vpop.f32.mrf.mxu0
        %v1688 = vadd.f32 %v1553, %v1687
        %1689 = vmatmul.bf16.gmra.mxu0 %v1499
        %v1690 = vpop.f32.mrf.mxu0
        %v1691 = vadd.f32 %v1553, %v1690
        %v1692 = vpop.f32.mrf.mxu0
        %v1693 = vadd.f32 %v1553, %v1692
        %1694 = vmatmul.bf16.gmra.mxu0 %v1501
        %v1695 = vpop.f32.mrf.mxu0
        %v1696 = vadd.f32 %v1553, %v1695
        %v1697 = vpop.f32.mrf.mxu0
        %v1698 = vadd.f32 %v1553, %v1697
        %1699 = vmatmul.bf16.gmra.mxu0 %v1503
        %v1700 = vpop.f32.mrf.mxu0
        %v1701 = vadd.f32 %v1553, %v1700
        %v1702 = vpop.f32.mrf.mxu0
        %v1703 = vadd.f32 %v1553, %v1702
        %1704 = vmatmul.bf16.gmra.mxu0 %v1505
        %v1705 = vpop.f32.mrf.mxu0
        %v1706 = vadd.f32 %v1553, %v1705
        %v1707 = vpop.f32.mrf.mxu0
        %v1708 = vadd.f32 %v1553, %v1707
        %1709 = vmatmul.bf16.gmra.mxu0 %v1507
        %v1710 = vpop.f32.mrf.mxu0
        %v1711 = vadd.f32 %v1553, %v1710
        %v1712 = vpop.f32.mrf.mxu0
        %v1713 = vadd.f32 %v1553, %v1712
        %1714 = vmatmul.bf16.gmra.mxu0 %v1509
        %v1715 = vpop.f32.mrf.mxu0
        %v1716 = vadd.f32 %v1553, %v1715
        %v1717 = vpop.f32.mrf.mxu0
        %v1718 = vadd.f32 %v1553, %v1717
        %1719 = vmatmul.bf16.gmra.mxu0 %v1511
        %v1720 = vpop.f32.mrf.mxu0
        %v1721 = vadd.f32 %v1553, %v1720
        %v1722 = vpop.f32.mrf.mxu0
        %v1723 = vadd.f32 %v1553, %v1722
        %1724 = vmatmul.bf16.gmra.mxu0 %v1513
        %v1725 = vpop.f32.mrf.mxu0
        %v1726 = vadd.f32 %v1553, %v1725
        %v1727 = vpop.f32.mrf.mxu0
        %v1728 = vadd.f32 %v1553, %v1727
        %1729 = vmatmul.bf16.gmra.mxu0 %v1515
        %v1730 = vpop.f32.mrf.mxu0
        %v1731 = vadd.f32 %v1553, %v1730
        %v1732 = vpop.f32.mrf.mxu0
        %v1733 = vadd.f32 %v1553, %v1732
        %1734 = vmatmul.bf16.gmra.mxu0 %v1517
        %v1735 = vpop.f32.mrf.mxu0
        %v1736 = vadd.f32 %v1553, %v1735
        %v1737 = vpop.f32.mrf.mxu0
        %v1738 = vadd.f32 %v1553, %v1737
        %1739 = vdwg.mxu0
        %1740 = vmatpush.bf16.msra.mxu0 %v1634
        %1741 = vmatpush.bf16.msra.mxu0 %v1633
        %1742 = vmatpush.bf16.msra.mxu0 %v1632
        %1743 = vmatpush.bf16.msra.mxu0 %v1631
        %1744 = vmatpush.bf16.msra.mxu0 %v1630
        %1745 = vmatpush.bf16.msra.mxu0 %v1629
        %1746 = vmatpush.bf16.msra.mxu0 %v1628
        %1747 = vmatpush.bf16.msra.mxu0 %v1627
        %1748 = vmatmul.bf16.gmra.mxu0 %v1488
        %v1749 = vpop.f32.mrf.mxu0
        %v1750 = vadd.f32 %v1661, %v1749
        %v1751 = vpop.f32.mrf.mxu0
        %v1752 = vadd.f32 %v1663, %v1751
        %1753 = vmatmul.bf16.gmra.mxu0 %v1490
        %v1754 = vpop.f32.mrf.mxu0
        %v1755 = vadd.f32 %v1666, %v1754
        %v1756 = vpop.f32.mrf.mxu0
        %v1757 = vadd.f32 %v1668, %v1756
        %1758 = vmatmul.bf16.gmra.mxu0 %v1492
        %v1759 = vpop.f32.mrf.mxu0
        %v1760 = vadd.f32 %v1671, %v1759
        %v1761 = vpop.f32.mrf.mxu0
        %v1762 = vadd.f32 %v1673, %v1761
        %1763 = vmatmul.bf16.gmra.mxu0 %v1494
        %v1764 = vpop.f32.mrf.mxu0
        %v1765 = vadd.f32 %v1676, %v1764
        %v1766 = vpop.f32.mrf.mxu0
        %v1767 = vadd.f32 %v1678, %v1766
        %1768 = vmatmul.bf16.gmra.mxu0 %v1496
        %v1769 = vpop.f32.mrf.mxu0
        %v1770 = vadd.f32 %v1681, %v1769
        %v1771 = vpop.f32.mrf.mxu0
        %v1772 = vadd.f32 %v1683, %v1771
        %1773 = vmatmul.bf16.gmra.mxu0 %v1498
        %v1774 = vpop.f32.mrf.mxu0
        %v1775 = vadd.f32 %v1686, %v1774
        %v1776 = vpop.f32.mrf.mxu0
        %v1777 = vadd.f32 %v1688, %v1776
        %1778 = vmatmul.bf16.gmra.mxu0 %v1500
        %v1779 = vpop.f32.mrf.mxu0
        %v1780 = vadd.f32 %v1691, %v1779
        %v1781 = vpop.f32.mrf.mxu0
        %v1782 = vadd.f32 %v1693, %v1781
        %1783 = vmatmul.bf16.gmra.mxu0 %v1502
        %v1784 = vpop.f32.mrf.mxu0
        %v1785 = vadd.f32 %v1696, %v1784
        %v1786 = vpop.f32.mrf.mxu0
        %v1787 = vadd.f32 %v1698, %v1786
        %1788 = vmatmul.bf16.gmra.mxu0 %v1504
        %v1789 = vpop.f32.mrf.mxu0
        %v1790 = vadd.f32 %v1701, %v1789
        %v1791 = vpop.f32.mrf.mxu0
        %v1792 = vadd.f32 %v1703, %v1791
        %1793 = vmatmul.bf16.gmra.mxu0 %v1506
        %v1794 = vpop.f32.mrf.mxu0
        %v1795 = vadd.f32 %v1706, %v1794
        %v1796 = vpop.f32.mrf.mxu0
        %v1797 = vadd.f32 %v1708, %v1796
        %1798 = vmatmul.bf16.gmra.mxu0 %v1508
        %v1799 = vpop.f32.mrf.mxu0
        %v1800 = vadd.f32 %v1711, %v1799
        %v1801 = vpop.f32.mrf.mxu0
        %v1802 = vadd.f32 %v1713, %v1801
        %1803 = vmatmul.bf16.gmra.mxu0 %v1510
        %v1804 = vpop.f32.mrf.mxu0
        %v1805 = vadd.f32 %v1716, %v1804
        %v1806 = vpop.f32.mrf.mxu0
        %v1807 = vadd.f32 %v1718, %v1806
        %1808 = vmatmul.bf16.gmra.mxu0 %v1512
        %v1809 = vpop.f32.mrf.mxu0
        %v1810 = vadd.f32 %v1721, %v1809
        %v1811 = vpop.f32.mrf.mxu0
        %v1812 = vadd.f32 %v1723, %v1811
        %1813 = vmatmul.bf16.gmra.mxu0 %v1514
        %v1814 = vpop.f32.mrf.mxu0
        %v1815 = vadd.f32 %v1726, %v1814
        %v1816 = vpop.f32.mrf.mxu0
        %v1817 = vadd.f32 %v1728, %v1816
        %1818 = vmatmul.bf16.gmra.mxu0 %v1516
        %v1819 = vpop.f32.mrf.mxu0
        %v1820 = vadd.f32 %v1731, %v1819
        %v1821 = vpop.f32.mrf.mxu0
        %v1822 = vadd.f32 %v1733, %v1821
        %1823 = vmatmul.bf16.gmra.mxu0 %v1518
        %v1824 = vpop.f32.mrf.mxu0
        %v1825 = vadd.f32 %v1736, %v1824
        %v1826 = vpop.f32.mrf.mxu0
        %v1827 = vadd.f32 %v1738, %v1826
        %1828 = vdwg.mxu0
        %1829 = vst [vmem:[%s362] sm:$0xff] %v1750
        %1830 = vst [vmem:[%s362 + $0x8] sm:$0xff] %v1752
        %1831 = vst [vmem:[%s362 + $0x10] sm:$0xff] %v1755
        %1832 = vst [vmem:[%s362 + $0x18] sm:$0xff] %v1757
        %1833 = vst [vmem:[%s362 + $0x20] sm:$0xff] %v1760
        %1834 = vst [vmem:[%s362 + $0x28] sm:$0xff] %v1762
        %1835 = vst [vmem:[%s362 + $0x30] sm:$0xff] %v1765
        %1836 = vst [vmem:[%s362 + $0x38] sm:$0xff] %v1767
        %1837 = vst [vmem:[%s362 + $0x40] sm:$0xff] %v1770
        %1838 = vst [vmem:[%s362 + $0x48] sm:$0xff] %v1772
        %1839 = vst [vmem:[%s362 + $0x50] sm:$0xff] %v1775
        %1840 = vst [vmem:[%s362 + $0x58] sm:$0xff] %v1777
        %1841 = vst [vmem:[%s362 + $0x60] sm:$0xff] %v1780
        %1842 = vst [vmem:[%s362 + $0x68] sm:$0xff] %v1782
        %1843 = vst [vmem:[%s362 + $0x70] sm:$0xff] %v1785
        %1844 = vst [vmem:[%s362 + $0x78] sm:$0xff] %v1787
        %1845 = vst [vmem:[%s362 + $0x80] sm:$0xff] %v1790
        %1846 = vst [vmem:[%s362 + $0x88] sm:$0xff] %v1792
        %1847 = vst [vmem:[%s362 + $0x90] sm:$0xff] %v1795
        %1848 = vst [vmem:[%s362 + $0x98] sm:$0xff] %v1797
        %1849 = vst [vmem:[%s362 + $0xa0] sm:$0xff] %v1800
        %1850 = vst [vmem:[%s362 + $0xa8] sm:$0xff] %v1802
        %1851 = vst [vmem:[%s362 + $0xb0] sm:$0xff] %v1805
        %1852 = vst [vmem:[%s362 + $0xb8] sm:$0xff] %v1807
        %1853 = vst [vmem:[%s362 + $0xc0] sm:$0xff] %v1810
        %1854 = vst [vmem:[%s362 + $0xc8] sm:$0xff] %v1812
        %1855 = vst [vmem:[%s362 + $0xd0] sm:$0xff] %v1815
        %1856 = vst [vmem:[%s362 + $0xd8] sm:$0xff] %v1817
        %1857 = vst [vmem:[%s362 + $0xe0] sm:$0xff] %v1820
        %1858 = vst [vmem:[%s362 + $0xe8] sm:$0xff] %v1822
        %1859 = vst [vmem:[%s362 + $0xf0] sm:$0xff] %v1825
        %1860 = vst [vmem:[%s362 + $0xf8] sm:$0xff] %v1827
        %s1861 = sand.u32 %s186, 1
        %s1862 = scalar_lea.sflag [#allocation4], %s1861
        %s1863 = sand.u32 %s186, 1
        %s1864 = smul.addr %s1863, 256
        %s1865 = scalar_lea.vmem [#allocation11], %s1864
        // Predicated region
        $region69: #{tpu_custom_call.1} parent=47 // pred_check
          %p1866 = pneg %p196
        $region70: #{tpu_custom_call.1} parent=47 // pred_check_branch
          %1868 = sbr.rel (%p1866) target = $region72
        $region71: #{tpu_custom_call.1} parent=47 // pred_region
          %s1869 = smul.u32 32, %s26
          %1871 = vsyncadd %s1862, 0
          %s1872 = smul.addr %s1869, 8
          %s1873 = scalar_lea.hbm %s7, %s1872
          %s1874 = sshll.u32 %s1865, 4
          %s1875 = int_to_ptr.vmem [resolvable:$true] %s1874
          %s1876 = sshll.u32 %s1873, 4
          %s1877 = int_to_ptr.hbm [resolvable:$true] %s1876
          %1882 = dma.vmem_to_hbm [thread:$0]  %s1875, 4096, %s1877, %s1862, 128, 128, 8
        $region72: #{tpu_custom_call.1} parent=47 // pred_fallthru
          _
      $region48: #{tpu_custom_call.1} parent=5 // pred_fallthru
        _
      %p1883 = scmp.le.s32.totalorder 2, %s21
      // Predicated region
      $region73: #{tpu_custom_call.1} parent=5 // pred_check
        %p1884 = pneg %p1883
      $region74: #{tpu_custom_call.1} parent=5 // pred_check_branch
        %1886 = sbr.rel (%p1884) target = $region76
      $region75: #{tpu_custom_call.1} parent=5 // pred_region
        %s1887 = ssub.s32 %s21, 2
        // Predicated region
        $region77: #{tpu_custom_call.1} parent=75 // pred_check
          %p1888 = pneg %p202
        $region78: #{tpu_custom_call.1} parent=75 // pred_check_branch
          %1890 = sbr.rel (%p1888) target = $region80
        $region79: #{tpu_custom_call.1} parent=75 // pred_region
          %s1891 = sand.u32 %s187, 1
          %s1892 = scalar_lea.sflag [#allocation4], %s1891
          %s1893 = sand.u32 %s187, 1
          %s1894 = smul.addr %s1893, 256
          %s1895 = scalar_lea.vmem [#allocation11], %s1894
          %1897 = dma.done %s1892, 4096
        $region80: #{tpu_custom_call.1} parent=75 // pred_fallthru
          _
      $region76: #{tpu_custom_call.1} parent=5 // pred_fallthru
        _
    $region6: #{tpu_custom_call.1} parent=1 // loop_footer
      %s25 = sadd.s32 1, %s21
    $region7: #{tpu_custom_call.1} parent=1 // loop_footer_branch
      %20 = sbr.rel target = $region3
    $region8: #{tpu_custom_call.1} parent=1 // loop_exit
      _
    %1898 = vsyncpa [#allocation3], 1
    %s1899 = scalar_lea.sflag [#allocation3], 1
    %1900 = vsyncpa %s1899, 1
    %1901 = vsyncpa [#allocation6], 1
    %1902 = vsyncpa [#allocation9], 1
    %1903 = vsyncpa [#allocation4], 1
    %s1904 = scalar_lea.sflag [#allocation4], 1
    %1905 = vsyncpa %s1904, 1

</llo_original>
